<compile_context>
chip_gen: v7x
topology: tpu7x:2x2x1
jax: 0.10.0
libtpu: 0.0.40
codegen_flags: <defaults>
</compile_context>

<pallas_src>
from functools import partial

import jax
import jax.numpy as jnp
from jax.experimental import pallas as pl
from jax.experimental.pallas import tpu as pltpu


def _round_up(x, m):
    return (x + m - 1) // m * m


# ----------------------------------------------------------------------------
# Fused decoder kernel: convA(3x3) + convB(3x3) + out(1x1), one batch per step
# ----------------------------------------------------------------------------
def _decoder_kernel(x_ref, vmask_ref, wA_ref, bA_ref, wB_ref, bB_ref,
                    wO_ref, bO_ref, o_ref, y_ref, a_pad,
                    *, wp, mrow, off, f2):
    """Refs (per grid step / batch image):
      x_ref    : (1, NPAD, Cm)   bf16  zero-padded row-flattened merged activation
                                       [up(channel) | ones | erp(Ce)]
      vmask_ref: (MROW, 1)       f32   1.0 on real pixels, 0.0 on flattening junk cols
      wA_ref   : (Cm, 9*f2)      bf16  tap-packed convA weights (conv2 + BN folded)
      wB_ref   : (f2, 9*f2)      bf16  tap-packed convB weights (BN folded)
      bA/bB    : (1, f2)         f32   folded conv+BN biases
      wO_ref   : (Dout, f2)      bf16  final 1x1 conv, channel-major
      bO_ref   : (Dout, 1)       f32
      o_ref    : (1, Dout, MROW) f32   channel-major output (lane-dense)
      y_ref    : (NPAD, 9*f2)    f32   VMEM scratch for the wide per-tap dot results
      a_pad    : (NPAD, f2)      bf16  VMEM scratch: zero-ring padded convA output
    """
    vmask = vmask_ref[...]                                     # (MROW, 1)

    # ---- convA: ONE wide MXU dot (npad, Cm) @ (Cm, 9*f2), then 9 shifted tap-adds ----
    y_ref[...] = jnp.dot(x_ref[0], wA_ref[...],
                         preferred_element_type=jnp.float32)
    acc_a = jnp.zeros((mrow, f2), jnp.float32)
    for ky in range(3):
        for kx in range(3):
            t = ky * 3 + kx
            s = ky * wp + kx                                   # tap window start
            acc_a = acc_a + y_ref[s:s + mrow, t * f2:(t + 1) * f2]
    a = acc_a + bA_ref[...]
    a = jnp.where(a >= 0.0, a, 0.01 * a)                       # LeakyReLU (f32 epilogue)
    a = a * vmask                                              # zero flattening junk cols

    # ---- stage convA output in a zero-ring scratch so convB sees zero padding ----
    # Only head/tail re-zeroed each step; the middle is fully overwritten below.
    npad = a_pad.shape[0]
    a_pad[0:off, :] = jnp.zeros((off, f2), a_pad.dtype)
    a_pad[off + mrow:, :] = jnp.zeros((npad - off - mrow, f2), a_pad.dtype)
    a_pad[off:off + mrow, :] = a.astype(a_pad.dtype)           # 16-row aligned bf16 store

    # ---- convB: one wide dot over the padded convA output, 9 shifted tap-adds ----
    y_ref[...] = jnp.dot(a_pad[...], wB_ref[...],
                         preferred_element_type=jnp.float32)
    base = off - wp - 1
    acc_b = jnp.zeros((mrow, f2), jnp.float32)
    for ky in range(3):
        for kx in range(3):
            t = ky * 3 + kx
            s = base + ky * wp + kx
            acc_b = acc_b + y_ref[s:s + mrow, t * f2:(t + 1) * f2]
    b = acc_b + bB_ref[...]
    b = jnp.where(b >= 0.0, b, 0.01 * b)                       # LeakyReLU

    # ---- final 1x1 conv, channel-major output so the store is lane-dense ----
    o = jax.lax.dot_general(wO_ref[...], b.astype(wO_ref.dtype),
                            dimension_numbers=(((1,), (1,)), ((), ())),
                            preferred_element_type=jnp.float32)   # (Dout, MROW)
    o_ref[0] = o + bO_ref[...]


# ----------------------------------------------------------------------------
# Plain-JAX glue: bilinear resize with align_corners=True (matches F.interpolate)
# ----------------------------------------------------------------------------
def bilinear_align_corners(x, out_h, out_w):
    """x: (B, H, W, C) -> (B, out_h, out_w, C)."""
    B, H, W, C = x.shape

    def coords(n_in, n_out):
        if n_out == 1 or n_in == 1:
            return jnp.zeros((n_out,), jnp.float32)
        return jnp.arange(n_out, dtype=jnp.float32) * ((n_in - 1) / (n_out - 1))

    ry, rx = coords(H, out_h), coords(W, out_w)
    y0 = jnp.floor(ry).astype(jnp.int32)
    x0 = jnp.floor(rx).astype(jnp.int32)
    y1 = jnp.minimum(y0 + 1, H - 1)
    x1 = jnp.minimum(x0 + 1, W - 1)
    wy = (ry - y0.astype(jnp.float32))[None, :, None, None]
    wx = (rx - x0.astype(jnp.float32))[None, None, :, None]

    def g(yi, xi):
        return x[:, yi][:, :, xi]

    top = g(y0, x0) * (1.0 - wx) + g(y0, x1) * wx
    bot = g(y1, x0) * (1.0 - wx) + g(y1, x1) * wx
    return top * (1.0 - wy) + bot * wy


# ----------------------------------------------------------------------------
# Forward pass wrapper (NCHW in / NCHW out)
# ----------------------------------------------------------------------------
def decoder_forward(shared_nchw, erp_nchw, kp):
    B, channel = shared_nchw.shape[:2]
    Ce, He, We = erp_nchw.shape[1:]
    f2 = kp["bA"].shape[-1]
    dout = kp["bO"].shape[0]
    cm = kp["wA"].shape[0]                                      # channel + 1 + Ce
    assert cm == channel + 1 + Ce

    hp, wp = He + 2, We + 2
    mrow = He * wp                                              # flattened output rows (2 junk cols/row)
    off = _round_up(wp + 1, 16)                                 # a_pad offset (bf16 sublane alignment)
    npad = _round_up(off + wp + mrow + 1, 16)                   # covers every tap window

    x = jnp.transpose(shared_nchw, (0, 2, 3, 1)).astype(jnp.float32)   # NHWC
    erp = jnp.transpose(erp_nchw, (0, 2, 3, 1)).astype(jnp.float32)

    # conv2 (1x1) commutes with bilinear resize -> folded into convA's weights;
    # the ones channel carries conv2's bias (zero in the conv padding ring).
    up = bilinear_align_corners(x, He, We)
    merged = jnp.concatenate(
        [up, jnp.ones((B, He, We, 1), jnp.float32), erp], axis=-1)      # (B, He, We, Cm)

    # Single fused producer: cast -> zero ring -> row-flatten -> tail pad.
    # TODO(synk): for large He/We, replace this HBM copy with in-kernel DMA of
    # unpadded rows into a pre-zeroed VMEM staging buffer + row-tiled grid.
    m = merged.astype(jnp.bfloat16)
    m = jnp.pad(m, ((0, 0), (1, 1), (1, 1), (0, 0)))
    m = m.reshape(B, hp * wp, cm)
    m = jnp.pad(m, ((0, 0), (0, npad - hp * wp), (0, 0)))               # (B, npad, Cm)

    vmask = (jnp.arange(mrow) % wp < We).astype(jnp.float32).reshape(mrow, 1)

    # Explicit scoped-VMEM budget sized from the block footprint (v5e default
    # scoped limit is only 16 MiB); clamped well below v7x's 64 MiB physical.
    def tile_bytes(rows, cols, itemsize):
        return rows * _round_up(cols, 128) * itemsize
    est = (2 * tile_bytes(npad, cm, 2)            # input slab (double buffered)
           + tile_bytes(npad, 9 * f2, 4)          # y scratch
           + tile_bytes(npad, f2, 2)              # a_pad scratch
           + 2 * tile_bytes(dout, mrow, 4)        # output (double buffered)
           + 2 * tile_bytes(cm + f2, 9 * f2, 2)   # tap-packed weights
           + 2 * tile_bytes(mrow, 1, 4)           # vmask
           + 4 * tile_bytes(mrow, 9 * f2, 4))     # headroom for in-kernel temporaries
    vmem_limit = int(min(max(4 * est, 16 * 1024 * 1024), 48 * 1024 * 1024))

    kernel = partial(_decoder_kernel, wp=wp, mrow=mrow, off=off, f2=f2)
    out = pl.pallas_call(
        kernel,
        out_shape=jax.ShapeDtypeStruct((B, dout, mrow), jnp.float32),
        grid=(B,),
        in_specs=[
            pl.BlockSpec((1, npad, cm), lambda b: (b, 0, 0)),
            pl.BlockSpec((mrow, 1), lambda b: (0, 0)),
            pl.BlockSpec((cm, 9 * f2), lambda b: (0, 0)),
            pl.BlockSpec((1, f2), lambda b: (0, 0)),
            pl.BlockSpec((f2, 9 * f2), lambda b: (0, 0)),
            pl.BlockSpec((1, f2), lambda b: (0, 0)),
            pl.BlockSpec((dout, f2), lambda b: (0, 0)),
            pl.BlockSpec((dout, 1), lambda b: (0, 0)),
        ],
        out_specs=pl.BlockSpec((1, dout, mrow), lambda b: (b, 0, 0)),
        scratch_shapes=[pltpu.VMEM((npad, 9 * f2), jnp.float32),
                        pltpu.VMEM((npad, f2), jnp.bfloat16)],
        compiler_params=pltpu.CompilerParams(
            dimension_semantics=("parallel",),       # batch images across TCs (v7x: 2 cores)
            vmem_limit_bytes=vmem_limit,
        ),
    )(m, vmask, kp["wA"], kp["bA"], kp["wB"], kp["bB"], kp["wO"], kp["bO"])

    # Channel-major output: reshape + drop flattening junk cols -> already NCHW.
    return out.reshape(B, dout, He, wp)[:, :, :, :We]


# ----------------------------------------------------------------------------
# Parameters: raw (PyTorch-like) params + host-side folding for the kernel
# ----------------------------------------------------------------------------
def make_raw_params(channel, features, erp_channels, output_dim, key):
    f2 = features // 2
    skip = features + erp_channels
    ks = jax.random.split(key, 16)

    def nrm(k, shape, s=0.05):
        return s * jax.random.normal(k, shape, dtype=jnp.float32)

    p = {
        "conv2_w": nrm(ks[0], (features, channel, 1, 1)),
        "conv2_b": nrm(ks[1], (features,)),
        "convA_w": nrm(ks[2], (f2, skip, 3, 3)),
        "convA_b": nrm(ks[7], (f2,)),
        "bnA_gamma": 1.0 + nrm(ks[3], (f2,)),
        "bnA_beta": nrm(ks[4], (f2,)),
        "bnA_mean": nrm(ks[5], (f2,)),
        "bnA_var": 0.5 + jnp.abs(nrm(ks[6], (f2,), 0.2)),
        "convB_w": nrm(ks[8], (f2, f2, 3, 3)),
        "convB_b": nrm(ks[13], (f2,)),
        "bnB_gamma": 1.0 + nrm(ks[9], (f2,)),
        "bnB_beta": nrm(ks[10], (f2,)),
        "bnB_mean": nrm(ks[11], (f2,)),
        "bnB_var": 0.5 + jnp.abs(nrm(ks[12], (f2,), 0.2)),
        "out_w": nrm(ks[14], (output_dim, f2, 1, 1)),
        "out_b": nrm(ks[15], (output_dim,)),
    }
    return p


def prepare_kernel_params(p, eps=1e-5):
    features = p["conv2_w"].shape[0]
    f2 = p["convA_w"].shape[0]
    dout = p["out_w"].shape[0]

    w2 = jnp.transpose(p["conv2_w"][:, :, 0, 0], (1, 0))       # (channel, features)
    b2 = p["conv2_b"]

    def fold(w_oihw, conv_b, g, beta, mean, var):
        scale = g / jnp.sqrt(var + eps)
        return w_oihw * scale[:, None, None, None], beta + scale * (conv_b - mean)

    wA, bA = fold(p["convA_w"], p["convA_b"], p["bnA_gamma"], p["bnA_beta"],
                  p["bnA_mean"], p["bnA_var"])
    wB, bB = fold(p["convB_w"], p["convB_b"], p["bnB_gamma"], p["bnB_beta"],
                  p["bnB_mean"], p["bnB_var"])

    # Tap-pack along the MXU N dimension: convA -> (Cm, 9*f2), convB -> (f2, 9*f2).
    tapsA, tapsB = [], []
    for ky in range(3):
        for kx in range(3):
            wa_t = jnp.transpose(wA[:, :, ky, kx], (1, 0))      # (features+Ce, f2)
            wa_up, wa_erp = wa_t[:features, :], wa_t[features:, :]
            # compose conv2 into the up block; ones channel carries conv2's bias
            tapsA.append(jnp.concatenate(
                [w2 @ wa_up, (b2 @ wa_up)[None, :], wa_erp], axis=0))   # (channel+1+Ce, f2)
            tapsB.append(jnp.transpose(wB[:, :, ky, kx], (1, 0)))       # (f2, f2)

    return {
        "wA": jnp.concatenate(tapsA, axis=1).astype(jnp.bfloat16),      # (Cm, 9*f2)
        "bA": bA.reshape(1, f2).astype(jnp.float32),
        "wB": jnp.concatenate(tapsB, axis=1).astype(jnp.bfloat16),      # (f2, 9*f2)
        "bB": bB.reshape(1, f2).astype(jnp.float32),
        "wO": p["out_w"][:, :, 0, 0].astype(jnp.bfloat16),              # (dout, f2)
        "bO": p["out_b"].reshape(dout, 1).astype(jnp.float32),
    }


# ----------------------------------------------------------------------------
# Plain-JAX reference (matches the PyTorch module's eval-mode math)
# ----------------------------------------------------------------------------
def reference_forward(shared_nchw, erp_nchw, p, eps=1e-5):
    x = jnp.transpose(shared_nchw, (0, 2, 3, 1)).astype(jnp.float32)
    erp = jnp.transpose(erp_nchw, (0, 2, 3, 1)).astype(jnp.float32)
    He, We = erp.shape[1:3]

    w2 = jnp.transpose(p["conv2_w"][:, :, 0, 0], (1, 0))
    d0 = x @ w2 + p["conv2_b"]
    up = bilinear_align_corners(d0, He, We)
    f = jnp.concatenate([up, erp], axis=-1)

    def conv_bn_lrelu(t, w_oihw, conv_b, g, beta, mean, var):
        w = jnp.transpose(w_oihw, (2, 3, 1, 0))                # HWIO
        y = jax.lax.conv_general_dilated(t, w, (1, 1), "SAME",
                                         dimension_numbers=("NHWC", "HWIO", "NHWC"))
        y = y + conv_b
        y = (y - mean) * (g / jnp.sqrt(var + eps)) + beta
        return jnp.where(y >= 0.0, y, 0.01 * y)

    a = conv_bn_lrelu(f, p["convA_w"], p["convA_b"], p["bnA_gamma"],
                      p["bnA_beta"], p["bnA_mean"], p["bnA_var"])
    b = conv_bn_lrelu(a, p["convB_w"], p["convB_b"], p["bnB_gamma"],
                      p["bnB_beta"], p["bnB_mean"], p["bnB_var"])
    wo = jnp.transpose(p["out_w"][:, :, 0, 0], (1, 0))
    o = b @ wo + p["out_b"]
    return jnp.transpose(o, (0, 3, 1, 2))


if __name__ == "__main__":
    # res18 branch: channel=8, features=32 (f2=16), erp_feature has 256 channels.
    B, channel, features, erp_channels, output_dim = 2, 8, 32, 256, 4
    Hs, Ws, He, We = 8, 8, 16, 16

    key = jax.random.PRNGKey(0)
    k_shared, k_erp, k_params = jax.random.split(key, 3)
    shared_representation = jax.random.normal(k_shared, (B, channel, Hs, Ws), jnp.float32)
    erp_feature = jax.random.normal(k_erp, (B, erp_channels, He, We), jnp.float32)

    raw = make_raw_params(channel, features, erp_channels, output_dim, k_params)
    kp = prepare_kernel_params(raw)

    fwd = jax.jit(decoder_forward)
    out = fwd(shared_representation, erp_feature, kp)
    jax.block_until_ready(out)

    assert out.shape == (B, output_dim, He, We), out.shape
    assert bool(jnp.all(jnp.isfinite(out)))

    ref = reference_forward(shared_representation, erp_feature, raw)
    rel = float(jnp.max(jnp.abs(out - ref)) / (jnp.max(jnp.abs(ref)) + 1e-6))
    # Tight enough to catch tap-packing / shift layout bugs (bf16 ops, f32 acc).
    assert rel < 2e-2, f"mismatch vs reference: rel={rel}"
    print("KERNEL_OK")
</pallas_src>

<mosaic_0001>
module attributes {stable_mosaic.version = 11 : i64} {
  func.func @_decoder_kernel(%arg0: i32, %arg1: memref<1x352x265xbf16, #tpu.memory_space<vmem>>, %arg2: memref<288x1xf32, #tpu.memory_space<vmem>>, %arg3: memref<265x144xbf16, #tpu.memory_space<vmem>>, %arg4: memref<1x16xf32, #tpu.memory_space<vmem>>, %arg5: memref<16x144xbf16, #tpu.memory_space<vmem>>, %arg6: memref<1x16xf32, #tpu.memory_space<vmem>>, %arg7: memref<4x16xbf16, #tpu.memory_space<vmem>>, %arg8: memref<4x1xf32, #tpu.memory_space<vmem>>, %arg9: memref<1x4x288xf32, #tpu.memory_space<vmem>>, %arg10: memref<352x144xf32, #tpu.memory_space<vmem>>, %arg11: memref<352x16xbf16, #tpu.memory_space<vmem>>) attributes {dimension_semantics = [#tpu.dimension_semantics<parallel>], iteration_bounds = array<i64: 2>, scalar_prefetch = 0 : i64, scratch_operands = 2 : i64, tpu.core_type = #tpu.core_type<tc>, window_params = [{transform_indices = @transform_0, window_bounds = array<i64: 1, 352, 265>}, {pipeline_mode = #tpu.pipeline_mode<synchronous>, transform_indices = @transform_1, window_bounds = array<i64: 288, 1>}, {pipeline_mode = #tpu.pipeline_mode<synchronous>, transform_indices = @transform_2, window_bounds = array<i64: 265, 144>}, {pipeline_mode = #tpu.pipeline_mode<synchronous>, transform_indices = @transform_3, window_bounds = array<i64: 1, 16>}, {pipeline_mode = #tpu.pipeline_mode<synchronous>, transform_indices = @transform_4, window_bounds = array<i64: 16, 144>}, {pipeline_mode = #tpu.pipeline_mode<synchronous>, transform_indices = @transform_5, window_bounds = array<i64: 1, 16>}, {pipeline_mode = #tpu.pipeline_mode<synchronous>, transform_indices = @transform_6, window_bounds = array<i64: 4, 16>}, {pipeline_mode = #tpu.pipeline_mode<synchronous>, transform_indices = @transform_7, window_bounds = array<i64: 4, 1>}, {transform_indices = @transform_8, window_bounds = array<i64: 1, 4, 288>}]} {
    %c0 = arith.constant 0 : index
    %c0_0 = arith.constant 0 : index
    %0 = vector.load %arg2[%c0, %c0_0] : memref<288x1xf32, #tpu.memory_space<vmem>>, vector<288x1xf32>
    %c0_1 = arith.constant 0 : index
    %c0_2 = arith.constant 0 : index
    %c0_3 = arith.constant 0 : index
    %1 = vector.load %arg1[%c0_1, %c0_2, %c0_3] : memref<1x352x265xbf16, #tpu.memory_space<vmem>>, vector<1x352x265xbf16>
    %2 = vector.shape_cast %1 : vector<1x352x265xbf16> to vector<352x265xbf16>
    %c0_4 = arith.constant 0 : index
    %c0_5 = arith.constant 0 : index
    %3 = vector.load %arg3[%c0_4, %c0_5] : memref<265x144xbf16, #tpu.memory_space<vmem>>, vector<265x144xbf16>
    %cst = arith.constant dense<0.000000e+00> : vector<352x144xf32>
    %4 = tpu.matmul %2, %3, %cst {dimension_numbers = #tpu.dot_dimension_numbers<[1], [0], [0], [1], [0, 0, 1, 1], [], []>} : vector<352x265xbf16>, vector<265x144xbf16>, vector<352x144xf32> -> vector<352x144xf32>
    %c0_6 = arith.constant 0 : index
    %c0_7 = arith.constant 0 : index
    %5 = vector.load %arg10[%c0_6, %c0_7] : memref<352x144xf32, #tpu.memory_space<vmem>>, vector<352x144xf32>
    tpu.vector_store %arg10[%c0_6, %c0_7], %4 {strides = array<i32>} : memref<352x144xf32, #tpu.memory_space<vmem>>, vector<352x144xf32>,
    %cst_8 = arith.constant 0.000000e+00 : f32
    %6 = vector.broadcast %cst_8 : f32 to vector<288x16xf32>
    %c0_9 = arith.constant 0 : index
    %c0_10 = arith.constant 0 : index
    %7 = vector.load %arg10[%c0_9, %c0_10] : memref<352x144xf32, #tpu.memory_space<vmem>>, vector<288x16xf32>
    %8 = arith.addf %6, %7 : vector<288x16xf32>
    %c1 = arith.constant 1 : index
    %c16 = arith.constant 16 : index
    %9 = vector.load %arg10[%c1, %c16] : memref<352x144xf32, #tpu.memory_space<vmem>>, vector<288x16xf32>
    %10 = arith.addf %8, %9 : vector<288x16xf32>
    %c2 = arith.constant 2 : index
    %c32 = arith.constant 32 : index
    %11 = vector.load %arg10[%c2, %c32] : memref<352x144xf32, #tpu.memory_space<vmem>>, vector<288x16xf32>
    %12 = arith.addf %10, %11 : vector<288x16xf32>
    %c18 = arith.constant 18 : index
    %c48 = arith.constant 48 : index
    %13 = vector.load %arg10[%c18, %c48] : memref<352x144xf32, #tpu.memory_space<vmem>>, vector<288x16xf32>
    %14 = arith.addf %12, %13 : vector<288x16xf32>
    %c19 = arith.constant 19 : index
    %c64 = arith.constant 64 : index
    %15 = vector.load %arg10[%c19, %c64] : memref<352x144xf32, #tpu.memory_space<vmem>>, vector<288x16xf32>
    %16 = arith.addf %14, %15 : vector<288x16xf32>
    %c20 = arith.constant 20 : index
    %c80 = arith.constant 80 : index
    %17 = vector.load %arg10[%c20, %c80] : memref<352x144xf32, #tpu.memory_space<vmem>>, vector<288x16xf32>
    %18 = arith.addf %16, %17 : vector<288x16xf32>
    %c36 = arith.constant 36 : index
    %c96 = arith.constant 96 : index
    %19 = vector.load %arg10[%c36, %c96] : memref<352x144xf32, #tpu.memory_space<vmem>>, vector<288x16xf32>
    %20 = arith.addf %18, %19 : vector<288x16xf32>
    %c37 = arith.constant 37 : index
    %c112 = arith.constant 112 : index
    %21 = vector.load %arg10[%c37, %c112] : memref<352x144xf32, #tpu.memory_space<vmem>>, vector<288x16xf32>
    %22 = arith.addf %20, %21 : vector<288x16xf32>
    %c38 = arith.constant 38 : index
    %c128 = arith.constant 128 : index
    %23 = vector.load %arg10[%c38, %c128] : memref<352x144xf32, #tpu.memory_space<vmem>>, vector<288x16xf32>
    %24 = arith.addf %22, %23 : vector<288x16xf32>
    %c0_11 = arith.constant 0 : index
    %c0_12 = arith.constant 0 : index
    %25 = vector.load %arg4[%c0_11, %c0_12] : memref<1x16xf32, #tpu.memory_space<vmem>>, vector<1x16xf32>
    %26 = vector.broadcast %25 : vector<1x16xf32> to vector<288x16xf32>
    %27 = arith.addf %24, %26 : vector<288x16xf32>
    %cst_13 = arith.constant 0.000000e+00 : f32
    %28 = vector.broadcast %cst_13 : f32 to vector<288x16xf32>
    %29 = arith.cmpf oge, %27, %28 : vector<288x16xf32>
    %cst_14 = arith.constant 0.00999999977 : f32
    %30 = vector.broadcast %cst_14 : f32 to vector<288x16xf32>
    %31 = arith.mulf %30, %27 : vector<288x16xf32>
    %32 = arith.select %29, %27, %31 : vector<288x16xi1>, vector<288x16xf32>
    %33 = vector.broadcast %0 : vector<288x1xf32> to vector<288x16xf32>
    %34 = arith.mulf %32, %33 : vector<288x16xf32>
    %cst_15 = arith.constant 0.000000e+00 : bf16
    %35 = vector.broadcast %cst_15 : bf16 to vector<32x16xbf16>
    %c0_16 = arith.constant 0 : index
    %c0_17 = arith.constant 0 : index
    %36 = vector.load %arg11[%c0_16, %c0_17] : memref<352x16xbf16, #tpu.memory_space<vmem>>, vector<32x16xbf16>
    tpu.vector_store %arg11[%c0_16, %c0_17], %35 {strides = array<i32>} : memref<352x16xbf16, #tpu.memory_space<vmem>>, vector<32x16xbf16>,
    %cst_18 = arith.constant 0.000000e+00 : bf16
    %37 = vector.broadcast %cst_18 : bf16 to vector<32x16xbf16>
    %c320 = arith.constant 320 : index
    %c0_19 = arith.constant 0 : index
    %38 = vector.load %arg11[%c320, %c0_19] : memref<352x16xbf16, #tpu.memory_space<vmem>>, vector<32x16xbf16>
    tpu.vector_store %arg11[%c320, %c0_19], %37 {strides = array<i32>} : memref<352x16xbf16, #tpu.memory_space<vmem>>, vector<32x16xbf16>,
    %39 = arith.truncf %34 : vector<288x16xf32> to vector<288x16xbf16>
    %c32_20 = arith.constant 32 : index
    %c0_21 = arith.constant 0 : index
    %40 = vector.load %arg11[%c32_20, %c0_21] : memref<352x16xbf16, #tpu.memory_space<vmem>>, vector<288x16xbf16>
    tpu.vector_store %arg11[%c32_20, %c0_21], %39 {strides = array<i32>} : memref<352x16xbf16, #tpu.memory_space<vmem>>, vector<288x16xbf16>,
    %c0_22 = arith.constant 0 : index
    %c0_23 = arith.constant 0 : index
    %41 = vector.load %arg11[%c0_22, %c0_23] : memref<352x16xbf16, #tpu.memory_space<vmem>>, vector<352x16xbf16>
    %c0_24 = arith.constant 0 : index
    %c0_25 = arith.constant 0 : index
    %42 = vector.load %arg5[%c0_24, %c0_25] : memref<16x144xbf16, #tpu.memory_space<vmem>>, vector<16x144xbf16>
    %cst_26 = arith.constant dense<0.000000e+00> : vector<352x144xf32>
    %43 = tpu.matmul %41, %42, %cst_26 {dimension_numbers = #tpu.dot_dimension_numbers<[1], [0], [0], [1], [0, 0, 1, 1], [], []>} : vector<352x16xbf16>, vector<16x144xbf16>, vector<352x144xf32> -> vector<352x144xf32>
    %c0_27 = arith.constant 0 : index
    %c0_28 = arith.constant 0 : index
    %44 = vector.load %arg10[%c0_27, %c0_28] : memref<352x144xf32, #tpu.memory_space<vmem>>, vector<352x144xf32>
    tpu.vector_store %arg10[%c0_27, %c0_28], %43 {strides = array<i32>} : memref<352x144xf32, #tpu.memory_space<vmem>>, vector<352x144xf32>,
    %cst_29 = arith.constant 0.000000e+00 : f32
    %45 = vector.broadcast %cst_29 : f32 to vector<288x16xf32>
    %c13 = arith.constant 13 : index
    %c0_30 = arith.constant 0 : index
    %46 = vector.load %arg10[%c13, %c0_30] : memref<352x144xf32, #tpu.memory_space<vmem>>, vector<288x16xf32>
    %47 = arith.addf %45, %46 : vector<288x16xf32>
    %c14 = arith.constant 14 : index
    %c16_31 = arith.constant 16 : index
    %48 = vector.load %arg10[%c14, %c16_31] : memref<352x144xf32, #tpu.memory_space<vmem>>, vector<288x16xf32>
    %49 = arith.addf %47, %48 : vector<288x16xf32>
    %c15 = arith.constant 15 : index
    %c32_32 = arith.constant 32 : index
    %50 = vector.load %arg10[%c15, %c32_32] : memref<352x144xf32, #tpu.memory_space<vmem>>, vector<288x16xf32>
    %51 = arith.addf %49, %50 : vector<288x16xf32>
    %c31 = arith.constant 31 : index
    %c48_33 = arith.constant 48 : index
    %52 = vector.load %arg10[%c31, %c48_33] : memref<352x144xf32, #tpu.memory_space<vmem>>, vector<288x16xf32>
    %53 = arith.addf %51, %52 : vector<288x16xf32>
    %c32_34 = arith.constant 32 : index
    %c64_35 = arith.constant 64 : index
    %54 = vector.load %arg10[%c32_34, %c64_35] : memref<352x144xf32, #tpu.memory_space<vmem>>, vector<288x16xf32>
    %55 = arith.addf %53, %54 : vector<288x16xf32>
    %c33 = arith.constant 33 : index
    %c80_36 = arith.constant 80 : index
    %56 = vector.load %arg10[%c33, %c80_36] : memref<352x144xf32, #tpu.memory_space<vmem>>, vector<288x16xf32>
    %57 = arith.addf %55, %56 : vector<288x16xf32>
    %c49 = arith.constant 49 : index
    %c96_37 = arith.constant 96 : index
    %58 = vector.load %arg10[%c49, %c96_37] : memref<352x144xf32, #tpu.memory_space<vmem>>, vector<288x16xf32>
    %59 = arith.addf %57, %58 : vector<288x16xf32>
    %c50 = arith.constant 50 : index
    %c112_38 = arith.constant 112 : index
    %60 = vector.load %arg10[%c50, %c112_38] : memref<352x144xf32, #tpu.memory_space<vmem>>, vector<288x16xf32>
    %61 = arith.addf %59, %60 : vector<288x16xf32>
    %c51 = arith.constant 51 : index
    %c128_39 = arith.constant 128 : index
    %62 = vector.load %arg10[%c51, %c128_39] : memref<352x144xf32, #tpu.memory_space<vmem>>, vector<288x16xf32>
    %63 = arith.addf %61, %62 : vector<288x16xf32>
    %c0_40 = arith.constant 0 : index
    %c0_41 = arith.constant 0 : index
    %64 = vector.load %arg6[%c0_40, %c0_41] : memref<1x16xf32, #tpu.memory_space<vmem>>, vector<1x16xf32>
    %65 = vector.broadcast %64 : vector<1x16xf32> to vector<288x16xf32>
    %66 = arith.addf %63, %65 : vector<288x16xf32>
    %cst_42 = arith.constant 0.000000e+00 : f32
    %67 = vector.broadcast %cst_42 : f32 to vector<288x16xf32>
    %68 = arith.cmpf oge, %66, %67 : vector<288x16xf32>
    %cst_43 = arith.constant 0.00999999977 : f32
    %69 = vector.broadcast %cst_43 : f32 to vector<288x16xf32>
    %70 = arith.mulf %69, %66 : vector<288x16xf32>
    %71 = arith.select %68, %66, %70 : vector<288x16xi1>, vector<288x16xf32>
    %c0_44 = arith.constant 0 : index
    %c0_45 = arith.constant 0 : index
    %72 = vector.load %arg7[%c0_44, %c0_45] : memref<4x16xbf16, #tpu.memory_space<vmem>>, vector<4x16xbf16>
    %73 = arith.truncf %71 : vector<288x16xf32> to vector<288x16xbf16>
    %cst_46 = arith.constant dense<0.000000e+00> : vector<4x288xf32>
    %74 = tpu.matmul %72, %73, %cst_46 {dimension_numbers = #tpu.dot_dimension_numbers<[1], [1], [0], [0], [0, 0, 1, 0], [], []>} : vector<4x16xbf16>, vector<288x16xbf16>, vector<4x288xf32> -> vector<4x288xf32>
    %c0_47 = arith.constant 0 : index
    %c0_48 = arith.constant 0 : index
    %75 = vector.load %arg8[%c0_47, %c0_48] : memref<4x1xf32, #tpu.memory_space<vmem>>, vector<4x1xf32>
    %76 = vector.broadcast %75 : vector<4x1xf32> to vector<4x288xf32>
    %77 = arith.addf %74, %76 : vector<4x288xf32>
    %c0_49 = arith.constant 0 : index
    %c0_50 = arith.constant 0 : index
    %c0_51 = arith.constant 0 : index
    %78 = vector.load %arg9[%c0_49, %c0_50, %c0_51] : memref<1x4x288xf32, #tpu.memory_space<vmem>>, vector<1x4x288xf32>
    %79 = vector.shape_cast %78 : vector<1x4x288xf32> to vector<4x288xf32>
    %80 = vector.shape_cast %77 : vector<4x288xf32> to vector<1x4x288xf32>
    tpu.vector_store %arg9[%c0_49, %c0_50, %c0_51], %80 {strides = array<i32>} : memref<1x4x288xf32, #tpu.memory_space<vmem>>, vector<1x4x288xf32>,
    return
  }
  func.func @transform_0(%arg0: i32) -> (i32, i32, i32) {
    %c0_i32 = arith.constant 0 : i32
    %c0_i32_0 = arith.constant 0 : i32
    %c0_i32_1 = arith.constant 0 : i32
    return %arg0, %c0_i32, %c0_i32_0 : i32, i32, i32
  }
  func.func @transform_1(%arg0: i32) -> (i32, i32) {
    %c0_i32 = arith.constant 0 : i32
    %c0_i32_0 = arith.constant 0 : i32
    %c0_i32_1 = arith.constant 0 : i32
    return %c0_i32, %c0_i32_0 : i32, i32
  }
  func.func @transform_2(%arg0: i32) -> (i32, i32) {
    %c0_i32 = arith.constant 0 : i32
    %c0_i32_0 = arith.constant 0 : i32
    %c0_i32_1 = arith.constant 0 : i32
    return %c0_i32, %c0_i32_0 : i32, i32
  }
  func.func @transform_3(%arg0: i32) -> (i32, i32) {
    %c0_i32 = arith.constant 0 : i32
    %c0_i32_0 = arith.constant 0 : i32
    %c0_i32_1 = arith.constant 0 : i32
    return %c0_i32, %c0_i32_0 : i32, i32
  }
  func.func @transform_4(%arg0: i32) -> (i32, i32) {
    %c0_i32 = arith.constant 0 : i32
    %c0_i32_0 = arith.constant 0 : i32
    %c0_i32_1 = arith.constant 0 : i32
    return %c0_i32, %c0_i32_0 : i32, i32
  }
  func.func @transform_5(%arg0: i32) -> (i32, i32) {
    %c0_i32 = arith.constant 0 : i32
    %c0_i32_0 = arith.constant 0 : i32
    %c0_i32_1 = arith.constant 0 : i32
    return %c0_i32, %c0_i32_0 : i32, i32
  }
  func.func @transform_6(%arg0: i32) -> (i32, i32) {
    %c0_i32 = arith.constant 0 : i32
    %c0_i32_0 = arith.constant 0 : i32
    %c0_i32_1 = arith.constant 0 : i32
    return %c0_i32, %c0_i32_0 : i32, i32
  }
  func.func @transform_7(%arg0: i32) -> (i32, i32) {
    %c0_i32 = arith.constant 0 : i32
    %c0_i32_0 = arith.constant 0 : i32
    %c0_i32_1 = arith.constant 0 : i32
    return %c0_i32, %c0_i32_0 : i32, i32
  }
  func.func @transform_8(%arg0: i32) -> (i32, i32, i32) {
    %c0_i32 = arith.constant 0 : i32
    %c0_i32_0 = arith.constant 0 : i32
    %c0_i32_1 = arith.constant 0 : i32
    return %arg0, %c0_i32, %c0_i32_0 : i32, i32, i32
  }
}

</mosaic_0001>

<llo_original>
// kernel: decoder_forward.1
$region0: #{decoder_forward.1}
  #allocation0 [shape = 'u32[]', space=smem, size = 0x4, offset = 0x4, fixed_abs, tag = 'smem constant byte address 0x4 - core index']
  #allocation1 [shape = 'u32[144,128]{1,0:T(1,128)}', space=vmem, size = 0x12000, scoped, tag = 'internal scratch']
  #allocation2 [shape = 'f32[352,144]{1,0:T(8,128)}', space=vmem, size = 0x58000, scoped, tag = 'scratch operand']
  #allocation3 [shape = 'bf16[352,16]{1,0:T(16,128)(2,1)}', space=vmem, size = 0x16000, scoped, tag = 'scratch operand']
  %s0 = inlined_call_operand.vmem [shape: bf16[2,352,265], index: 0, kind: input, shape index: {}]
  %s1 = inlined_call_operand.vmem [shape: f32[288,1], index: 1, kind: input, shape index: {}]
  %s2 = inlined_call_operand.vmem [shape: bf16[265,144], index: 2, kind: input, shape index: {}]
  %s3 = inlined_call_operand.vmem [shape: f32[1,16], index: 3, kind: input, shape index: {}]
  %s4 = inlined_call_operand.vmem [shape: bf16[16,144], index: 4, kind: input, shape index: {}]
  %s5 = inlined_call_operand.vmem [shape: f32[1,16], index: 5, kind: input, shape index: {}]
  %s6 = inlined_call_operand.vmem [shape: bf16[4,16], index: 6, kind: input, shape index: {}]
  %s7 = inlined_call_operand.vmem [shape: f32[4,1], index: 7, kind: input, shape index: {}]
  %s8 = inlined_call_operand.vmem [shape: f32[2,4,288], index: 8, kind: output, shape index: {}]
  %s9 = sld [smem:[#allocation0]]
  $region65: #{decoder_forward.1} parent=0
    _
  %s11 = ssub.s32 1, %s9
  %s12 = scalar_select 0, %s11, %s9
  loop: start=0, step=1, limit=4
  $region2: #{decoder_forward.1} parent=0 // loop_pre_header
    _
  $region3: #{decoder_forward.1} parent=0 // loop_header
    %s14 = sphi 0, %s18
    %p15 = scmp.ge.s32.totalorder %s14, 4
    %s24 = sphi 0, %s26
    %s27 = sphi 0, %s24
    %s28 = sphi 0, %s27
    %s44 = sphi 0, %s28
    %s48 = sphi 0, %s48
    %s50 = sphi 0, %s48
    %s51 = sphi 0, %s50
    %s65 = sphi 0, %s51
    %s69 = sphi 0, %s69
    %s71 = sphi 0, %s69
    %s72 = sphi 0, %s71
    %s86 = sphi 0, %s72
    %s90 = sphi 0, %s90
    %s92 = sphi 0, %s90
    %s93 = sphi 0, %s92
    %s107 = sphi 0, %s93
    %s111 = sphi 0, %s111
    %s113 = sphi 0, %s111
    %s114 = sphi 0, %s113
    %s128 = sphi 0, %s114
    %s132 = sphi 0, %s132
    %s134 = sphi 0, %s132
    %s135 = sphi 0, %s134
    %s149 = sphi 0, %s135
    %s153 = sphi 0, %s153
    %s155 = sphi 0, %s153
    %s156 = sphi 0, %s155
    %s170 = sphi 0, %s156
    %s174 = sphi 0, %s174
    %s176 = sphi 0, %s174
    %s177 = sphi 0, %s176
    %s191 = sphi 0, %s177
    %s197 = sphi 0, %s199
    %s200 = sphi 0, %s197
    %s201 = sphi 0, %s200
    %s217 = sphi 0, %s201
  $region4: #{decoder_forward.1} parent=0 // loop_header_branch
    %17 = sbr.rel (%p15) target = $region8
  $region5: #{decoder_forward.1} parent=0 // loop_body
    %s19 = ssub.s32 %s14, 1
    %s20 = ssub.s32 %s14, 2
    %s21 = sadd.s32 %s14, 1
    %s22 = ssub.s32 %s14, %s21
    %p23 = scmp.eq.s32.totalorder %s22, 0
    %s25 = sadd.s32 %s24, 1
    %s26 = scalar_select %p23, %s24, %s25
    %p29 = pneg %p23
    %p30 = scmp.eq.s32.totalorder %s14, 1
    %p31 = por %p29, %p30
    %p32 = scmp.ne.s32.totalorder %s24, %s27
    %p33 = scmp.eq.s32.totalorder %s14, 0
    %p34 = por %p32, %p33
    %p35 = scmp.ne.s32.totalorder %s24, %s27
    %p36 = scmp.eq.s32.totalorder %s19, 1
    %p37 = por %p35, %p36
    %p38 = scmp.ne.s32.totalorder %s27, %s28
    %p39 = scmp.eq.s32.totalorder %s19, 0
    %p40 = por %p38, %p39
    %p41 = scmp.ne.s32.totalorder %s27, %s28
    %p42 = scmp.eq.s32.totalorder %s20, 1
    %p43 = por %p41, %p42
    %p45 = scmp.ne.s32.totalorder %s28, %s44
    %p46 = scmp.eq.s32.totalorder %s20, 0
    %p47 = por %p45, %p46
    %s49 = sadd.s32 %s48, 1
    %p52 = scmp.eq.s32.totalorder %s14, 1
    %p53 = scmp.ne.s32.totalorder %s48, %s50
    %p54 = scmp.eq.s32.totalorder %s14, 0
    %p55 = por %p53, %p54
    %p56 = scmp.ne.s32.totalorder %s48, %s50
    %p57 = scmp.eq.s32.totalorder %s19, 1
    %p58 = por %p56, %p57
    %p59 = scmp.ne.s32.totalorder %s50, %s51
    %p60 = scmp.eq.s32.totalorder %s19, 0
    %p61 = por %p59, %p60
    %p62 = scmp.ne.s32.totalorder %s50, %s51
    %p63 = scmp.eq.s32.totalorder %s20, 1
    %p64 = por %p62, %p63
    %p66 = scmp.ne.s32.totalorder %s51, %s65
    %p67 = scmp.eq.s32.totalorder %s20, 0
    %p68 = por %p66, %p67
    %s70 = sadd.s32 %s69, 1
    %p73 = scmp.eq.s32.totalorder %s14, 1
    %p74 = scmp.ne.s32.totalorder %s69, %s71
    %p75 = scmp.eq.s32.totalorder %s14, 0
    %p76 = por %p74, %p75
    %p77 = scmp.ne.s32.totalorder %s69, %s71
    %p78 = scmp.eq.s32.totalorder %s19, 1
    %p79 = por %p77, %p78
    %p80 = scmp.ne.s32.totalorder %s71, %s72
    %p81 = scmp.eq.s32.totalorder %s19, 0
    %p82 = por %p80, %p81
    %p83 = scmp.ne.s32.totalorder %s71, %s72
    %p84 = scmp.eq.s32.totalorder %s20, 1
    %p85 = por %p83, %p84
    %p87 = scmp.ne.s32.totalorder %s72, %s86
    %p88 = scmp.eq.s32.totalorder %s20, 0
    %p89 = por %p87, %p88
    %s91 = sadd.s32 %s90, 1
    %p94 = scmp.eq.s32.totalorder %s14, 1
    %p95 = scmp.ne.s32.totalorder %s90, %s92
    %p96 = scmp.eq.s32.totalorder %s14, 0
    %p97 = por %p95, %p96
    %p98 = scmp.ne.s32.totalorder %s90, %s92
    %p99 = scmp.eq.s32.totalorder %s19, 1
    %p100 = por %p98, %p99
    %p101 = scmp.ne.s32.totalorder %s92, %s93
    %p102 = scmp.eq.s32.totalorder %s19, 0
    %p103 = por %p101, %p102
    %p104 = scmp.ne.s32.totalorder %s92, %s93
    %p105 = scmp.eq.s32.totalorder %s20, 1
    %p106 = por %p104, %p105
    %p108 = scmp.ne.s32.totalorder %s93, %s107
    %p109 = scmp.eq.s32.totalorder %s20, 0
    %p110 = por %p108, %p109
    %s112 = sadd.s32 %s111, 1
    %p115 = scmp.eq.s32.totalorder %s14, 1
    %p116 = scmp.ne.s32.totalorder %s111, %s113
    %p117 = scmp.eq.s32.totalorder %s14, 0
    %p118 = por %p116, %p117
    %p119 = scmp.ne.s32.totalorder %s111, %s113
    %p120 = scmp.eq.s32.totalorder %s19, 1
    %p121 = por %p119, %p120
    %p122 = scmp.ne.s32.totalorder %s113, %s114
    %p123 = scmp.eq.s32.totalorder %s19, 0
    %p124 = por %p122, %p123
    %p125 = scmp.ne.s32.totalorder %s113, %s114
    %p126 = scmp.eq.s32.totalorder %s20, 1
    %p127 = por %p125, %p126
    %p129 = scmp.ne.s32.totalorder %s114, %s128
    %p130 = scmp.eq.s32.totalorder %s20, 0
    %p131 = por %p129, %p130
    %s133 = sadd.s32 %s132, 1
    %p136 = scmp.eq.s32.totalorder %s14, 1
    %p137 = scmp.ne.s32.totalorder %s132, %s134
    %p138 = scmp.eq.s32.totalorder %s14, 0
    %p139 = por %p137, %p138
    %p140 = scmp.ne.s32.totalorder %s132, %s134
    %p141 = scmp.eq.s32.totalorder %s19, 1
    %p142 = por %p140, %p141
    %p143 = scmp.ne.s32.totalorder %s134, %s135
    %p144 = scmp.eq.s32.totalorder %s19, 0
    %p145 = por %p143, %p144
    %p146 = scmp.ne.s32.totalorder %s134, %s135
    %p147 = scmp.eq.s32.totalorder %s20, 1
    %p148 = por %p146, %p147
    %p150 = scmp.ne.s32.totalorder %s135, %s149
    %p151 = scmp.eq.s32.totalorder %s20, 0
    %p152 = por %p150, %p151
    %s154 = sadd.s32 %s153, 1
    %p157 = scmp.eq.s32.totalorder %s14, 1
    %p158 = scmp.ne.s32.totalorder %s153, %s155
    %p159 = scmp.eq.s32.totalorder %s14, 0
    %p160 = por %p158, %p159
    %p161 = scmp.ne.s32.totalorder %s153, %s155
    %p162 = scmp.eq.s32.totalorder %s19, 1
    %p163 = por %p161, %p162
    %p164 = scmp.ne.s32.totalorder %s155, %s156
    %p165 = scmp.eq.s32.totalorder %s19, 0
    %p166 = por %p164, %p165
    %p167 = scmp.ne.s32.totalorder %s155, %s156
    %p168 = scmp.eq.s32.totalorder %s20, 1
    %p169 = por %p167, %p168
    %p171 = scmp.ne.s32.totalorder %s156, %s170
    %p172 = scmp.eq.s32.totalorder %s20, 0
    %p173 = por %p171, %p172
    %s175 = sadd.s32 %s174, 1
    %p178 = scmp.eq.s32.totalorder %s14, 1
    %p179 = scmp.ne.s32.totalorder %s174, %s176
    %p180 = scmp.eq.s32.totalorder %s14, 0
    %p181 = por %p179, %p180
    %p182 = scmp.ne.s32.totalorder %s174, %s176
    %p183 = scmp.eq.s32.totalorder %s19, 1
    %p184 = por %p182, %p183
    %p185 = scmp.ne.s32.totalorder %s176, %s177
    %p186 = scmp.eq.s32.totalorder %s19, 0
    %p187 = por %p185, %p186
    %p188 = scmp.ne.s32.totalorder %s176, %s177
    %p189 = scmp.eq.s32.totalorder %s20, 1
    %p190 = por %p188, %p189
    %p192 = scmp.ne.s32.totalorder %s177, %s191
    %p193 = scmp.eq.s32.totalorder %s20, 0
    %p194 = por %p192, %p193
    %s195 = ssub.s32 %s14, %s21
    %p196 = scmp.eq.s32.totalorder %s195, 0
    %s198 = sadd.s32 %s197, 1
    %s199 = scalar_select %p196, %s197, %s198
    %p202 = pneg %p196
    %p203 = scmp.eq.s32.totalorder %s14, 1
    %p204 = por %p202, %p203
    %p205 = scmp.ne.s32.totalorder %s197, %s200
    %p206 = scmp.eq.s32.totalorder %s14, 0
    %p207 = por %p205, %p206
    %p208 = scmp.ne.s32.totalorder %s197, %s200
    %p209 = scmp.eq.s32.totalorder %s19, 1
    %p210 = por %p208, %p209
    %p211 = scmp.ne.s32.totalorder %s200, %s201
    %p212 = scmp.eq.s32.totalorder %s19, 0
    %p213 = por %p211, %p212
    %p214 = scmp.ne.s32.totalorder %s200, %s201
    %p215 = scmp.eq.s32.totalorder %s20, 1
    %p216 = por %p214, %p215
    %p218 = scmp.ne.s32.totalorder %s201, %s217
    %p219 = scmp.eq.s32.totalorder %s20, 0
    %p220 = por %p218, %p219
    %p221 = scmp.le.s32.totalorder 1, %s14
    %p222 = scmp.lt.s32.totalorder %s14, 3
    %p223 = pnand %p221, %p222
    %p224 = pneg %p223
    // Predicated region
    $region9: #{decoder_forward.1} parent=5 // pred_check
      _
    $region10: #{decoder_forward.1} parent=5 // pred_check_branch
      %226 = sbr.rel (%p223) target = $region12
    $region11: #{decoder_forward.1} parent=5 // pred_region
      %s227 = ssub.s32 %s14, 1
      // Predicated region
      $region13: #{decoder_forward.1} parent=11 // pred_check
        %p228 = pneg %p61
      $region14: #{decoder_forward.1} parent=11 // pred_check_branch
        %230 = sbr.rel (%p228) target = $region16
      $region15: #{decoder_forward.1} parent=11 // pred_region
        _
      $region16: #{decoder_forward.1} parent=11 // pred_fallthru
        _
      // Predicated region
      $region17: #{decoder_forward.1} parent=11 // pred_check
        %p231 = pneg %p82
      $region18: #{decoder_forward.1} parent=11 // pred_check_branch
        %233 = sbr.rel (%p231) target = $region20
      $region19: #{decoder_forward.1} parent=11 // pred_region
        _
      $region20: #{decoder_forward.1} parent=11 // pred_fallthru
        _
      // Predicated region
      $region21: #{decoder_forward.1} parent=11 // pred_check
        %p234 = pneg %p103
      $region22: #{decoder_forward.1} parent=11 // pred_check_branch
        %236 = sbr.rel (%p234) target = $region24
      $region23: #{decoder_forward.1} parent=11 // pred_region
        _
      $region24: #{decoder_forward.1} parent=11 // pred_fallthru
        _
      // Predicated region
      $region25: #{decoder_forward.1} parent=11 // pred_check
        %p237 = pneg %p124
      $region26: #{decoder_forward.1} parent=11 // pred_check_branch
        %239 = sbr.rel (%p237) target = $region28
      $region27: #{decoder_forward.1} parent=11 // pred_region
        _
      $region28: #{decoder_forward.1} parent=11 // pred_fallthru
        _
      // Predicated region
      $region29: #{decoder_forward.1} parent=11 // pred_check
        %p240 = pneg %p145
      $region30: #{decoder_forward.1} parent=11 // pred_check_branch
        %242 = sbr.rel (%p240) target = $region32
      $region31: #{decoder_forward.1} parent=11 // pred_region
        _
      $region32: #{decoder_forward.1} parent=11 // pred_fallthru
        _
      // Predicated region
      $region33: #{decoder_forward.1} parent=11 // pred_check
        %p243 = pneg %p166
      $region34: #{decoder_forward.1} parent=11 // pred_check_branch
        %245 = sbr.rel (%p243) target = $region36
      $region35: #{decoder_forward.1} parent=11 // pred_region
        _
      $region36: #{decoder_forward.1} parent=11 // pred_fallthru
        _
      // Predicated region
      $region37: #{decoder_forward.1} parent=11 // pred_check
        %p246 = pneg %p187
      $region38: #{decoder_forward.1} parent=11 // pred_check_branch
        %248 = sbr.rel (%p246) target = $region40
      $region39: #{decoder_forward.1} parent=11 // pred_region
        _
      $region40: #{decoder_forward.1} parent=11 // pred_fallthru
        _
    $region12: #{decoder_forward.1} parent=5 // pred_fallthru
      _
    %p249 = scmp.lt.s32.totalorder %s14, 2
    // Predicated region
    $region41: #{decoder_forward.1} parent=5 // pred_check
      %p250 = pneg %p249
    $region42: #{decoder_forward.1} parent=5 // pred_check_branch
      %252 = sbr.rel (%p250) target = $region44
    $region43: #{decoder_forward.1} parent=5 // pred_region
      // Predicated region
      $region45: #{decoder_forward.1} parent=43 // pred_check
        %p253 = pneg %p34
      $region46: #{decoder_forward.1} parent=43 // pred_check_branch
        %255 = sbr.rel (%p253) target = $region48
      $region47: #{decoder_forward.1} parent=43 // pred_region
        %p256 = scmp.lt.s32.totalorder %s14, 1
        %s257 = scalar_select %p256, %s14, 1
        %s258 = smul.addr %s257, 132
        %s259 = smul.addr %s258, 4
        %s260 = scalar_lea.vmem %s0, %s259
      $region48: #{decoder_forward.1} parent=43 // pred_fallthru
        _
    $region44: #{decoder_forward.1} parent=5 // pred_fallthru
      _
    %p261 = scmp.le.s32.totalorder 1, %s14
    %p262 = scmp.lt.s32.totalorder %s14, 3
    %p263 = pnand %p261, %p262
    %p264 = pneg %p263
    // Predicated region
    $region49: #{decoder_forward.1} parent=5 // pred_check
      _
    $region50: #{decoder_forward.1} parent=5 // pred_check_branch
      %266 = sbr.rel (%p263) target = $region52
    $region51: #{decoder_forward.1} parent=5 // pred_region
      %s267 = ssub.s32 %s14, 1
      %p268 = scmp.lt.s32.totalorder %s19, 1
      %s269 = scalar_select %p268, %s19, 1
      %s270 = smul.addr %s269, 132
      %s271 = smul.addr %s270, 4
      %s272 = scalar_lea.vmem %s0, %s271
      %p273 = pneg %p40
      %p274 = pneg %p37
      %p275 = pneg %p61
      %p276 = pneg %p58
      %p277 = pneg %p82
      %p278 = pneg %p79
      %p279 = pneg %p103
      %p280 = pneg %p100
      %p281 = pneg %p124
      %p282 = pneg %p121
      %p283 = pneg %p145
      %p284 = pneg %p142
      %p285 = pneg %p166
      %p286 = pneg %p163
      %p287 = pneg %p187
      %p288 = pneg %p184
      %p289 = pneg %p213
      %p290 = pneg %p210
      %p291 = scmp.lt.s32.totalorder %s19, 1
      %s292 = scalar_select %p291, %s19, 1
      %s293 = smul.addr %s292, 3
      %s294 = smul.addr %s293, 4
      %s295 = scalar_lea.vmem %s8, %s294
      %p296 = scmp.lt.s32.totalorder %s19, 1
      %s297 = scalar_select %p296, %s19, 1
      %s298 = smul.addr %s297, 132
      %s299 = smul.addr %s298, 4
      %s300 = scalar_lea.vmem %s0, %s299
      %p301 = scmp.lt.s32.totalorder %s19, 1
      %s302 = scalar_select %p301, %s19, 1
      %s303 = smul.addr %s302, 3
      %s304 = smul.addr %s303, 4
      %s305 = scalar_lea.vmem %s8, %s304
      %v307 = vld [vmem:[%s1] sm:$0xff]
      %v308 = vld [vmem:[%s1 + $0x8] sm:$0xff]
      %v309 = vld [vmem:[%s1 + $0x10] sm:$0xff]
      %v310 = vld [vmem:[%s1 + $0x18] sm:$0xff]
      %v311 = vld [vmem:[%s1 + $0x20] sm:$0xff]
      %v312 = vld [vmem:[%s1 + $0x28] sm:$0xff]
      %v313 = vld [vmem:[%s1 + $0x30] sm:$0xff]
      %v314 = vld [vmem:[%s1 + $0x38] sm:$0xff]
      %v315 = vld [vmem:[%s1 + $0x40] sm:$0xff]
      %v316 = vld [vmem:[%s1 + $0x48] sm:$0xff]
      %v317 = vld [vmem:[%s1 + $0x50] sm:$0xff]
      %v318 = vld [vmem:[%s1 + $0x58] sm:$0xff]
      %v319 = vld [vmem:[%s1 + $0x60] sm:$0xff]
      %v320 = vld [vmem:[%s1 + $0x68] sm:$0xff]
      %v321 = vld [vmem:[%s1 + $0x70] sm:$0xff]
      %v322 = vld [vmem:[%s1 + $0x78] sm:$0xff]
      %v323 = vld [vmem:[%s1 + $0x80] sm:$0xff]
      %v324 = vld [vmem:[%s1 + $0x88] sm:$0xff]
      %v325 = vld [vmem:[%s1 + $0x90] sm:$0xff]
      %v326 = vld [vmem:[%s1 + $0x98] sm:$0xff]
      %v327 = vld [vmem:[%s1 + $0xa0] sm:$0xff]
      %v328 = vld [vmem:[%s1 + $0xa8] sm:$0xff]
      %v329 = vld [vmem:[%s1 + $0xb0] sm:$0xff]
      %v330 = vld [vmem:[%s1 + $0xb8] sm:$0xff]
      %v331 = vld [vmem:[%s1 + $0xc0] sm:$0xff]
      %v332 = vld [vmem:[%s1 + $0xc8] sm:$0xff]
      %v333 = vld [vmem:[%s1 + $0xd0] sm:$0xff]
      %v334 = vld [vmem:[%s1 + $0xd8] sm:$0xff]
      %v335 = vld [vmem:[%s1 + $0xe0] sm:$0xff]
      %v336 = vld [vmem:[%s1 + $0xe8] sm:$0xff]
      %v337 = vld [vmem:[%s1 + $0xf0] sm:$0xff]
      %v338 = vld [vmem:[%s1 + $0xf8] sm:$0xff]
      %v339 = vld [vmem:[%s1 + $0x100] sm:$0xff]
      %v340 = vld [vmem:[%s1 + $0x108] sm:$0xff]
      %v341 = vld [vmem:[%s1 + $0x110] sm:$0xff]
      %v342 = vld [vmem:[%s1 + $0x118] sm:$0xff]
      %v343 = vld [vmem:[%s300] sm:$0xff]
      %v344 = vld [vmem:[%s300 + $0x8] sm:$0xf]
      %v345 = vld [vmem:[%s300 + $0xc] sm:$0xff]
      %v346 = vld [vmem:[%s300 + $0x14] sm:$0xf]
      %v347 = vld [vmem:[%s300 + $0x18] sm:$0xff]
      %v348 = vld [vmem:[%s300 + $0x20] sm:$0xf]
      %v349 = vld [vmem:[%s300 + $0x24] sm:$0xff]
      %v350 = vld [vmem:[%s300 + $0x2c] sm:$0xf]
      %v351 = vld [vmem:[%s300 + $0x30] sm:$0xff]
      %v352 = vld [vmem:[%s300 + $0x38] sm:$0xf]
      %v353 = vld [vmem:[%s300 + $0x3c] sm:$0xff]
      %v354 = vld [vmem:[%s300 + $0x44] sm:$0xf]
      %v355 = vld [vmem:[%s300 + $0x48] sm:$0xff]
      %v356 = vld [vmem:[%s300 + $0x50] sm:$0xf]
      %v357 = vld [vmem:[%s300 + $0x54] sm:$0xff]
      %v358 = vld [vmem:[%s300 + $0x5c] sm:$0xf]
      %v359 = vld [vmem:[%s300 + $0x60] sm:$0xff]
      %v360 = vld [vmem:[%s300 + $0x68] sm:$0xf]
      %v361 = vld [vmem:[%s300 + $0x6c] sm:$0xff]
      %v362 = vld [vmem:[%s300 + $0x74] sm:$0xf]
      %v363 = vld [vmem:[%s300 + $0x78] sm:$0xff]
      %v364 = vld [vmem:[%s300 + $0x80] sm:$0xf]
      %v365 = vld [vmem:[%s300 + $0x84] sm:$0xff]
      %v366 = vld [vmem:[%s300 + $0x8c] sm:$0xf]
      %v367 = vld [vmem:[%s300 + $0x90] sm:$0xff]
      %v368 = vld [vmem:[%s300 + $0x98] sm:$0xf]
      %v369 = vld [vmem:[%s300 + $0x9c] sm:$0xff]
      %v370 = vld [vmem:[%s300 + $0xa4] sm:$0xf]
      %v371 = vld [vmem:[%s300 + $0xa8] sm:$0xff]
      %v372 = vld [vmem:[%s300 + $0xb0] sm:$0xf]
      %v373 = vld [vmem:[%s300 + $0xb4] sm:$0xff]
      %v374 = vld [vmem:[%s300 + $0xbc] sm:$0xf]
      %v375 = vld [vmem:[%s300 + $0xc0] sm:$0xff]
      %v376 = vld [vmem:[%s300 + $0xc8] sm:$0xf]
      %v377 = vld [vmem:[%s300 + $0xcc] sm:$0xff]
      %v378 = vld [vmem:[%s300 + $0xd4] sm:$0xf]
      %v379 = vld [vmem:[%s300 + $0xd8] sm:$0xff]
      %v380 = vld [vmem:[%s300 + $0xe0] sm:$0xf]
      %v381 = vld [vmem:[%s300 + $0xe4] sm:$0xff]
      %v382 = vld [vmem:[%s300 + $0xec] sm:$0xf]
      %v383 = vld [vmem:[%s300 + $0xf0] sm:$0xff]
      %v384 = vld [vmem:[%s300 + $0xf8] sm:$0xf]
      %v385 = vld [vmem:[%s300 + $0xfc] sm:$0xff]
      %v386 = vld [vmem:[%s300 + $0x104] sm:$0xf]
      %v387 = vld [vmem:[%s300 + $0x108] sm:$0xff]
      %v388 = vld [vmem:[%s300 + $0x110] sm:$0xf]
      %v389 = vld [vmem:[%s300 + $0x114] sm:$0xff]
      %v390 = vld [vmem:[%s300 + $0x11c] sm:$0xf]
      %v391 = vld [vmem:[%s300 + $0x120] sm:$0xff]
      %v392 = vld [vmem:[%s300 + $0x128] sm:$0xf]
      %v393 = vld [vmem:[%s300 + $0x12c] sm:$0xff]
      %v394 = vld [vmem:[%s300 + $0x134] sm:$0xf]
      %v395 = vld [vmem:[%s300 + $0x138] sm:$0xff]
      %v396 = vld [vmem:[%s300 + $0x140] sm:$0xf]
      %v397 = vld [vmem:[%s300 + $0x144] sm:$0xff]
      %v398 = vld [vmem:[%s300 + $0x14c] sm:$0xf]
      %v399 = vld [vmem:[%s300 + $0x150] sm:$0xff]
      %v400 = vld [vmem:[%s300 + $0x158] sm:$0xf]
      %v401 = vld [vmem:[%s300 + $0x15c] sm:$0xff]
      %v402 = vld [vmem:[%s300 + $0x164] sm:$0xf]
      %v403 = vld [vmem:[%s300 + $0x168] sm:$0xff]
      %v404 = vld [vmem:[%s300 + $0x170] sm:$0xf]
      %v405 = vld [vmem:[%s300 + $0x174] sm:$0xff]
      %v406 = vld [vmem:[%s300 + $0x17c] sm:$0xf]
      %v407 = vld [vmem:[%s300 + $0x180] sm:$0xff]
      %v408 = vld [vmem:[%s300 + $0x188] sm:$0xf]
      %v409 = vld [vmem:[%s300 + $0x18c] sm:$0xff]
      %v410 = vld [vmem:[%s300 + $0x194] sm:$0xf]
      %v411 = vld [vmem:[%s300 + $0x198] sm:$0xff]
      %v412 = vld [vmem:[%s300 + $0x1a0] sm:$0xf]
      %v413 = vld [vmem:[%s300 + $0x1a4] sm:$0xff]
      %v414 = vld [vmem:[%s300 + $0x1ac] sm:$0xf]
      %v415 = vld [vmem:[%s300 + $0x1b0] sm:$0xff]
      %v416 = vld [vmem:[%s300 + $0x1b8] sm:$0xf]
      %v417 = vld [vmem:[%s300 + $0x1bc] sm:$0xff]
      %v418 = vld [vmem:[%s300 + $0x1c4] sm:$0xf]
      %v419 = vld [vmem:[%s300 + $0x1c8] sm:$0xff]
      %v420 = vld [vmem:[%s300 + $0x1d0] sm:$0xf]
      %v421 = vld [vmem:[%s300 + $0x1d4] sm:$0xff]
      %v422 = vld [vmem:[%s300 + $0x1dc] sm:$0xf]
      %v423 = vld [vmem:[%s300 + $0x1e0] sm:$0xff]
      %v424 = vld [vmem:[%s300 + $0x1e8] sm:$0xf]
      %v425 = vld [vmem:[%s300 + $0x1ec] sm:$0xff]
      %v426 = vld [vmem:[%s300 + $0x1f4] sm:$0xf]
      %v427 = vld [vmem:[%s300 + $0x1f8] sm:$0xff]
      %v428 = vld [vmem:[%s300 + $0x200] sm:$0xf]
      %v429 = vld [vmem:[%s300 + $0x204] sm:$0xff]
      %v430 = vld [vmem:[%s300 + $0x20c] sm:$0xf]
      %v431 = vld [vmem:[%s2] sm:$0xff]
      %v432 = vld [vmem:[%s2 + $0x8] sm:$0xff]
      %v433 = vld [vmem:[%s2 + $0x10] sm:$0xff]
      %v434 = vld [vmem:[%s2 + $0x18] sm:$0xff]
      %v435 = vld [vmem:[%s2 + $0x20] sm:$0xff]
      %v436 = vld [vmem:[%s2 + $0x28] sm:$0xff]
      %v437 = vld [vmem:[%s2 + $0x30] sm:$0xff]
      %v438 = vld [vmem:[%s2 + $0x38] sm:$0xff]
      %v439 = vld [vmem:[%s2 + $0x40] sm:$0xff]
      %v440 = vld [vmem:[%s2 + $0x48] sm:$0xff]
      %v441 = vld [vmem:[%s2 + $0x50] sm:$0xff]
      %v442 = vld [vmem:[%s2 + $0x58] sm:$0xff]
      %v443 = vld [vmem:[%s2 + $0x60] sm:$0xff]
      %v444 = vld [vmem:[%s2 + $0x68] sm:$0xff]
      %v445 = vld [vmem:[%s2 + $0x70] sm:$0xff]
      %v446 = vld [vmem:[%s2 + $0x78] sm:$0xff]
      %v447 = vld [vmem:[%s2 + $0x80] sm:$0xff]
      %v448 = vld [vmem:[%s2 + $0x88] sm:$0xff]
      %v449 = vld [vmem:[%s2 + $0x90] sm:$0xff]
      %v450 = vld [vmem:[%s2 + $0x98] sm:$0xff]
      %v451 = vld [vmem:[%s2 + $0xa0] sm:$0xff]
      %v452 = vld [vmem:[%s2 + $0xa8] sm:$0xff]
      %v453 = vld [vmem:[%s2 + $0xb0] sm:$0xff]
      %v454 = vld [vmem:[%s2 + $0xb8] sm:$0xff]
      %v455 = vld [vmem:[%s2 + $0xc0] sm:$0xff]
      %v456 = vld [vmem:[%s2 + $0xc8] sm:$0xff]
      %v457 = vld [vmem:[%s2 + $0xd0] sm:$0xff]
      %v458 = vld [vmem:[%s2 + $0xd8] sm:$0xff]
      %v459 = vld [vmem:[%s2 + $0xe0] sm:$0xff]
      %v460 = vld [vmem:[%s2 + $0xe8] sm:$0xff]
      %v461 = vld [vmem:[%s2 + $0xf0] sm:$0xff]
      %v462 = vld [vmem:[%s2 + $0xf8] sm:$0xff]
      %v463 = vld [vmem:[%s2 + $0x100] sm:$0xff]
      %v464 = vld [vmem:[%s2 + $0x108] sm:$0x11]
      %v553 = vunpack.c.l.b16 %v343
      %v554 = vunpack.c.h.b16 %v343
      %v555 = vunpack.c.l.b16 %v344
      %v556 = vunpack.c.l.b16 %v345
      %v557 = vunpack.c.h.b16 %v345
      %v558 = vunpack.c.l.b16 %v346
      %v559 = vunpack.c.l.b16 %v347
      %v560 = vunpack.c.h.b16 %v347
      %v561 = vunpack.c.l.b16 %v348
      %v562 = vunpack.c.l.b16 %v349
      %v563 = vunpack.c.h.b16 %v349
      %v564 = vunpack.c.l.b16 %v350
      %v565 = vunpack.c.l.b16 %v351
      %v566 = vunpack.c.h.b16 %v351
      %v567 = vunpack.c.l.b16 %v352
      %v568 = vunpack.c.l.b16 %v353
      %v569 = vunpack.c.h.b16 %v353
      %v570 = vunpack.c.l.b16 %v354
      %v571 = vunpack.c.l.b16 %v355
      %v572 = vunpack.c.h.b16 %v355
      %v573 = vunpack.c.l.b16 %v356
      %v574 = vunpack.c.l.b16 %v357
      %v575 = vunpack.c.h.b16 %v357
      %v576 = vunpack.c.l.b16 %v358
      %v577 = vunpack.c.l.b16 %v359
      %v578 = vunpack.c.h.b16 %v359
      %v579 = vunpack.c.l.b16 %v360
      %v580 = vunpack.c.l.b16 %v361
      %v581 = vunpack.c.h.b16 %v361
      %v582 = vunpack.c.l.b16 %v362
      %v583 = vunpack.c.l.b16 %v363
      %v584 = vunpack.c.h.b16 %v363
      %v585 = vunpack.c.l.b16 %v364
      %v586 = vunpack.c.l.b16 %v365
      %v587 = vunpack.c.h.b16 %v365
      %v588 = vunpack.c.l.b16 %v366
      %v589 = vunpack.c.l.b16 %v367
      %v590 = vunpack.c.h.b16 %v367
      %v591 = vunpack.c.l.b16 %v368
      %v592 = vunpack.c.l.b16 %v369
      %v593 = vunpack.c.h.b16 %v369
      %v594 = vunpack.c.l.b16 %v370
      %v595 = vunpack.c.l.b16 %v371
      %v596 = vunpack.c.h.b16 %v371
      %v597 = vunpack.c.l.b16 %v372
      %v598 = vunpack.c.l.b16 %v373
      %v599 = vunpack.c.h.b16 %v373
      %v600 = vunpack.c.l.b16 %v374
      %v601 = vunpack.c.l.b16 %v375
      %v602 = vunpack.c.h.b16 %v375
      %v603 = vunpack.c.l.b16 %v376
      %v604 = vunpack.c.l.b16 %v377
      %v605 = vunpack.c.h.b16 %v377
      %v606 = vunpack.c.l.b16 %v378
      %v607 = vunpack.c.l.b16 %v379
      %v608 = vunpack.c.h.b16 %v379
      %v609 = vunpack.c.l.b16 %v380
      %v610 = vunpack.c.l.b16 %v381
      %v611 = vunpack.c.h.b16 %v381
      %v612 = vunpack.c.l.b16 %v382
      %v613 = vunpack.c.l.b16 %v383
      %v614 = vunpack.c.h.b16 %v383
      %v615 = vunpack.c.l.b16 %v384
      %v616 = vunpack.c.l.b16 %v385
      %v617 = vunpack.c.h.b16 %v385
      %v618 = vunpack.c.l.b16 %v386
      %v619 = vunpack.c.l.b16 %v387
      %v620 = vunpack.c.h.b16 %v387
      %v621 = vunpack.c.l.b16 %v388
      %v622 = vunpack.c.l.b16 %v389
      %v623 = vunpack.c.h.b16 %v389
      %v624 = vunpack.c.l.b16 %v390
      %v625 = vunpack.c.l.b16 %v391
      %v626 = vunpack.c.h.b16 %v391
      %v627 = vunpack.c.l.b16 %v392
      %v628 = vunpack.c.l.b16 %v393
      %v629 = vunpack.c.h.b16 %v393
      %v630 = vunpack.c.l.b16 %v394
      %v631 = vunpack.c.l.b16 %v395
      %v632 = vunpack.c.h.b16 %v395
      %v633 = vunpack.c.l.b16 %v396
      %v634 = vunpack.c.l.b16 %v397
      %v635 = vunpack.c.h.b16 %v397
      %v636 = vunpack.c.l.b16 %v398
      %v637 = vunpack.c.l.b16 %v399
      %v638 = vunpack.c.h.b16 %v399
      %v639 = vunpack.c.l.b16 %v400
      %v640 = vunpack.c.l.b16 %v401
      %v641 = vunpack.c.h.b16 %v401
      %v642 = vunpack.c.l.b16 %v402
      %v643 = vunpack.c.l.b16 %v403
      %v644 = vunpack.c.h.b16 %v403
      %v645 = vunpack.c.l.b16 %v404
      %v646 = vunpack.c.l.b16 %v405
      %v647 = vunpack.c.h.b16 %v405
      %v648 = vunpack.c.l.b16 %v406
      %v649 = vunpack.c.l.b16 %v407
      %v650 = vunpack.c.h.b16 %v407
      %v651 = vunpack.c.l.b16 %v408
      %v652 = vunpack.c.l.b16 %v409
      %v653 = vunpack.c.h.b16 %v409
      %v654 = vunpack.c.l.b16 %v410
      %v655 = vunpack.c.l.b16 %v411
      %v656 = vunpack.c.h.b16 %v411
      %v657 = vunpack.c.l.b16 %v412
      %v658 = vunpack.c.l.b16 %v413
      %v659 = vunpack.c.h.b16 %v413
      %v660 = vunpack.c.l.b16 %v414
      %v661 = vunpack.c.l.b16 %v415
      %v662 = vunpack.c.h.b16 %v415
      %v663 = vunpack.c.l.b16 %v416
      %v664 = vunpack.c.l.b16 %v417
      %v665 = vunpack.c.h.b16 %v417
      %v666 = vunpack.c.l.b16 %v418
      %v667 = vunpack.c.l.b16 %v419
      %v668 = vunpack.c.h.b16 %v419
      %v669 = vunpack.c.l.b16 %v420
      %v670 = vunpack.c.l.b16 %v421
      %v671 = vunpack.c.h.b16 %v421
      %v672 = vunpack.c.l.b16 %v422
      %v673 = vunpack.c.l.b16 %v423
      %v674 = vunpack.c.h.b16 %v423
      %v675 = vunpack.c.l.b16 %v424
      %v676 = vunpack.c.l.b16 %v425
      %v677 = vunpack.c.h.b16 %v425
      %v678 = vunpack.c.l.b16 %v426
      %v679 = vunpack.c.l.b16 %v427
      %v680 = vunpack.c.h.b16 %v427
      %v681 = vunpack.c.l.b16 %v428
      %v682 = vunpack.c.l.b16 %v429
      %v683 = vunpack.c.h.b16 %v429
      %v684 = vunpack.c.l.b16 %v430
      %v685 = vpack.c.b16 %v556, %v553
      %v686 = vpack.c.b16 %v557, %v554
      %v687 = vpack.c.b16 %v558, %v555
      %v688 = vpack.c.b16 %v562, %v559
      %v689 = vpack.c.b16 %v563, %v560
      %v690 = vpack.c.b16 %v564, %v561
      %v691 = vpack.c.b16 %v568, %v565
      %v692 = vpack.c.b16 %v569, %v566
      %v693 = vpack.c.b16 %v570, %v567
      %v694 = vpack.c.b16 %v574, %v571
      %v695 = vpack.c.b16 %v575, %v572
      %v696 = vpack.c.b16 %v576, %v573
      %v697 = vpack.c.b16 %v580, %v577
      %v698 = vpack.c.b16 %v581, %v578
      %v699 = vpack.c.b16 %v582, %v579
      %v700 = vpack.c.b16 %v586, %v583
      %v701 = vpack.c.b16 %v587, %v584
      %v702 = vpack.c.b16 %v588, %v585
      %v703 = vpack.c.b16 %v592, %v589
      %v704 = vpack.c.b16 %v593, %v590
      %v705 = vpack.c.b16 %v594, %v591
      %v706 = vpack.c.b16 %v598, %v595
      %v707 = vpack.c.b16 %v599, %v596
      %v708 = vpack.c.b16 %v600, %v597
      %v709 = vpack.c.b16 %v604, %v601
      %v710 = vpack.c.b16 %v605, %v602
      %v711 = vpack.c.b16 %v606, %v603
      %v712 = vpack.c.b16 %v610, %v607
      %v713 = vpack.c.b16 %v611, %v608
      %v714 = vpack.c.b16 %v612, %v609
      %v715 = vpack.c.b16 %v616, %v613
      %v716 = vpack.c.b16 %v617, %v614
      %v717 = vpack.c.b16 %v618, %v615
      %v718 = vpack.c.b16 %v622, %v619
      %v719 = vpack.c.b16 %v623, %v620
      %v720 = vpack.c.b16 %v624, %v621
      %v721 = vpack.c.b16 %v628, %v625
      %v722 = vpack.c.b16 %v629, %v626
      %v723 = vpack.c.b16 %v630, %v627
      %v724 = vpack.c.b16 %v634, %v631
      %v725 = vpack.c.b16 %v635, %v632
      %v726 = vpack.c.b16 %v636, %v633
      %v727 = vpack.c.b16 %v640, %v637
      %v728 = vpack.c.b16 %v641, %v638
      %v729 = vpack.c.b16 %v642, %v639
      %v730 = vpack.c.b16 %v646, %v643
      %v731 = vpack.c.b16 %v647, %v644
      %v732 = vpack.c.b16 %v648, %v645
      %v733 = vpack.c.b16 %v652, %v649
      %v734 = vpack.c.b16 %v653, %v650
      %v735 = vpack.c.b16 %v654, %v651
      %v736 = vpack.c.b16 %v658, %v655
      %v737 = vpack.c.b16 %v659, %v656
      %v738 = vpack.c.b16 %v660, %v657
      %v739 = vpack.c.b16 %v664, %v661
      %v740 = vpack.c.b16 %v665, %v662
      %v741 = vpack.c.b16 %v666, %v663
      %v742 = vpack.c.b16 %v670, %v667
      %v743 = vpack.c.b16 %v671, %v668
      %v744 = vpack.c.b16 %v672, %v669
      %v745 = vpack.c.b16 %v676, %v673
      %v746 = vpack.c.b16 %v677, %v674
      %v747 = vpack.c.b16 %v678, %v675
      %v748 = vpack.c.b16 %v682, %v679
      %v749 = vpack.c.b16 %v683, %v680
      %v750 = vpack.c.b16 %v684, %v681
      %v829 = vunpack.c.l.b16 %v431
      %v830 = vunpack.c.h.b16 %v431
      %v831 = vunpack.c.l.b16 %v432
      %v832 = vunpack.c.h.b16 %v432
      %v833 = vunpack.c.l.b16 %v433
      %v834 = vunpack.c.h.b16 %v433
      %v835 = vunpack.c.l.b16 %v434
      %v836 = vunpack.c.h.b16 %v434
      %v837 = vunpack.c.l.b16 %v435
      %v838 = vunpack.c.h.b16 %v435
      %v839 = vunpack.c.l.b16 %v436
      %v840 = vunpack.c.h.b16 %v436
      %v841 = vunpack.c.l.b16 %v437
      %v842 = vunpack.c.h.b16 %v437
      %v843 = vunpack.c.l.b16 %v438
      %v844 = vunpack.c.h.b16 %v438
      %v845 = vunpack.c.l.b16 %v439
      %v846 = vunpack.c.h.b16 %v439
      %v847 = vunpack.c.l.b16 %v440
      %v848 = vunpack.c.h.b16 %v440
      %v849 = vunpack.c.l.b16 %v441
      %v850 = vunpack.c.h.b16 %v441
      %v851 = vunpack.c.l.b16 %v442
      %v852 = vunpack.c.h.b16 %v442
      %v853 = vunpack.c.l.b16 %v443
      %v854 = vunpack.c.h.b16 %v443
      %v855 = vunpack.c.l.b16 %v444
      %v856 = vunpack.c.h.b16 %v444
      %v857 = vunpack.c.l.b16 %v445
      %v858 = vunpack.c.h.b16 %v445
      %v859 = vunpack.c.l.b16 %v446
      %v860 = vunpack.c.h.b16 %v446
      %v861 = vunpack.c.l.b16 %v447
      %v862 = vunpack.c.h.b16 %v447
      %v863 = vunpack.c.l.b16 %v448
      %v864 = vunpack.c.h.b16 %v448
      %v865 = vunpack.c.l.b16 %v449
      %v866 = vunpack.c.h.b16 %v449
      %v867 = vunpack.c.l.b16 %v450
      %v868 = vunpack.c.h.b16 %v450
      %v869 = vunpack.c.l.b16 %v451
      %v870 = vunpack.c.h.b16 %v451
      %v871 = vunpack.c.l.b16 %v452
      %v872 = vunpack.c.h.b16 %v452
      %v873 = vunpack.c.l.b16 %v453
      %v874 = vunpack.c.h.b16 %v453
      %v875 = vunpack.c.l.b16 %v454
      %v876 = vunpack.c.h.b16 %v454
      %v877 = vunpack.c.l.b16 %v455
      %v878 = vunpack.c.h.b16 %v455
      %v879 = vunpack.c.l.b16 %v456
      %v880 = vunpack.c.h.b16 %v456
      %v881 = vunpack.c.l.b16 %v457
      %v882 = vunpack.c.h.b16 %v457
      %v883 = vunpack.c.l.b16 %v458
      %v884 = vunpack.c.h.b16 %v458
      %v885 = vunpack.c.l.b16 %v459
      %v886 = vunpack.c.h.b16 %v459
      %v887 = vunpack.c.l.b16 %v460
      %v888 = vunpack.c.h.b16 %v460
      %v889 = vunpack.c.l.b16 %v461
      %v890 = vunpack.c.h.b16 %v461
      %v891 = vunpack.c.l.b16 %v462
      %v892 = vunpack.c.h.b16 %v462
      %v893 = vunpack.c.l.b16 %v463
      %v894 = vunpack.c.h.b16 %v463
      %v895 = vunpack.c.l.b16 %v464
      %v896 = vunpack.c.h.b16 %v464
      %v897 = vpack.c.b16 %v831, %v829
      %v898 = vpack.c.b16 %v832, %v830
      %v899 = vpack.c.b16 %v835, %v833
      %v900 = vpack.c.b16 %v836, %v834
      %v901 = vpack.c.b16 %v839, %v837
      %v902 = vpack.c.b16 %v840, %v838
      %v903 = vpack.c.b16 %v843, %v841
      %v904 = vpack.c.b16 %v844, %v842
      %v905 = vpack.c.b16 %v847, %v845
      %v906 = vpack.c.b16 %v848, %v846
      %v907 = vpack.c.b16 %v851, %v849
      %v908 = vpack.c.b16 %v852, %v850
      %v909 = vpack.c.b16 %v855, %v853
      %v910 = vpack.c.b16 %v856, %v854
      %v911 = vpack.c.b16 %v859, %v857
      %v912 = vpack.c.b16 %v860, %v858
      %v913 = vpack.c.b16 %v863, %v861
      %v914 = vpack.c.b16 %v864, %v862
      %v915 = vpack.c.b16 %v867, %v865
      %v916 = vpack.c.b16 %v868, %v866
      %v917 = vpack.c.b16 %v871, %v869
      %v918 = vpack.c.b16 %v872, %v870
      %v919 = vpack.c.b16 %v875, %v873
      %v920 = vpack.c.b16 %v876, %v874
      %v921 = vpack.c.b16 %v879, %v877
      %v922 = vpack.c.b16 %v880, %v878
      %v923 = vpack.c.b16 %v883, %v881
      %v924 = vpack.c.b16 %v884, %v882
      %v925 = vpack.c.b16 %v887, %v885
      %v926 = vpack.c.b16 %v888, %v886
      %v927 = vpack.c.b16 %v891, %v889
      %v928 = vpack.c.b16 %v892, %v890
      %v929 = vpack.c.b16 %v895, %v893
      %v930 = vpack.c.b16 %v896, %v894
      %vm963 = vcmask 72704
      %v965 = vsel %vm963, %v687, 0
      %v968 = vsel %vm963, %v690, 0
      %v971 = vsel %vm963, %v693, 0
      %v974 = vsel %vm963, %v696, 0
      %v977 = vsel %vm963, %v699, 0
      %v980 = vsel %vm963, %v702, 0
      %v983 = vsel %vm963, %v705, 0
      %v986 = vsel %vm963, %v708, 0
      %v989 = vsel %vm963, %v711, 0
      %v992 = vsel %vm963, %v714, 0
      %v995 = vsel %vm963, %v717, 0
      %v998 = vsel %vm963, %v720, 0
      %v1001 = vsel %vm963, %v723, 0
      %v1004 = vsel %vm963, %v726, 0
      %v1007 = vsel %vm963, %v729, 0
      %v1010 = vsel %vm963, %v732, 0
      %v1013 = vsel %vm963, %v735, 0
      %v1016 = vsel %vm963, %v738, 0
      %v1019 = vsel %vm963, %v741, 0
      %v1022 = vsel %vm963, %v744, 0
      %v1025 = vsel %vm963, %v747, 0
      %v1028 = vsel %vm963, %v750, 0
      %vm1030 = vcmask 1043456
      %vm1031 = vcmask 1044480
      %v1032 = vsel %vm1030, 4294967295, 65535
      %v1033 = vsel %vm1031, %v1032, 0
      %v1035 = vand.u32 %v929, %v1033
      %v1038 = vand.u32 %v930, %v1033
      %1040 = vmatprep.subr.bf16.mxu0 %v898
      %1041 = vmatpush1.bf16.msra.mxu0 %v897
      %1042 = vmatprep.subr.bf16.mxu0 %v900
      %1043 = vmatpush1.bf16.msra.mxu0 %v899
      %1044 = vmatprep.subr.bf16.mxu0 %v902
      %1045 = vmatpush1.bf16.msra.mxu0 %v901
      %1046 = vmatprep.subr.bf16.mxu0 %v904
      %1047 = vmatpush1.bf16.msra.mxu0 %v903
      %1048 = vmatprep.subr.bf16.mxu0 %v906
      %1049 = vmatpush1.bf16.msra.mxu0 %v905
      %1050 = vmatprep.subr.bf16.mxu0 %v908
      %1051 = vmatpush1.bf16.msra.mxu0 %v907
      %1052 = vmatprep.subr.bf16.mxu0 %v910
      %1053 = vmatpush1.bf16.msra.mxu0 %v909
      %1054 = vmatprep.subr.bf16.mxu0 %v912
      %1055 = vmatpush1.bf16.msra.mxu0 %v911
      %1056 = vmatprep.subr.bf16.mxu0 %v914
      %1057 = vmatpush1.bf16.msra.mxu0 %v913
      %1058 = vmatprep.subr.bf16.mxu0 %v916
      %1059 = vmatpush1.bf16.msra.mxu0 %v915
      %1060 = vmatprep.subr.bf16.mxu0 %v918
      %1061 = vmatpush1.bf16.msra.mxu0 %v917
      %1062 = vmatprep.subr.bf16.mxu0 %v920
      %1063 = vmatpush1.bf16.msra.mxu0 %v919
      %1064 = vmatprep.subr.bf16.mxu0 %v922
      %1065 = vmatpush1.bf16.msra.mxu0 %v921
      %1066 = vmatprep.subr.bf16.mxu0 %v924
      %1067 = vmatpush1.bf16.msra.mxu0 %v923
      %1068 = vmatprep.subr.bf16.mxu0 %v926
      %1069 = vmatpush1.bf16.msra.mxu0 %v925
      %1070 = vmatprep.subr.bf16.mxu0 %v928
      %1071 = vmatpush1.bf16.msra.mxu0 %v927
      %1072 = vmatprep.mubr.bf16.mxu0 %v686
      %1073 = vmatmul.mubr.bf16.gmra.mrb[0].mxu0 %v685
      %v1074 = vpop.f32.mrb[0].mxu0
      %v1075 = vadd.f32 0.0, %v1074
      %v1076 = vpop.f32.mrb[0].mxu0
      %v1077 = vadd.f32 0.0, %v1076
      %v1078 = vpop.f32.mrb[0].mxu0
      %v1079 = vadd.f32 0.0, %v1078
      %v1080 = vpop.f32.mrb[0].mxu0
      %v1081 = vadd.f32 0.0, %v1080
      %1082 = vmatprep.mubr.bf16.mxu0 %v689
      %1083 = vmatmul.mubr.bf16.gmra.mrb[0].mxu0 %v688
      %v1084 = vpop.f32.mrb[0].mxu0
      %v1085 = vadd.f32 0.0, %v1084
      %v1086 = vpop.f32.mrb[0].mxu0
      %v1087 = vadd.f32 0.0, %v1086
      %v1088 = vpop.f32.mrb[0].mxu0
      %v1089 = vadd.f32 0.0, %v1088
      %v1090 = vpop.f32.mrb[0].mxu0
      %v1091 = vadd.f32 0.0, %v1090
      %1092 = vmatprep.mubr.bf16.mxu0 %v692
      %1093 = vmatmul.mubr.bf16.gmra.mrb[0].mxu0 %v691
      %v1094 = vpop.f32.mrb[0].mxu0
      %v1095 = vadd.f32 0.0, %v1094
      %v1096 = vpop.f32.mrb[0].mxu0
      %v1097 = vadd.f32 0.0, %v1096
      %v1098 = vpop.f32.mrb[0].mxu0
      %v1099 = vadd.f32 0.0, %v1098
      %v1100 = vpop.f32.mrb[0].mxu0
      %v1101 = vadd.f32 0.0, %v1100
      %1102 = vmatprep.mubr.bf16.mxu0 %v695
      %1103 = vmatmul.mubr.bf16.gmra.mrb[0].mxu0 %v694
      %v1104 = vpop.f32.mrb[0].mxu0
      %v1105 = vadd.f32 0.0, %v1104
      %v1106 = vpop.f32.mrb[0].mxu0
      %v1107 = vadd.f32 0.0, %v1106
      %v1108 = vpop.f32.mrb[0].mxu0
      %v1109 = vadd.f32 0.0, %v1108
      %v1110 = vpop.f32.mrb[0].mxu0
      %v1111 = vadd.f32 0.0, %v1110
      %1112 = vmatprep.mubr.bf16.mxu0 %v698
      %1113 = vmatmul.mubr.bf16.gmra.mrb[0].mxu0 %v697
      %v1114 = vpop.f32.mrb[0].mxu0
      %v1115 = vadd.f32 0.0, %v1114
      %v1116 = vpop.f32.mrb[0].mxu0
      %v1117 = vadd.f32 0.0, %v1116
      %v1118 = vpop.f32.mrb[0].mxu0
      %v1119 = vadd.f32 0.0, %v1118
      %v1120 = vpop.f32.mrb[0].mxu0
      %v1121 = vadd.f32 0.0, %v1120
      %1122 = vmatprep.mubr.bf16.mxu0 %v701
      %1123 = vmatmul.mubr.bf16.gmra.mrb[0].mxu0 %v700
      %v1124 = vpop.f32.mrb[0].mxu0
      %v1125 = vadd.f32 0.0, %v1124
      %v1126 = vpop.f32.mrb[0].mxu0
      %v1127 = vadd.f32 0.0, %v1126
      %v1128 = vpop.f32.mrb[0].mxu0
      %v1129 = vadd.f32 0.0, %v1128
      %v1130 = vpop.f32.mrb[0].mxu0
      %v1131 = vadd.f32 0.0, %v1130
      %1132 = vmatprep.mubr.bf16.mxu0 %v704
      %1133 = vmatmul.mubr.bf16.gmra.mrb[0].mxu0 %v703
      %v1134 = vpop.f32.mrb[0].mxu0
      %v1135 = vadd.f32 0.0, %v1134
      %v1136 = vpop.f32.mrb[0].mxu0
      %v1137 = vadd.f32 0.0, %v1136
      %v1138 = vpop.f32.mrb[0].mxu0
      %v1139 = vadd.f32 0.0, %v1138
      %v1140 = vpop.f32.mrb[0].mxu0
      %v1141 = vadd.f32 0.0, %v1140
      %1142 = vmatprep.mubr.bf16.mxu0 %v707
      %1143 = vmatmul.mubr.bf16.gmra.mrb[0].mxu0 %v706
      %v1144 = vpop.f32.mrb[0].mxu0
      %v1145 = vadd.f32 0.0, %v1144
      %v1146 = vpop.f32.mrb[0].mxu0
      %v1147 = vadd.f32 0.0, %v1146
      %v1148 = vpop.f32.mrb[0].mxu0
      %v1149 = vadd.f32 0.0, %v1148
      %v1150 = vpop.f32.mrb[0].mxu0
      %v1151 = vadd.f32 0.0, %v1150
      %1152 = vmatprep.mubr.bf16.mxu0 %v710
      %1153 = vmatmul.mubr.bf16.gmra.mrb[0].mxu0 %v709
      %v1154 = vpop.f32.mrb[0].mxu0
      %v1155 = vadd.f32 0.0, %v1154
      %v1156 = vpop.f32.mrb[0].mxu0
      %v1157 = vadd.f32 0.0, %v1156
      %v1158 = vpop.f32.mrb[0].mxu0
      %v1159 = vadd.f32 0.0, %v1158
      %v1160 = vpop.f32.mrb[0].mxu0
      %v1161 = vadd.f32 0.0, %v1160
      %1162 = vmatprep.mubr.bf16.mxu0 %v713
      %1163 = vmatmul.mubr.bf16.gmra.mrb[0].mxu0 %v712
      %v1164 = vpop.f32.mrb[0].mxu0
      %v1165 = vadd.f32 0.0, %v1164
      %v1166 = vpop.f32.mrb[0].mxu0
      %v1167 = vadd.f32 0.0, %v1166
      %v1168 = vpop.f32.mrb[0].mxu0
      %v1169 = vadd.f32 0.0, %v1168
      %v1170 = vpop.f32.mrb[0].mxu0
      %v1171 = vadd.f32 0.0, %v1170
      %1172 = vmatprep.mubr.bf16.mxu0 %v716
      %1173 = vmatmul.mubr.bf16.gmra.mrb[0].mxu0 %v715
      %v1174 = vpop.f32.mrb[0].mxu0
      %v1175 = vadd.f32 0.0, %v1174
      %v1176 = vpop.f32.mrb[0].mxu0
      %v1177 = vadd.f32 0.0, %v1176
      %v1178 = vpop.f32.mrb[0].mxu0
      %v1179 = vadd.f32 0.0, %v1178
      %v1180 = vpop.f32.mrb[0].mxu0
      %v1181 = vadd.f32 0.0, %v1180
      %1182 = vmatprep.mubr.bf16.mxu0 %v719
      %1183 = vmatmul.mubr.bf16.gmra.mrb[0].mxu0 %v718
      %v1184 = vpop.f32.mrb[0].mxu0
      %v1185 = vadd.f32 0.0, %v1184
      %v1186 = vpop.f32.mrb[0].mxu0
      %v1187 = vadd.f32 0.0, %v1186
      %v1188 = vpop.f32.mrb[0].mxu0
      %v1189 = vadd.f32 0.0, %v1188
      %v1190 = vpop.f32.mrb[0].mxu0
      %v1191 = vadd.f32 0.0, %v1190
      %1192 = vmatprep.mubr.bf16.mxu0 %v722
      %1193 = vmatmul.mubr.bf16.gmra.mrb[0].mxu0 %v721
      %v1194 = vpop.f32.mrb[0].mxu0
      %v1195 = vadd.f32 0.0, %v1194
      %v1196 = vpop.f32.mrb[0].mxu0
      %v1197 = vadd.f32 0.0, %v1196
      %v1198 = vpop.f32.mrb[0].mxu0
      %v1199 = vadd.f32 0.0, %v1198
      %v1200 = vpop.f32.mrb[0].mxu0
      %v1201 = vadd.f32 0.0, %v1200
      %1202 = vmatprep.mubr.bf16.mxu0 %v725
      %1203 = vmatmul.mubr.bf16.gmra.mrb[0].mxu0 %v724
      %v1204 = vpop.f32.mrb[0].mxu0
      %v1205 = vadd.f32 0.0, %v1204
      %v1206 = vpop.f32.mrb[0].mxu0
      %v1207 = vadd.f32 0.0, %v1206
      %v1208 = vpop.f32.mrb[0].mxu0
      %v1209 = vadd.f32 0.0, %v1208
      %v1210 = vpop.f32.mrb[0].mxu0
      %v1211 = vadd.f32 0.0, %v1210
      %1212 = vmatprep.mubr.bf16.mxu0 %v728
      %1213 = vmatmul.mubr.bf16.gmra.mrb[0].mxu0 %v727
      %v1214 = vpop.f32.mrb[0].mxu0
      %v1215 = vadd.f32 0.0, %v1214
      %v1216 = vpop.f32.mrb[0].mxu0
      %v1217 = vadd.f32 0.0, %v1216
      %v1218 = vpop.f32.mrb[0].mxu0
      %v1219 = vadd.f32 0.0, %v1218
      %v1220 = vpop.f32.mrb[0].mxu0
      %v1221 = vadd.f32 0.0, %v1220
      %1222 = vmatprep.mubr.bf16.mxu0 %v731
      %1223 = vmatmul.mubr.bf16.gmra.mrb[0].mxu0 %v730
      %v1224 = vpop.f32.mrb[0].mxu0
      %v1225 = vadd.f32 0.0, %v1224
      %v1226 = vpop.f32.mrb[0].mxu0
      %v1227 = vadd.f32 0.0, %v1226
      %v1228 = vpop.f32.mrb[0].mxu0
      %v1229 = vadd.f32 0.0, %v1228
      %v1230 = vpop.f32.mrb[0].mxu0
      %v1231 = vadd.f32 0.0, %v1230
      %1232 = vmatprep.mubr.bf16.mxu0 %v734
      %1233 = vmatmul.mubr.bf16.gmra.mrb[0].mxu0 %v733
      %v1234 = vpop.f32.mrb[0].mxu0
      %v1235 = vadd.f32 0.0, %v1234
      %v1236 = vpop.f32.mrb[0].mxu0
      %v1237 = vadd.f32 0.0, %v1236
      %v1238 = vpop.f32.mrb[0].mxu0
      %v1239 = vadd.f32 0.0, %v1238
      %v1240 = vpop.f32.mrb[0].mxu0
      %v1241 = vadd.f32 0.0, %v1240
      %1242 = vmatprep.mubr.bf16.mxu0 %v737
      %1243 = vmatmul.mubr.bf16.gmra.mrb[0].mxu0 %v736
      %v1244 = vpop.f32.mrb[0].mxu0
      %v1245 = vadd.f32 0.0, %v1244
      %v1246 = vpop.f32.mrb[0].mxu0
      %v1247 = vadd.f32 0.0, %v1246
      %v1248 = vpop.f32.mrb[0].mxu0
      %v1249 = vadd.f32 0.0, %v1248
      %v1250 = vpop.f32.mrb[0].mxu0
      %v1251 = vadd.f32 0.0, %v1250
      %1252 = vmatprep.mubr.bf16.mxu0 %v740
      %1253 = vmatmul.mubr.bf16.gmra.mrb[0].mxu0 %v739
      %v1254 = vpop.f32.mrb[0].mxu0
      %v1255 = vadd.f32 0.0, %v1254
      %v1256 = vpop.f32.mrb[0].mxu0
      %v1257 = vadd.f32 0.0, %v1256
      %v1258 = vpop.f32.mrb[0].mxu0
      %v1259 = vadd.f32 0.0, %v1258
      %v1260 = vpop.f32.mrb[0].mxu0
      %v1261 = vadd.f32 0.0, %v1260
      %1262 = vmatprep.mubr.bf16.mxu0 %v743
      %1263 = vmatmul.mubr.bf16.gmra.mrb[0].mxu0 %v742
      %v1264 = vpop.f32.mrb[0].mxu0
      %v1265 = vadd.f32 0.0, %v1264
      %v1266 = vpop.f32.mrb[0].mxu0
      %v1267 = vadd.f32 0.0, %v1266
      %v1268 = vpop.f32.mrb[0].mxu0
      %v1269 = vadd.f32 0.0, %v1268
      %v1270 = vpop.f32.mrb[0].mxu0
      %v1271 = vadd.f32 0.0, %v1270
      %1272 = vmatprep.mubr.bf16.mxu0 %v746
      %1273 = vmatmul.mubr.bf16.gmra.mrb[0].mxu0 %v745
      %v1274 = vpop.f32.mrb[0].mxu0
      %v1275 = vadd.f32 0.0, %v1274
      %v1276 = vpop.f32.mrb[0].mxu0
      %v1277 = vadd.f32 0.0, %v1276
      %v1278 = vpop.f32.mrb[0].mxu0
      %v1279 = vadd.f32 0.0, %v1278
      %v1280 = vpop.f32.mrb[0].mxu0
      %v1281 = vadd.f32 0.0, %v1280
      %1282 = vmatprep.mubr.bf16.mxu0 %v749
      %1283 = vmatmul.mubr.bf16.gmra.mrb[0].mxu0 %v748
      %v1284 = vpop.f32.mrb[0].mxu0
      %v1285 = vadd.f32 0.0, %v1284
      %v1286 = vpop.f32.mrb[0].mxu0
      %v1287 = vadd.f32 0.0, %v1286
      %v1288 = vpop.f32.mrb[0].mxu0
      %v1289 = vadd.f32 0.0, %v1288
      %v1290 = vpop.f32.mrb[0].mxu0
      %v1291 = vadd.f32 0.0, %v1290
      %1292 = vdwg.mxu0
      %1293 = vmatprep.subr.bf16.mxu0 %v1038
      %1294 = vmatpush1.bf16.msra.mxu0 %v1035
      %1295 = vmatprep.subr.bf16.mxu0 0
      %1296 = vmatpush1.bf16.msra.mxu0 0
      %1297 = vmatprep.subr.bf16.mxu0 0
      %1298 = vmatpush1.bf16.msra.mxu0 0
      %1299 = vmatprep.subr.bf16.mxu0 0
      %1300 = vmatpush1.bf16.msra.mxu0 0
      %1301 = vmatprep.subr.bf16.mxu0 0
      %1302 = vmatpush1.bf16.msra.mxu0 0
      %1303 = vmatprep.subr.bf16.mxu0 0
      %1304 = vmatpush1.bf16.msra.mxu0 0
      %1305 = vmatprep.subr.bf16.mxu0 0
      %1306 = vmatpush1.bf16.msra.mxu0 0
      %1307 = vmatprep.subr.bf16.mxu0 0
      %1308 = vmatpush1.bf16.msra.mxu0 0
      %1309 = vmatprep.subr.bf16.mxu0 0
      %1310 = vmatpush1.bf16.msra.mxu0 0
      %1311 = vmatprep.subr.bf16.mxu0 0
      %1312 = vmatpush1.bf16.msra.mxu0 0
      %1313 = vmatprep.subr.bf16.mxu0 0
      %1314 = vmatpush1.bf16.msra.mxu0 0
      %1315 = vmatprep.subr.bf16.mxu0 0
      %1316 = vmatpush1.bf16.msra.mxu0 0
      %1317 = vmatprep.subr.bf16.mxu0 0
      %1318 = vmatpush1.bf16.msra.mxu0 0
      %1319 = vmatprep.subr.bf16.mxu0 0
      %1320 = vmatpush1.bf16.msra.mxu0 0
      %1321 = vmatprep.subr.bf16.mxu0 0
      %1322 = vmatpush1.bf16.msra.mxu0 0
      %1323 = vmatprep.subr.bf16.mxu0 0
      %1324 = vmatpush1.bf16.msra.mxu0 0
      %1325 = vmatprep.mubr.bf16.mxu0 0
      %1326 = vmatmul.mubr.bf16.gmra.mrb[0].mxu0 %v965
      %v1327 = vpop.f32.mrb[0].mxu0
      %v1328 = vadd.f32 %v1075, %v1327
      %v1329 = vpop.f32.mrb[0].mxu0
      %v1330 = vadd.f32 %v1077, %v1329
      %v1331 = vpop.f32.mrb[0].mxu0
      %v1332 = vadd.f32 %v1079, %v1331
      %v1333 = vpop.f32.mrb[0].mxu0
      %v1334 = vadd.f32 %v1081, %v1333
      %1335 = vmatprep.mubr.bf16.mxu0 0
      %1336 = vmatmul.mubr.bf16.gmra.mrb[0].mxu0 %v968
      %v1337 = vpop.f32.mrb[0].mxu0
      %v1338 = vadd.f32 %v1085, %v1337
      %v1339 = vpop.f32.mrb[0].mxu0
      %v1340 = vadd.f32 %v1087, %v1339
      %v1341 = vpop.f32.mrb[0].mxu0
      %v1342 = vadd.f32 %v1089, %v1341
      %v1343 = vpop.f32.mrb[0].mxu0
      %v1344 = vadd.f32 %v1091, %v1343
      %1345 = vmatprep.mubr.bf16.mxu0 0
      %1346 = vmatmul.mubr.bf16.gmra.mrb[0].mxu0 %v971
      %v1347 = vpop.f32.mrb[0].mxu0
      %v1348 = vadd.f32 %v1095, %v1347
      %v1349 = vpop.f32.mrb[0].mxu0
      %v1350 = vadd.f32 %v1097, %v1349
      %v1351 = vpop.f32.mrb[0].mxu0
      %v1352 = vadd.f32 %v1099, %v1351
      %v1353 = vpop.f32.mrb[0].mxu0
      %v1354 = vadd.f32 %v1101, %v1353
      %1355 = vmatprep.mubr.bf16.mxu0 0
      %1356 = vmatmul.mubr.bf16.gmra.mrb[0].mxu0 %v974
      %v1357 = vpop.f32.mrb[0].mxu0
      %v1358 = vadd.f32 %v1105, %v1357
      %v1359 = vpop.f32.mrb[0].mxu0
      %v1360 = vadd.f32 %v1107, %v1359
      %v1361 = vpop.f32.mrb[0].mxu0
      %v1362 = vadd.f32 %v1109, %v1361
      %v1363 = vpop.f32.mrb[0].mxu0
      %v1364 = vadd.f32 %v1111, %v1363
      %1365 = vmatprep.mubr.bf16.mxu0 0
      %1366 = vmatmul.mubr.bf16.gmra.mrb[0].mxu0 %v977
      %v1367 = vpop.f32.mrb[0].mxu0
      %v1368 = vadd.f32 %v1115, %v1367
      %v1369 = vpop.f32.mrb[0].mxu0
      %v1370 = vadd.f32 %v1117, %v1369
      %v1371 = vpop.f32.mrb[0].mxu0
      %v1372 = vadd.f32 %v1119, %v1371
      %v1373 = vpop.f32.mrb[0].mxu0
      %v1374 = vadd.f32 %v1121, %v1373
      %1375 = vmatprep.mubr.bf16.mxu0 0
      %1376 = vmatmul.mubr.bf16.gmra.mrb[0].mxu0 %v980
      %v1377 = vpop.f32.mrb[0].mxu0
      %v1378 = vadd.f32 %v1125, %v1377
      %v1379 = vpop.f32.mrb[0].mxu0
      %v1380 = vadd.f32 %v1127, %v1379
      %v1381 = vpop.f32.mrb[0].mxu0
      %v1382 = vadd.f32 %v1129, %v1381
      %v1383 = vpop.f32.mrb[0].mxu0
      %v1384 = vadd.f32 %v1131, %v1383
      %1385 = vmatprep.mubr.bf16.mxu0 0
      %1386 = vmatmul.mubr.bf16.gmra.mrb[0].mxu0 %v983
      %v1387 = vpop.f32.mrb[0].mxu0
      %v1388 = vadd.f32 %v1135, %v1387
      %v1389 = vpop.f32.mrb[0].mxu0
      %v1390 = vadd.f32 %v1137, %v1389
      %v1391 = vpop.f32.mrb[0].mxu0
      %v1392 = vadd.f32 %v1139, %v1391
      %v1393 = vpop.f32.mrb[0].mxu0
      %v1394 = vadd.f32 %v1141, %v1393
      %1395 = vmatprep.mubr.bf16.mxu0 0
      %1396 = vmatmul.mubr.bf16.gmra.mrb[0].mxu0 %v986
      %v1397 = vpop.f32.mrb[0].mxu0
      %v1398 = vadd.f32 %v1145, %v1397
      %v1399 = vpop.f32.mrb[0].mxu0
      %v1400 = vadd.f32 %v1147, %v1399
      %v1401 = vpop.f32.mrb[0].mxu0
      %v1402 = vadd.f32 %v1149, %v1401
      %v1403 = vpop.f32.mrb[0].mxu0
      %v1404 = vadd.f32 %v1151, %v1403
      %1405 = vmatprep.mubr.bf16.mxu0 0
      %1406 = vmatmul.mubr.bf16.gmra.mrb[0].mxu0 %v989
      %v1407 = vpop.f32.mrb[0].mxu0
      %v1408 = vadd.f32 %v1155, %v1407
      %v1409 = vpop.f32.mrb[0].mxu0
      %v1410 = vadd.f32 %v1157, %v1409
      %v1411 = vpop.f32.mrb[0].mxu0
      %v1412 = vadd.f32 %v1159, %v1411
      %v1413 = vpop.f32.mrb[0].mxu0
      %v1414 = vadd.f32 %v1161, %v1413
      %1415 = vmatprep.mubr.bf16.mxu0 0
      %1416 = vmatmul.mubr.bf16.gmra.mrb[0].mxu0 %v992
      %v1417 = vpop.f32.mrb[0].mxu0
      %v1418 = vadd.f32 %v1165, %v1417
      %v1419 = vpop.f32.mrb[0].mxu0
      %v1420 = vadd.f32 %v1167, %v1419
      %v1421 = vpop.f32.mrb[0].mxu0
      %v1422 = vadd.f32 %v1169, %v1421
      %v1423 = vpop.f32.mrb[0].mxu0
      %v1424 = vadd.f32 %v1171, %v1423
      %1425 = vmatprep.mubr.bf16.mxu0 0
      %1426 = vmatmul.mubr.bf16.gmra.mrb[0].mxu0 %v995
      %v1427 = vpop.f32.mrb[0].mxu0
      %v1428 = vadd.f32 %v1175, %v1427
      %v1429 = vpop.f32.mrb[0].mxu0
      %v1430 = vadd.f32 %v1177, %v1429
      %v1431 = vpop.f32.mrb[0].mxu0
      %v1432 = vadd.f32 %v1179, %v1431
      %v1433 = vpop.f32.mrb[0].mxu0
      %v1434 = vadd.f32 %v1181, %v1433
      %1435 = vmatprep.mubr.bf16.mxu0 0
      %1436 = vmatmul.mubr.bf16.gmra.mrb[0].mxu0 %v998
      %v1437 = vpop.f32.mrb[0].mxu0
      %v1438 = vadd.f32 %v1185, %v1437
      %v1439 = vpop.f32.mrb[0].mxu0
      %v1440 = vadd.f32 %v1187, %v1439
      %v1441 = vpop.f32.mrb[0].mxu0
      %v1442 = vadd.f32 %v1189, %v1441
      %v1443 = vpop.f32.mrb[0].mxu0
      %v1444 = vadd.f32 %v1191, %v1443
      %1445 = vmatprep.mubr.bf16.mxu0 0
      %1446 = vmatmul.mubr.bf16.gmra.mrb[0].mxu0 %v1001
      %v1447 = vpop.f32.mrb[0].mxu0
      %v1448 = vadd.f32 %v1195, %v1447
      %v1449 = vpop.f32.mrb[0].mxu0
      %v1450 = vadd.f32 %v1197, %v1449
      %v1451 = vpop.f32.mrb[0].mxu0
      %v1452 = vadd.f32 %v1199, %v1451
      %v1453 = vpop.f32.mrb[0].mxu0
      %v1454 = vadd.f32 %v1201, %v1453
      %1455 = vmatprep.mubr.bf16.mxu0 0
      %1456 = vmatmul.mubr.bf16.gmra.mrb[0].mxu0 %v1004
      %v1457 = vpop.f32.mrb[0].mxu0
      %v1458 = vadd.f32 %v1205, %v1457
      %v1459 = vpop.f32.mrb[0].mxu0
      %v1460 = vadd.f32 %v1207, %v1459
      %v1461 = vpop.f32.mrb[0].mxu0
      %v1462 = vadd.f32 %v1209, %v1461
      %v1463 = vpop.f32.mrb[0].mxu0
      %v1464 = vadd.f32 %v1211, %v1463
      %1465 = vmatprep.mubr.bf16.mxu0 0
      %1466 = vmatmul.mubr.bf16.gmra.mrb[0].mxu0 %v1007
      %v1467 = vpop.f32.mrb[0].mxu0
      %v1468 = vadd.f32 %v1215, %v1467
      %v1469 = vpop.f32.mrb[0].mxu0
      %v1470 = vadd.f32 %v1217, %v1469
      %v1471 = vpop.f32.mrb[0].mxu0
      %v1472 = vadd.f32 %v1219, %v1471
      %v1473 = vpop.f32.mrb[0].mxu0
      %v1474 = vadd.f32 %v1221, %v1473
      %1475 = vmatprep.mubr.bf16.mxu0 0
      %1476 = vmatmul.mubr.bf16.gmra.mrb[0].mxu0 %v1010
      %v1477 = vpop.f32.mrb[0].mxu0
      %v1478 = vadd.f32 %v1225, %v1477
      %v1479 = vpop.f32.mrb[0].mxu0
      %v1480 = vadd.f32 %v1227, %v1479
      %v1481 = vpop.f32.mrb[0].mxu0
      %v1482 = vadd.f32 %v1229, %v1481
      %v1483 = vpop.f32.mrb[0].mxu0
      %v1484 = vadd.f32 %v1231, %v1483
      %1485 = vmatprep.mubr.bf16.mxu0 0
      %1486 = vmatmul.mubr.bf16.gmra.mrb[0].mxu0 %v1013
      %v1487 = vpop.f32.mrb[0].mxu0
      %v1488 = vadd.f32 %v1235, %v1487
      %v1489 = vpop.f32.mrb[0].mxu0
      %v1490 = vadd.f32 %v1237, %v1489
      %v1491 = vpop.f32.mrb[0].mxu0
      %v1492 = vadd.f32 %v1239, %v1491
      %v1493 = vpop.f32.mrb[0].mxu0
      %v1494 = vadd.f32 %v1241, %v1493
      %1495 = vmatprep.mubr.bf16.mxu0 0
      %1496 = vmatmul.mubr.bf16.gmra.mrb[0].mxu0 %v1016
      %v1497 = vpop.f32.mrb[0].mxu0
      %v1498 = vadd.f32 %v1245, %v1497
      %v1499 = vpop.f32.mrb[0].mxu0
      %v1500 = vadd.f32 %v1247, %v1499
      %v1501 = vpop.f32.mrb[0].mxu0
      %v1502 = vadd.f32 %v1249, %v1501
      %v1503 = vpop.f32.mrb[0].mxu0
      %v1504 = vadd.f32 %v1251, %v1503
      %1505 = vmatprep.mubr.bf16.mxu0 0
      %1506 = vmatmul.mubr.bf16.gmra.mrb[0].mxu0 %v1019
      %v1507 = vpop.f32.mrb[0].mxu0
      %v1508 = vadd.f32 %v1255, %v1507
      %v1509 = vpop.f32.mrb[0].mxu0
      %v1510 = vadd.f32 %v1257, %v1509
      %v1511 = vpop.f32.mrb[0].mxu0
      %v1512 = vadd.f32 %v1259, %v1511
      %v1513 = vpop.f32.mrb[0].mxu0
      %v1514 = vadd.f32 %v1261, %v1513
      %1515 = vmatprep.mubr.bf16.mxu0 0
      %1516 = vmatmul.mubr.bf16.gmra.mrb[0].mxu0 %v1022
      %v1517 = vpop.f32.mrb[0].mxu0
      %v1518 = vadd.f32 %v1265, %v1517
      %v1519 = vpop.f32.mrb[0].mxu0
      %v1520 = vadd.f32 %v1267, %v1519
      %v1521 = vpop.f32.mrb[0].mxu0
      %v1522 = vadd.f32 %v1269, %v1521
      %v1523 = vpop.f32.mrb[0].mxu0
      %v1524 = vadd.f32 %v1271, %v1523
      %1525 = vmatprep.mubr.bf16.mxu0 0
      %1526 = vmatmul.mubr.bf16.gmra.mrb[0].mxu0 %v1025
      %v1527 = vpop.f32.mrb[0].mxu0
      %v1528 = vadd.f32 %v1275, %v1527
      %v1529 = vpop.f32.mrb[0].mxu0
      %v1530 = vadd.f32 %v1277, %v1529
      %v1531 = vpop.f32.mrb[0].mxu0
      %v1532 = vadd.f32 %v1279, %v1531
      %v1533 = vpop.f32.mrb[0].mxu0
      %v1534 = vadd.f32 %v1281, %v1533
      %1535 = vmatprep.mubr.bf16.mxu0 0
      %1536 = vmatmul.mubr.bf16.gmra.mrb[0].mxu0 %v1028
      %v1537 = vpop.f32.mrb[0].mxu0
      %v1538 = vadd.f32 %v1285, %v1537
      %v1539 = vpop.f32.mrb[0].mxu0
      %v1540 = vadd.f32 %v1287, %v1539
      %v1541 = vpop.f32.mrb[0].mxu0
      %v1542 = vadd.f32 %v1289, %v1541
      %v1543 = vpop.f32.mrb[0].mxu0
      %v1544 = vadd.f32 %v1291, %v1543
      %1545 = vdwg.mxu0
      %1546 = vst [vmem:[#allocation2] sm:$0xff] %v1328
      %vm1547 = vcmask 130048
      %1548 = vst.msk [vmem:[#allocation2 + $0x8] sm:$0xff] %vm1547, %v1330
      %1549 = vst [vmem:[#allocation2 + $0x10] sm:$0xff] %v1332
      %1550 = vst.msk [vmem:[#allocation2 + $0x18] sm:$0xff] %vm1547, %v1334
      %1551 = vst [vmem:[#allocation2 + $0x20] sm:$0xff] %v1338
      %1552 = vst.msk [vmem:[#allocation2 + $0x28] sm:$0xff] %vm1547, %v1340
      %1553 = vst [vmem:[#allocation2 + $0x30] sm:$0xff] %v1342
      %1554 = vst.msk [vmem:[#allocation2 + $0x38] sm:$0xff] %vm1547, %v1344
      %1555 = vst [vmem:[#allocation2 + $0x40] sm:$0xff] %v1348
      %1556 = vst.msk [vmem:[#allocation2 + $0x48] sm:$0xff] %vm1547, %v1350
      %1557 = vst [vmem:[#allocation2 + $0x50] sm:$0xff] %v1352
      %1558 = vst.msk [vmem:[#allocation2 + $0x58] sm:$0xff] %vm1547, %v1354
      %1559 = vst [vmem:[#allocation2 + $0x60] sm:$0xff] %v1358
      %1560 = vst.msk [vmem:[#allocation2 + $0x68] sm:$0xff] %vm1547, %v1360
      %1561 = vst [vmem:[#allocation2 + $0x70] sm:$0xff] %v1362
      %1562 = vst.msk [vmem:[#allocation2 + $0x78] sm:$0xff] %vm1547, %v1364
      %1563 = vst [vmem:[#allocation2 + $0x80] sm:$0xff] %v1368
      %1564 = vst.msk [vmem:[#allocation2 + $0x88] sm:$0xff] %vm1547, %v1370
      %1565 = vst [vmem:[#allocation2 + $0x90] sm:$0xff] %v1372
      %1566 = vst.msk [vmem:[#allocation2 + $0x98] sm:$0xff] %vm1547, %v1374
      %1567 = vst [vmem:[#allocation2 + $0xa0] sm:$0xff] %v1378
      %1568 = vst.msk [vmem:[#allocation2 + $0xa8] sm:$0xff] %vm1547, %v1380
      %1569 = vst [vmem:[#allocation2 + $0xb0] sm:$0xff] %v1382
      %1570 = vst.msk [vmem:[#allocation2 + $0xb8] sm:$0xff] %vm1547, %v1384
      %1571 = vst [vmem:[#allocation2 + $0xc0] sm:$0xff] %v1388
      %1572 = vst.msk [vmem:[#allocation2 + $0xc8] sm:$0xff] %vm1547, %v1390
      %1573 = vst [vmem:[#allocation2 + $0xd0] sm:$0xff] %v1392
      %1574 = vst.msk [vmem:[#allocation2 + $0xd8] sm:$0xff] %vm1547, %v1394
      %1575 = vst [vmem:[#allocation2 + $0xe0] sm:$0xff] %v1398
      %1576 = vst.msk [vmem:[#allocation2 + $0xe8] sm:$0xff] %vm1547, %v1400
      %1577 = vst [vmem:[#allocation2 + $0xf0] sm:$0xff] %v1402
      %1578 = vst.msk [vmem:[#allocation2 + $0xf8] sm:$0xff] %vm1547, %v1404
      %1579 = vst [vmem:[#allocation2 + $0x100] sm:$0xff] %v1408
      %1580 = vst.msk [vmem:[#allocation2 + $0x108] sm:$0xff] %vm1547, %v1410
      %1581 = vst [vmem:[#allocation2 + $0x110] sm:$0xff] %v1412
      %1582 = vst.msk [vmem:[#allocation2 + $0x118] sm:$0xff] %vm1547, %v1414
      %1583 = vst [vmem:[#allocation2 + $0x120] sm:$0xff] %v1418
      %1584 = vst.msk [vmem:[#allocation2 + $0x128] sm:$0xff] %vm1547, %v1420
      %1585 = vst [vmem:[#allocation2 + $0x130] sm:$0xff] %v1422
      %1586 = vst.msk [vmem:[#allocation2 + $0x138] sm:$0xff] %vm1547, %v1424
      %1587 = vst [vmem:[#allocation2 + $0x140] sm:$0xff] %v1428
      %1588 = vst.msk [vmem:[#allocation2 + $0x148] sm:$0xff] %vm1547, %v1430
      %1589 = vst [vmem:[#allocation2 + $0x150] sm:$0xff] %v1432
      %1590 = vst.msk [vmem:[#allocation2 + $0x158] sm:$0xff] %vm1547, %v1434
      %1591 = vst [vmem:[#allocation2 + $0x160] sm:$0xff] %v1438
      %1592 = vst.msk [vmem:[#allocation2 + $0x168] sm:$0xff] %vm1547, %v1440
      %1593 = vst [vmem:[#allocation2 + $0x170] sm:$0xff] %v1442
      %1594 = vst.msk [vmem:[#allocation2 + $0x178] sm:$0xff] %vm1547, %v1444
      %1595 = vst [vmem:[#allocation2 + $0x180] sm:$0xff] %v1448
      %1596 = vst.msk [vmem:[#allocation2 + $0x188] sm:$0xff] %vm1547, %v1450
      %1597 = vst [vmem:[#allocation2 + $0x190] sm:$0xff] %v1452
      %1598 = vst.msk [vmem:[#allocation2 + $0x198] sm:$0xff] %vm1547, %v1454
      %1599 = vst [vmem:[#allocation2 + $0x1a0] sm:$0xff] %v1458
      %1600 = vst.msk [vmem:[#allocation2 + $0x1a8] sm:$0xff] %vm1547, %v1460
      %1601 = vst [vmem:[#allocation2 + $0x1b0] sm:$0xff] %v1462
      %1602 = vst.msk [vmem:[#allocation2 + $0x1b8] sm:$0xff] %vm1547, %v1464
      %1603 = vst [vmem:[#allocation2 + $0x1c0] sm:$0xff] %v1468
      %1604 = vst.msk [vmem:[#allocation2 + $0x1c8] sm:$0xff] %vm1547, %v1470
      %1605 = vst [vmem:[#allocation2 + $0x1d0] sm:$0xff] %v1472
      %1606 = vst.msk [vmem:[#allocation2 + $0x1d8] sm:$0xff] %vm1547, %v1474
      %1607 = vst [vmem:[#allocation2 + $0x1e0] sm:$0xff] %v1478
      %1608 = vst.msk [vmem:[#allocation2 + $0x1e8] sm:$0xff] %vm1547, %v1480
      %1609 = vst [vmem:[#allocation2 + $0x1f0] sm:$0xff] %v1482
      %1610 = vst.msk [vmem:[#allocation2 + $0x1f8] sm:$0xff] %vm1547, %v1484
      %1611 = vst [vmem:[#allocation2 + $0x200] sm:$0xff] %v1488
      %1612 = vst.msk [vmem:[#allocation2 + $0x208] sm:$0xff] %vm1547, %v1490
      %1613 = vst [vmem:[#allocation2 + $0x210] sm:$0xff] %v1492
      %1614 = vst.msk [vmem:[#allocation2 + $0x218] sm:$0xff] %vm1547, %v1494
      %1615 = vst [vmem:[#allocation2 + $0x220] sm:$0xff] %v1498
      %1616 = vst.msk [vmem:[#allocation2 + $0x228] sm:$0xff] %vm1547, %v1500
      %1617 = vst [vmem:[#allocation2 + $0x230] sm:$0xff] %v1502
      %1618 = vst.msk [vmem:[#allocation2 + $0x238] sm:$0xff] %vm1547, %v1504
      %1619 = vst [vmem:[#allocation2 + $0x240] sm:$0xff] %v1508
      %1620 = vst.msk [vmem:[#allocation2 + $0x248] sm:$0xff] %vm1547, %v1510
      %1621 = vst [vmem:[#allocation2 + $0x250] sm:$0xff] %v1512
      %1622 = vst.msk [vmem:[#allocation2 + $0x258] sm:$0xff] %vm1547, %v1514
      %1623 = vst [vmem:[#allocation2 + $0x260] sm:$0xff] %v1518
      %1624 = vst.msk [vmem:[#allocation2 + $0x268] sm:$0xff] %vm1547, %v1520
      %1625 = vst [vmem:[#allocation2 + $0x270] sm:$0xff] %v1522
      %1626 = vst.msk [vmem:[#allocation2 + $0x278] sm:$0xff] %vm1547, %v1524
      %1627 = vst [vmem:[#allocation2 + $0x280] sm:$0xff] %v1528
      %1628 = vst.msk [vmem:[#allocation2 + $0x288] sm:$0xff] %vm1547, %v1530
      %1629 = vst [vmem:[#allocation2 + $0x290] sm:$0xff] %v1532
      %1630 = vst.msk [vmem:[#allocation2 + $0x298] sm:$0xff] %vm1547, %v1534
      %1631 = vst [vmem:[#allocation2 + $0x2a0] sm:$0xff] %v1538
      %1632 = vst.msk [vmem:[#allocation2 + $0x2a8] sm:$0xff] %vm1547, %v1540
      %1633 = vst [vmem:[#allocation2 + $0x2b0] sm:$0xff] %v1542
      %1634 = vst.msk [vmem:[#allocation2 + $0x2b8] sm:$0xff] %vm1547, %v1544
      %v1635 = vld [vmem:[#allocation2] sm:$0xff]
      %v1636 = vld [vmem:[#allocation2 + $0x10] sm:$0xff]
      %v1637 = vld [vmem:[#allocation2 + $0x20] sm:$0xff]
      %v1638 = vld [vmem:[#allocation2 + $0x30] sm:$0xff]
      %v1639 = vld [vmem:[#allocation2 + $0x40] sm:$0xff]
      %v1640 = vld [vmem:[#allocation2 + $0x50] sm:$0xff]
      %v1641 = vld [vmem:[#allocation2 + $0x60] sm:$0xff]
      %v1642 = vld [vmem:[#allocation2 + $0x70] sm:$0xff]
      %v1643 = vld [vmem:[#allocation2 + $0x80] sm:$0xff]
      %v1644 = vld [vmem:[#allocation2 + $0x90] sm:$0xff]
      %v1645 = vld [vmem:[#allocation2 + $0xa0] sm:$0xff]
      %v1646 = vld [vmem:[#allocation2 + $0xb0] sm:$0xff]
      %v1647 = vld [vmem:[#allocation2 + $0xc0] sm:$0xff]
      %v1648 = vld [vmem:[#allocation2 + $0xd0] sm:$0xff]
      %v1649 = vld [vmem:[#allocation2 + $0xe0] sm:$0xff]
      %v1650 = vld [vmem:[#allocation2 + $0xf0] sm:$0xff]
      %v1651 = vld [vmem:[#allocation2 + $0x100] sm:$0xff]
      %v1652 = vld [vmem:[#allocation2 + $0x110] sm:$0xff]
      %v1653 = vld [vmem:[#allocation2 + $0x120] sm:$0xff]
      %v1654 = vld [vmem:[#allocation2 + $0x130] sm:$0xff]
      %v1655 = vld [vmem:[#allocation2 + $0x140] sm:$0xff]
      %v1656 = vld [vmem:[#allocation2 + $0x150] sm:$0xff]
      %v1657 = vld [vmem:[#allocation2 + $0x160] sm:$0xff]
      %v1658 = vld [vmem:[#allocation2 + $0x170] sm:$0xff]
      %v1659 = vld [vmem:[#allocation2 + $0x180] sm:$0xff]
      %v1660 = vld [vmem:[#allocation2 + $0x190] sm:$0xff]
      %v1661 = vld [vmem:[#allocation2 + $0x1a0] sm:$0xff]
      %v1662 = vld [vmem:[#allocation2 + $0x1b0] sm:$0xff]
      %v1663 = vld [vmem:[#allocation2 + $0x1c0] sm:$0xff]
      %v1664 = vld [vmem:[#allocation2 + $0x1d0] sm:$0xff]
      %v1665 = vld [vmem:[#allocation2 + $0x1e0] sm:$0xff]
      %v1666 = vld [vmem:[#allocation2 + $0x1f0] sm:$0xff]
      %v1667 = vld [vmem:[#allocation2 + $0x200] sm:$0xff]
      %v1668 = vld [vmem:[#allocation2 + $0x210] sm:$0xff]
      %v1669 = vld [vmem:[#allocation2 + $0x220] sm:$0xff]
      %v1670 = vld [vmem:[#allocation2 + $0x230] sm:$0xff]
      %v1671 = vadd.f32 %v1635, 0.0
      %v1672 = vadd.f32 %v1636, 0.0
      %v1673 = vadd.f32 %v1637, 0.0
      %v1674 = vadd.f32 %v1638, 0.0
      %v1675 = vadd.f32 %v1639, 0.0
      %v1676 = vadd.f32 %v1640, 0.0
      %v1677 = vadd.f32 %v1641, 0.0
      %v1678 = vadd.f32 %v1642, 0.0
      %v1679 = vadd.f32 %v1643, 0.0
      %v1680 = vadd.f32 %v1644, 0.0
      %v1681 = vadd.f32 %v1645, 0.0
      %v1682 = vadd.f32 %v1646, 0.0
      %v1683 = vadd.f32 %v1647, 0.0
      %v1684 = vadd.f32 %v1648, 0.0
      %v1685 = vadd.f32 %v1649, 0.0
      %v1686 = vadd.f32 %v1650, 0.0
      %v1687 = vadd.f32 %v1651, 0.0
      %v1688 = vadd.f32 %v1652, 0.0
      %v1689 = vadd.f32 %v1653, 0.0
      %v1690 = vadd.f32 %v1654, 0.0
      %v1691 = vadd.f32 %v1655, 0.0
      %v1692 = vadd.f32 %v1656, 0.0
      %v1693 = vadd.f32 %v1657, 0.0
      %v1694 = vadd.f32 %v1658, 0.0
      %v1695 = vadd.f32 %v1659, 0.0
      %v1696 = vadd.f32 %v1660, 0.0
      %v1697 = vadd.f32 %v1661, 0.0
      %v1698 = vadd.f32 %v1662, 0.0
      %v1699 = vadd.f32 %v1663, 0.0
      %v1700 = vadd.f32 %v1664, 0.0
      %v1701 = vadd.f32 %v1665, 0.0
      %v1702 = vadd.f32 %v1666, 0.0
      %v1703 = vadd.f32 %v1667, 0.0
      %v1704 = vadd.f32 %v1668, 0.0
      %v1705 = vadd.f32 %v1669, 0.0
      %v1706 = vadd.f32 %v1670, 0.0
      %v1707 = vld [vmem:[#allocation2] sm:$0xfe]
      %v1708 = vld [vmem:[#allocation2 + $0x240] sm:$0x1]
      %vm1746 = vcmask 1046528
      %v1747 = vrot.slane %v1707, 1
      %v1748 = vrot.slane %v1636, 1
      %v1749 = vsel %vm1746, %v1747, %v1748
      %v1750 = vrot.slane %v1637, 1
      %v1751 = vsel %vm1746, %v1748, %v1750
      %v1752 = vrot.slane %v1638, 1
      %v1753 = vsel %vm1746, %v1750, %v1752
      %v1754 = vrot.slane %v1639, 1
      %v1755 = vsel %vm1746, %v1752, %v1754
      %v1756 = vrot.slane %v1640, 1
      %v1757 = vsel %vm1746, %v1754, %v1756
      %v1758 = vrot.slane %v1641, 1
      %v1759 = vsel %vm1746, %v1756, %v1758
      %v1760 = vrot.slane %v1642, 1
      %v1761 = vsel %vm1746, %v1758, %v1760
      %v1762 = vrot.slane %v1643, 1
      %v1763 = vsel %vm1746, %v1760, %v1762
      %v1764 = vrot.slane %v1644, 1
      %v1765 = vsel %vm1746, %v1762, %v1764
      %v1766 = vrot.slane %v1645, 1
      %v1767 = vsel %vm1746, %v1764, %v1766
      %v1768 = vrot.slane %v1646, 1
      %v1769 = vsel %vm1746, %v1766, %v1768
      %v1770 = vrot.slane %v1647, 1
      %v1771 = vsel %vm1746, %v1768, %v1770
      %v1772 = vrot.slane %v1648, 1
      %v1773 = vsel %vm1746, %v1770, %v1772
      %v1774 = vrot.slane %v1649, 1
      %v1775 = vsel %vm1746, %v1772, %v1774
      %v1776 = vrot.slane %v1650, 1
      %v1777 = vsel %vm1746, %v1774, %v1776
      %v1778 = vrot.slane %v1651, 1
      %v1779 = vsel %vm1746, %v1776, %v1778
      %v1780 = vrot.slane %v1652, 1
      %v1781 = vsel %vm1746, %v1778, %v1780
      %v1782 = vrot.slane %v1653, 1
      %v1783 = vsel %vm1746, %v1780, %v1782
      %v1784 = vrot.slane %v1654, 1
      %v1785 = vsel %vm1746, %v1782, %v1784
      %v1786 = vrot.slane %v1655, 1
      %v1787 = vsel %vm1746, %v1784, %v1786
      %v1788 = vrot.slane %v1656, 1
      %v1789 = vsel %vm1746, %v1786, %v1788
      %v1790 = vrot.slane %v1657, 1
      %v1791 = vsel %vm1746, %v1788, %v1790
      %v1792 = vrot.slane %v1658, 1
      %v1793 = vsel %vm1746, %v1790, %v1792
      %v1794 = vrot.slane %v1659, 1
      %v1795 = vsel %vm1746, %v1792, %v1794
      %v1796 = vrot.slane %v1660, 1
      %v1797 = vsel %vm1746, %v1794, %v1796
      %v1798 = vrot.slane %v1661, 1
      %v1799 = vsel %vm1746, %v1796, %v1798
      %v1800 = vrot.slane %v1662, 1
      %v1801 = vsel %vm1746, %v1798, %v1800
      %v1802 = vrot.slane %v1663, 1
      %v1803 = vsel %vm1746, %v1800, %v1802
      %v1804 = vrot.slane %v1664, 1
      %v1805 = vsel %vm1746, %v1802, %v1804
      %v1806 = vrot.slane %v1665, 1
      %v1807 = vsel %vm1746, %v1804, %v1806
      %v1808 = vrot.slane %v1666, 1
      %v1809 = vsel %vm1746, %v1806, %v1808
      %v1810 = vrot.slane %v1667, 1
      %v1811 = vsel %vm1746, %v1808, %v1810
      %v1812 = vrot.slane %v1668, 1
      %v1813 = vsel %vm1746, %v1810, %v1812
      %v1814 = vrot.slane %v1669, 1
      %v1815 = vsel %vm1746, %v1812, %v1814
      %v1816 = vrot.slane %v1670, 1
      %v1817 = vsel %vm1746, %v1814, %v1816
      %v1818 = vrot.slane %v1708, 1
      %v1819 = vsel %vm1746, %v1816, %v1818
      %1820 = vrot.lane.b32.xlu0 %v1749, 112
      %v1821 = vpop.permute.xlu0 %1820
      %1822 = vrot.lane.b32.xlu0 %v1751, 112
      %v1823 = vpop.permute.xlu0 %1822
      %1824 = vrot.lane.b32.xlu0 %v1753, 112
      %v1825 = vpop.permute.xlu0 %1824
      %1826 = vrot.lane.b32.xlu0 %v1755, 112
      %v1827 = vpop.permute.xlu0 %1826
      %1828 = vrot.lane.b32.xlu0 %v1757, 112
      %v1829 = vpop.permute.xlu0 %1828
      %1830 = vrot.lane.b32.xlu0 %v1759, 112
      %v1831 = vpop.permute.xlu0 %1830
      %1832 = vrot.lane.b32.xlu0 %v1761, 112
      %v1833 = vpop.permute.xlu0 %1832
      %1834 = vrot.lane.b32.xlu0 %v1763, 112
      %v1835 = vpop.permute.xlu0 %1834
      %1836 = vrot.lane.b32.xlu0 %v1765, 112
      %v1837 = vpop.permute.xlu0 %1836
      %1838 = vrot.lane.b32.xlu0 %v1767, 112
      %v1839 = vpop.permute.xlu0 %1838
      %1840 = vrot.lane.b32.xlu0 %v1769, 112
      %v1841 = vpop.permute.xlu0 %1840
      %1842 = vrot.lane.b32.xlu0 %v1771, 112
      %v1843 = vpop.permute.xlu0 %1842
      %1844 = vrot.lane.b32.xlu0 %v1773, 112
      %v1845 = vpop.permute.xlu0 %1844
      %1846 = vrot.lane.b32.xlu0 %v1775, 112
      %v1847 = vpop.permute.xlu0 %1846
      %1848 = vrot.lane.b32.xlu0 %v1777, 112
      %v1849 = vpop.permute.xlu0 %1848
      %1850 = vrot.lane.b32.xlu0 %v1779, 112
      %v1851 = vpop.permute.xlu0 %1850
      %1852 = vrot.lane.b32.xlu0 %v1781, 112
      %v1853 = vpop.permute.xlu0 %1852
      %1854 = vrot.lane.b32.xlu0 %v1783, 112
      %v1855 = vpop.permute.xlu0 %1854
      %1856 = vrot.lane.b32.xlu0 %v1785, 112
      %v1857 = vpop.permute.xlu0 %1856
      %1858 = vrot.lane.b32.xlu0 %v1787, 112
      %v1859 = vpop.permute.xlu0 %1858
      %1860 = vrot.lane.b32.xlu0 %v1789, 112
      %v1861 = vpop.permute.xlu0 %1860
      %1862 = vrot.lane.b32.xlu0 %v1791, 112
      %v1863 = vpop.permute.xlu0 %1862
      %1864 = vrot.lane.b32.xlu0 %v1793, 112
      %v1865 = vpop.permute.xlu0 %1864
      %1866 = vrot.lane.b32.xlu0 %v1795, 112
      %v1867 = vpop.permute.xlu0 %1866
      %1868 = vrot.lane.b32.xlu0 %v1797, 112
      %v1869 = vpop.permute.xlu0 %1868
      %1870 = vrot.lane.b32.xlu0 %v1799, 112
      %v1871 = vpop.permute.xlu0 %1870
      %1872 = vrot.lane.b32.xlu0 %v1801, 112
      %v1873 = vpop.permute.xlu0 %1872
      %1874 = vrot.lane.b32.xlu0 %v1803, 112
      %v1875 = vpop.permute.xlu0 %1874
      %1876 = vrot.lane.b32.xlu0 %v1805, 112
      %v1877 = vpop.permute.xlu0 %1876
      %1878 = vrot.lane.b32.xlu0 %v1807, 112
      %v1879 = vpop.permute.xlu0 %1878
      %1880 = vrot.lane.b32.xlu0 %v1809, 112
      %v1881 = vpop.permute.xlu0 %1880
      %1882 = vrot.lane.b32.xlu0 %v1811, 112
      %v1883 = vpop.permute.xlu0 %1882
      %1884 = vrot.lane.b32.xlu0 %v1813, 112
      %v1885 = vpop.permute.xlu0 %1884
      %1886 = vrot.lane.b32.xlu0 %v1815, 112
      %v1887 = vpop.permute.xlu0 %1886
      %1888 = vrot.lane.b32.xlu0 %v1817, 112
      %v1889 = vpop.permute.xlu0 %1888
      %1890 = vrot.lane.b32.xlu0 %v1819, 112
      %v1891 = vpop.permute.xlu0 %1890
      %v1928 = vadd.f32 %v1671, %v1821
      %v1929 = vadd.f32 %v1672, %v1823
      %v1930 = vadd.f32 %v1673, %v1825
      %v1931 = vadd.f32 %v1674, %v1827
      %v1932 = vadd.f32 %v1675, %v1829
      %v1933 = vadd.f32 %v1676, %v1831
      %v1934 = vadd.f32 %v1677, %v1833
      %v1935 = vadd.f32 %v1678, %v1835
      %v1936 = vadd.f32 %v1679, %v1837
      %v1937 = vadd.f32 %v1680, %v1839
      %v1938 = vadd.f32 %v1681, %v1841
      %v1939 = vadd.f32 %v1682, %v1843
      %v1940 = vadd.f32 %v1683, %v1845
      %v1941 = vadd.f32 %v1684, %v1847
      %v1942 = vadd.f32 %v1685, %v1849
      %v1943 = vadd.f32 %v1686, %v1851
      %v1944 = vadd.f32 %v1687, %v1853
      %v1945 = vadd.f32 %v1688, %v1855
      %v1946 = vadd.f32 %v1689, %v1857
      %v1947 = vadd.f32 %v1690, %v1859
      %v1948 = vadd.f32 %v1691, %v1861
      %v1949 = vadd.f32 %v1692, %v1863
      %v1950 = vadd.f32 %v1693, %v1865
      %v1951 = vadd.f32 %v1694, %v1867
      %v1952 = vadd.f32 %v1695, %v1869
      %v1953 = vadd.f32 %v1696, %v1871
      %v1954 = vadd.f32 %v1697, %v1873
      %v1955 = vadd.f32 %v1698, %v1875
      %v1956 = vadd.f32 %v1699, %v1877
      %v1957 = vadd.f32 %v1700, %v1879
      %v1958 = vadd.f32 %v1701, %v1881
      %v1959 = vadd.f32 %v1702, %v1883
      %v1960 = vadd.f32 %v1703, %v1885
      %v1961 = vadd.f32 %v1704, %v1887
      %v1962 = vadd.f32 %v1705, %v1889
      %v1963 = vadd.f32 %v1706, %v1891
      %v1964 = vld [vmem:[#allocation2] sm:$0xfc]
      %v1965 = vld [vmem:[#allocation2 + $0x240] sm:$0x3]
      %vm1968 = vcmask 1045504
      %v1969 = vrot.slane %v1964, 2
      %v1970 = vrot.slane %v1636, 2
      %v1971 = vsel %vm1968, %v1969, %v1970
      %v1972 = vrot.slane %v1637, 2
      %v1973 = vsel %vm1968, %v1970, %v1972
      %v1974 = vrot.slane %v1638, 2
      %v1975 = vsel %vm1968, %v1972, %v1974
      %v1976 = vrot.slane %v1639, 2
      %v1977 = vsel %vm1968, %v1974, %v1976
      %v1978 = vrot.slane %v1640, 2
      %v1979 = vsel %vm1968, %v1976, %v1978
      %v1980 = vrot.slane %v1641, 2
      %v1981 = vsel %vm1968, %v1978, %v1980
      %v1982 = vrot.slane %v1642, 2
      %v1983 = vsel %vm1968, %v1980, %v1982
      %v1984 = vrot.slane %v1643, 2
      %v1985 = vsel %vm1968, %v1982, %v1984
      %v1986 = vrot.slane %v1644, 2
      %v1987 = vsel %vm1968, %v1984, %v1986
      %v1988 = vrot.slane %v1645, 2
      %v1989 = vsel %vm1968, %v1986, %v1988
      %v1990 = vrot.slane %v1646, 2
      %v1991 = vsel %vm1968, %v1988, %v1990
      %v1992 = vrot.slane %v1647, 2
      %v1993 = vsel %vm1968, %v1990, %v1992
      %v1994 = vrot.slane %v1648, 2
      %v1995 = vsel %vm1968, %v1992, %v1994
      %v1996 = vrot.slane %v1649, 2
      %v1997 = vsel %vm1968, %v1994, %v1996
      %v1998 = vrot.slane %v1650, 2
      %v1999 = vsel %vm1968, %v1996, %v1998
      %v2000 = vrot.slane %v1651, 2
      %v2001 = vsel %vm1968, %v1998, %v2000
      %v2002 = vrot.slane %v1652, 2
      %v2003 = vsel %vm1968, %v2000, %v2002
      %v2004 = vrot.slane %v1653, 2
      %v2005 = vsel %vm1968, %v2002, %v2004
      %v2006 = vrot.slane %v1654, 2
      %v2007 = vsel %vm1968, %v2004, %v2006
      %v2008 = vrot.slane %v1655, 2
      %v2009 = vsel %vm1968, %v2006, %v2008
      %v2010 = vrot.slane %v1656, 2
      %v2011 = vsel %vm1968, %v2008, %v2010
      %v2012 = vrot.slane %v1657, 2
      %v2013 = vsel %vm1968, %v2010, %v2012
      %v2014 = vrot.slane %v1658, 2
      %v2015 = vsel %vm1968, %v2012, %v2014
      %v2016 = vrot.slane %v1659, 2
      %v2017 = vsel %vm1968, %v2014, %v2016
      %v2018 = vrot.slane %v1660, 2
      %v2019 = vsel %vm1968, %v2016, %v2018
      %v2020 = vrot.slane %v1661, 2
      %v2021 = vsel %vm1968, %v2018, %v2020
      %v2022 = vrot.slane %v1662, 2
      %v2023 = vsel %vm1968, %v2020, %v2022
      %v2024 = vrot.slane %v1663, 2
      %v2025 = vsel %vm1968, %v2022, %v2024
      %v2026 = vrot.slane %v1664, 2
      %v2027 = vsel %vm1968, %v2024, %v2026
      %v2028 = vrot.slane %v1665, 2
      %v2029 = vsel %vm1968, %v2026, %v2028
      %v2030 = vrot.slane %v1666, 2
      %v2031 = vsel %vm1968, %v2028, %v2030
      %v2032 = vrot.slane %v1667, 2
      %v2033 = vsel %vm1968, %v2030, %v2032
      %v2034 = vrot.slane %v1668, 2
      %v2035 = vsel %vm1968, %v2032, %v2034
      %v2036 = vrot.slane %v1669, 2
      %v2037 = vsel %vm1968, %v2034, %v2036
      %v2038 = vrot.slane %v1670, 2
      %v2039 = vsel %vm1968, %v2036, %v2038
      %v2040 = vrot.slane %v1965, 2
      %v2041 = vsel %vm1968, %v2038, %v2040
      %2042 = vrot.lane.b32.xlu0 %v1971, 96
      %v2043 = vpop.permute.xlu0 %2042
      %2044 = vrot.lane.b32.xlu0 %v1973, 96
      %v2045 = vpop.permute.xlu0 %2044
      %2046 = vrot.lane.b32.xlu0 %v1975, 96
      %v2047 = vpop.permute.xlu0 %2046
      %2048 = vrot.lane.b32.xlu0 %v1977, 96
      %v2049 = vpop.permute.xlu0 %2048
      %2050 = vrot.lane.b32.xlu0 %v1979, 96
      %v2051 = vpop.permute.xlu0 %2050
      %2052 = vrot.lane.b32.xlu0 %v1981, 96
      %v2053 = vpop.permute.xlu0 %2052
      %2054 = vrot.lane.b32.xlu0 %v1983, 96
      %v2055 = vpop.permute.xlu0 %2054
      %2056 = vrot.lane.b32.xlu0 %v1985, 96
      %v2057 = vpop.permute.xlu0 %2056
      %2058 = vrot.lane.b32.xlu0 %v1987, 96
      %v2059 = vpop.permute.xlu0 %2058
      %2060 = vrot.lane.b32.xlu0 %v1989, 96
      %v2061 = vpop.permute.xlu0 %2060
      %2062 = vrot.lane.b32.xlu0 %v1991, 96
      %v2063 = vpop.permute.xlu0 %2062
      %2064 = vrot.lane.b32.xlu0 %v1993, 96
      %v2065 = vpop.permute.xlu0 %2064
      %2066 = vrot.lane.b32.xlu0 %v1995, 96
      %v2067 = vpop.permute.xlu0 %2066
      %2068 = vrot.lane.b32.xlu0 %v1997, 96
      %v2069 = vpop.permute.xlu0 %2068
      %2070 = vrot.lane.b32.xlu0 %v1999, 96
      %v2071 = vpop.permute.xlu0 %2070
      %2072 = vrot.lane.b32.xlu0 %v2001, 96
      %v2073 = vpop.permute.xlu0 %2072
      %2074 = vrot.lane.b32.xlu0 %v2003, 96
      %v2075 = vpop.permute.xlu0 %2074
      %2076 = vrot.lane.b32.xlu0 %v2005, 96
      %v2077 = vpop.permute.xlu0 %2076
      %2078 = vrot.lane.b32.xlu0 %v2007, 96
      %v2079 = vpop.permute.xlu0 %2078
      %2080 = vrot.lane.b32.xlu0 %v2009, 96
      %v2081 = vpop.permute.xlu0 %2080
      %2082 = vrot.lane.b32.xlu0 %v2011, 96
      %v2083 = vpop.permute.xlu0 %2082
      %2084 = vrot.lane.b32.xlu0 %v2013, 96
      %v2085 = vpop.permute.xlu0 %2084
      %2086 = vrot.lane.b32.xlu0 %v2015, 96
      %v2087 = vpop.permute.xlu0 %2086
      %2088 = vrot.lane.b32.xlu0 %v2017, 96
      %v2089 = vpop.permute.xlu0 %2088
      %2090 = vrot.lane.b32.xlu0 %v2019, 96
      %v2091 = vpop.permute.xlu0 %2090
      %2092 = vrot.lane.b32.xlu0 %v2021, 96
      %v2093 = vpop.permute.xlu0 %2092
      %2094 = vrot.lane.b32.xlu0 %v2023, 96
      %v2095 = vpop.permute.xlu0 %2094
      %2096 = vrot.lane.b32.xlu0 %v2025, 96
      %v2097 = vpop.permute.xlu0 %2096
      %2098 = vrot.lane.b32.xlu0 %v2027, 96
      %v2099 = vpop.permute.xlu0 %2098
      %2100 = vrot.lane.b32.xlu0 %v2029, 96
      %v2101 = vpop.permute.xlu0 %2100
      %2102 = vrot.lane.b32.xlu0 %v2031, 96
      %v2103 = vpop.permute.xlu0 %2102
      %2104 = vrot.lane.b32.xlu0 %v2033, 96
      %v2105 = vpop.permute.xlu0 %2104
      %2106 = vrot.lane.b32.xlu0 %v2035, 96
      %v2107 = vpop.permute.xlu0 %2106
      %2108 = vrot.lane.b32.xlu0 %v2037, 96
      %v2109 = vpop.permute.xlu0 %2108
      %2110 = vrot.lane.b32.xlu0 %v2039, 96
      %v2111 = vpop.permute.xlu0 %2110
      %2112 = vrot.lane.b32.xlu0 %v2041, 96
      %v2113 = vpop.permute.xlu0 %2112
      %v2150 = vadd.f32 %v1928, %v2043
      %v2151 = vadd.f32 %v1929, %v2045
      %v2152 = vadd.f32 %v1930, %v2047
      %v2153 = vadd.f32 %v1931, %v2049
      %v2154 = vadd.f32 %v1932, %v2051
      %v2155 = vadd.f32 %v1933, %v2053
      %v2156 = vadd.f32 %v1934, %v2055
      %v2157 = vadd.f32 %v1935, %v2057
      %v2158 = vadd.f32 %v1936, %v2059
      %v2159 = vadd.f32 %v1937, %v2061
      %v2160 = vadd.f32 %v1938, %v2063
      %v2161 = vadd.f32 %v1939, %v2065
      %v2162 = vadd.f32 %v1940, %v2067
      %v2163 = vadd.f32 %v1941, %v2069
      %v2164 = vadd.f32 %v1942, %v2071
      %v2165 = vadd.f32 %v1943, %v2073
      %v2166 = vadd.f32 %v1944, %v2075
      %v2167 = vadd.f32 %v1945, %v2077
      %v2168 = vadd.f32 %v1946, %v2079
      %v2169 = vadd.f32 %v1947, %v2081
      %v2170 = vadd.f32 %v1948, %v2083
      %v2171 = vadd.f32 %v1949, %v2085
      %v2172 = vadd.f32 %v1950, %v2087
      %v2173 = vadd.f32 %v1951, %v2089
      %v2174 = vadd.f32 %v1952, %v2091
      %v2175 = vadd.f32 %v1953, %v2093
      %v2176 = vadd.f32 %v1954, %v2095
      %v2177 = vadd.f32 %v1955, %v2097
      %v2178 = vadd.f32 %v1956, %v2099
      %v2179 = vadd.f32 %v1957, %v2101
      %v2180 = vadd.f32 %v1958, %v2103
      %v2181 = vadd.f32 %v1959, %v2105
      %v2182 = vadd.f32 %v1960, %v2107
      %v2183 = vadd.f32 %v1961, %v2109
      %v2184 = vadd.f32 %v1962, %v2111
      %v2185 = vadd.f32 %v1963, %v2113
      %v2186 = vld [vmem:[#allocation2 + $0x20] sm:$0xfc]
      %v2187 = vld [vmem:[#allocation2 + $0x240] sm:$0xff]
      %v2188 = vld [vmem:[#allocation2 + $0x250] sm:$0xff]
      %v2189 = vld [vmem:[#allocation2 + $0x260] sm:$0x3]
      %v2194 = vrot.slane %v2186, 2
      %v2195 = vsel %vm1968, %v2194, %v1974
      %v2196 = vrot.slane %v2187, 2
      %v2197 = vsel %vm1968, %v2038, %v2196
      %v2198 = vrot.slane %v2188, 2
      %v2199 = vsel %vm1968, %v2196, %v2198
      %v2200 = vrot.slane %v2189, 2
      %v2201 = vsel %vm1968, %v2198, %v2200
      %2202 = vrot.lane.b32.xlu0 %v2195, 80
      %v2203 = vpop.permute.xlu0 %2202
      %2204 = vrot.lane.b32.xlu0 %v1977, 80
      %v2205 = vpop.permute.xlu0 %2204
      %2206 = vrot.lane.b32.xlu0 %v1979, 80
      %v2207 = vpop.permute.xlu0 %2206
      %2208 = vrot.lane.b32.xlu0 %v1981, 80
      %v2209 = vpop.permute.xlu0 %2208
      %2210 = vrot.lane.b32.xlu0 %v1983, 80
      %v2211 = vpop.permute.xlu0 %2210
      %2212 = vrot.lane.b32.xlu0 %v1985, 80
      %v2213 = vpop.permute.xlu0 %2212
      %2214 = vrot.lane.b32.xlu0 %v1987, 80
      %v2215 = vpop.permute.xlu0 %2214
      %2216 = vrot.lane.b32.xlu0 %v1989, 80
      %v2217 = vpop.permute.xlu0 %2216
      %2218 = vrot.lane.b32.xlu0 %v1991, 80
      %v2219 = vpop.permute.xlu0 %2218
      %2220 = vrot.lane.b32.xlu0 %v1993, 80
      %v2221 = vpop.permute.xlu0 %2220
      %2222 = vrot.lane.b32.xlu0 %v1995, 80
      %v2223 = vpop.permute.xlu0 %2222
      %2224 = vrot.lane.b32.xlu0 %v1997, 80
      %v2225 = vpop.permute.xlu0 %2224
      %2226 = vrot.lane.b32.xlu0 %v1999, 80
      %v2227 = vpop.permute.xlu0 %2226
      %2228 = vrot.lane.b32.xlu0 %v2001, 80
      %v2229 = vpop.permute.xlu0 %2228
      %2230 = vrot.lane.b32.xlu0 %v2003, 80
      %v2231 = vpop.permute.xlu0 %2230
      %2232 = vrot.lane.b32.xlu0 %v2005, 80
      %v2233 = vpop.permute.xlu0 %2232
      %2234 = vrot.lane.b32.xlu0 %v2007, 80
      %v2235 = vpop.permute.xlu0 %2234
      %2236 = vrot.lane.b32.xlu0 %v2009, 80
      %v2237 = vpop.permute.xlu0 %2236
      %2238 = vrot.lane.b32.xlu0 %v2011, 80
      %v2239 = vpop.permute.xlu0 %2238
      %2240 = vrot.lane.b32.xlu0 %v2013, 80
      %v2241 = vpop.permute.xlu0 %2240
      %2242 = vrot.lane.b32.xlu0 %v2015, 80
      %v2243 = vpop.permute.xlu0 %2242
      %2244 = vrot.lane.b32.xlu0 %v2017, 80
      %v2245 = vpop.permute.xlu0 %2244
      %2246 = vrot.lane.b32.xlu0 %v2019, 80
      %v2247 = vpop.permute.xlu0 %2246
      %2248 = vrot.lane.b32.xlu0 %v2021, 80
      %v2249 = vpop.permute.xlu0 %2248
      %2250 = vrot.lane.b32.xlu0 %v2023, 80
      %v2251 = vpop.permute.xlu0 %2250
      %2252 = vrot.lane.b32.xlu0 %v2025, 80
      %v2253 = vpop.permute.xlu0 %2252
      %2254 = vrot.lane.b32.xlu0 %v2027, 80
      %v2255 = vpop.permute.xlu0 %2254
      %2256 = vrot.lane.b32.xlu0 %v2029, 80
      %v2257 = vpop.permute.xlu0 %2256
      %2258 = vrot.lane.b32.xlu0 %v2031, 80
      %v2259 = vpop.permute.xlu0 %2258
      %2260 = vrot.lane.b32.xlu0 %v2033, 80
      %v2261 = vpop.permute.xlu0 %2260
      %2262 = vrot.lane.b32.xlu0 %v2035, 80
      %v2263 = vpop.permute.xlu0 %2262
      %2264 = vrot.lane.b32.xlu0 %v2037, 80
      %v2265 = vpop.permute.xlu0 %2264
      %2266 = vrot.lane.b32.xlu0 %v2039, 80
      %v2267 = vpop.permute.xlu0 %2266
      %2268 = vrot.lane.b32.xlu0 %v2197, 80
      %v2269 = vpop.permute.xlu0 %2268
      %2270 = vrot.lane.b32.xlu0 %v2199, 80
      %v2271 = vpop.permute.xlu0 %2270
      %2272 = vrot.lane.b32.xlu0 %v2201, 80
      %v2273 = vpop.permute.xlu0 %2272
      %v2310 = vadd.f32 %v2150, %v2203
      %v2311 = vadd.f32 %v2151, %v2205
      %v2312 = vadd.f32 %v2152, %v2207
      %v2313 = vadd.f32 %v2153, %v2209
      %v2314 = vadd.f32 %v2154, %v2211
      %v2315 = vadd.f32 %v2155, %v2213
      %v2316 = vadd.f32 %v2156, %v2215
      %v2317 = vadd.f32 %v2157, %v2217
      %v2318 = vadd.f32 %v2158, %v2219
      %v2319 = vadd.f32 %v2159, %v2221
      %v2320 = vadd.f32 %v2160, %v2223
      %v2321 = vadd.f32 %v2161, %v2225
      %v2322 = vadd.f32 %v2162, %v2227
      %v2323 = vadd.f32 %v2163, %v2229
      %v2324 = vadd.f32 %v2164, %v2231
      %v2325 = vadd.f32 %v2165, %v2233
      %v2326 = vadd.f32 %v2166, %v2235
      %v2327 = vadd.f32 %v2167, %v2237
      %v2328 = vadd.f32 %v2168, %v2239
      %v2329 = vadd.f32 %v2169, %v2241
      %v2330 = vadd.f32 %v2170, %v2243
      %v2331 = vadd.f32 %v2171, %v2245
      %v2332 = vadd.f32 %v2172, %v2247
      %v2333 = vadd.f32 %v2173, %v2249
      %v2334 = vadd.f32 %v2174, %v2251
      %v2335 = vadd.f32 %v2175, %v2253
      %v2336 = vadd.f32 %v2176, %v2255
      %v2337 = vadd.f32 %v2177, %v2257
      %v2338 = vadd.f32 %v2178, %v2259
      %v2339 = vadd.f32 %v2179, %v2261
      %v2340 = vadd.f32 %v2180, %v2263
      %v2341 = vadd.f32 %v2181, %v2265
      %v2342 = vadd.f32 %v2182, %v2267
      %v2343 = vadd.f32 %v2183, %v2269
      %v2344 = vadd.f32 %v2184, %v2271
      %v2345 = vadd.f32 %v2185, %v2273
      %v2346 = vld [vmem:[#allocation2 + $0x20] sm:$0xf8]
      %v2347 = vld [vmem:[#allocation2 + $0x260] sm:$0x7]
      %v2350 = vrot.slane %v2346, 3
      %v2351 = vrot.slane %v1638, 3
      %v2352 = vsel %vm1031, %v2350, %v2351
      %v2353 = vrot.slane %v1639, 3
      %v2354 = vsel %vm1031, %v2351, %v2353
      %v2355 = vrot.slane %v1640, 3
      %v2356 = vsel %vm1031, %v2353, %v2355
      %v2357 = vrot.slane %v1641, 3
      %v2358 = vsel %vm1031, %v2355, %v2357
      %v2359 = vrot.slane %v1642, 3
      %v2360 = vsel %vm1031, %v2357, %v2359
      %v2361 = vrot.slane %v1643, 3
      %v2362 = vsel %vm1031, %v2359, %v2361
      %v2363 = vrot.slane %v1644, 3
      %v2364 = vsel %vm1031, %v2361, %v2363
      %v2365 = vrot.slane %v1645, 3
      %v2366 = vsel %vm1031, %v2363, %v2365
      %v2367 = vrot.slane %v1646, 3
      %v2368 = vsel %vm1031, %v2365, %v2367
      %v2369 = vrot.slane %v1647, 3
      %v2370 = vsel %vm1031, %v2367, %v2369
      %v2371 = vrot.slane %v1648, 3
      %v2372 = vsel %vm1031, %v2369, %v2371
      %v2373 = vrot.slane %v1649, 3
      %v2374 = vsel %vm1031, %v2371, %v2373
      %v2375 = vrot.slane %v1650, 3
      %v2376 = vsel %vm1031, %v2373, %v2375
      %v2377 = vrot.slane %v1651, 3
      %v2378 = vsel %vm1031, %v2375, %v2377
      %v2379 = vrot.slane %v1652, 3
      %v2380 = vsel %vm1031, %v2377, %v2379
      %v2381 = vrot.slane %v1653, 3
      %v2382 = vsel %vm1031, %v2379, %v2381
      %v2383 = vrot.slane %v1654, 3
      %v2384 = vsel %vm1031, %v2381, %v2383
      %v2385 = vrot.slane %v1655, 3
      %v2386 = vsel %vm1031, %v2383, %v2385
      %v2387 = vrot.slane %v1656, 3
      %v2388 = vsel %vm1031, %v2385, %v2387
      %v2389 = vrot.slane %v1657, 3
      %v2390 = vsel %vm1031, %v2387, %v2389
      %v2391 = vrot.slane %v1658, 3
      %v2392 = vsel %vm1031, %v2389, %v2391
      %v2393 = vrot.slane %v1659, 3
      %v2394 = vsel %vm1031, %v2391, %v2393
      %v2395 = vrot.slane %v1660, 3
      %v2396 = vsel %vm1031, %v2393, %v2395
      %v2397 = vrot.slane %v1661, 3
      %v2398 = vsel %vm1031, %v2395, %v2397
      %v2399 = vrot.slane %v1662, 3
      %v2400 = vsel %vm1031, %v2397, %v2399
      %v2401 = vrot.slane %v1663, 3
      %v2402 = vsel %vm1031, %v2399, %v2401
      %v2403 = vrot.slane %v1664, 3
      %v2404 = vsel %vm1031, %v2401, %v2403
      %v2405 = vrot.slane %v1665, 3
      %v2406 = vsel %vm1031, %v2403, %v2405
      %v2407 = vrot.slane %v1666, 3
      %v2408 = vsel %vm1031, %v2405, %v2407
      %v2409 = vrot.slane %v1667, 3
      %v2410 = vsel %vm1031, %v2407, %v2409
      %v2411 = vrot.slane %v1668, 3
      %v2412 = vsel %vm1031, %v2409, %v2411
      %v2413 = vrot.slane %v1669, 3
      %v2414 = vsel %vm1031, %v2411, %v2413
      %v2415 = vrot.slane %v1670, 3
      %v2416 = vsel %vm1031, %v2413, %v2415
      %v2417 = vrot.slane %v2187, 3
      %v2418 = vsel %vm1031, %v2415, %v2417
      %v2419 = vrot.slane %v2188, 3
      %v2420 = vsel %vm1031, %v2417, %v2419
      %v2421 = vrot.slane %v2347, 3
      %v2422 = vsel %vm1031, %v2419, %v2421
      %2423 = vrot.lane.b32.xlu0 %v2352, 64
      %v2424 = vpop.permute.xlu0 %2423
      %2425 = vrot.lane.b32.xlu0 %v2354, 64
      %v2426 = vpop.permute.xlu0 %2425
      %2427 = vrot.lane.b32.xlu0 %v2356, 64
      %v2428 = vpop.permute.xlu0 %2427
      %2429 = vrot.lane.b32.xlu0 %v2358, 64
      %v2430 = vpop.permute.xlu0 %2429
      %2431 = vrot.lane.b32.xlu0 %v2360, 64
      %v2432 = vpop.permute.xlu0 %2431
      %2433 = vrot.lane.b32.xlu0 %v2362, 64
      %v2434 = vpop.permute.xlu0 %2433
      %2435 = vrot.lane.b32.xlu0 %v2364, 64
      %v2436 = vpop.permute.xlu0 %2435
      %2437 = vrot.lane.b32.xlu0 %v2366, 64
      %v2438 = vpop.permute.xlu0 %2437
      %2439 = vrot.lane.b32.xlu0 %v2368, 64
      %v2440 = vpop.permute.xlu0 %2439
      %2441 = vrot.lane.b32.xlu0 %v2370, 64
      %v2442 = vpop.permute.xlu0 %2441
      %2443 = vrot.lane.b32.xlu0 %v2372, 64
      %v2444 = vpop.permute.xlu0 %2443
      %2445 = vrot.lane.b32.xlu0 %v2374, 64
      %v2446 = vpop.permute.xlu0 %2445
      %2447 = vrot.lane.b32.xlu0 %v2376, 64
      %v2448 = vpop.permute.xlu0 %2447
      %2449 = vrot.lane.b32.xlu0 %v2378, 64
      %v2450 = vpop.permute.xlu0 %2449
      %2451 = vrot.lane.b32.xlu0 %v2380, 64
      %v2452 = vpop.permute.xlu0 %2451
      %2453 = vrot.lane.b32.xlu0 %v2382, 64
      %v2454 = vpop.permute.xlu0 %2453
      %2455 = vrot.lane.b32.xlu0 %v2384, 64
      %v2456 = vpop.permute.xlu0 %2455
      %2457 = vrot.lane.b32.xlu0 %v2386, 64
      %v2458 = vpop.permute.xlu0 %2457
      %2459 = vrot.lane.b32.xlu0 %v2388, 64
      %v2460 = vpop.permute.xlu0 %2459
      %2461 = vrot.lane.b32.xlu0 %v2390, 64
      %v2462 = vpop.permute.xlu0 %2461
      %2463 = vrot.lane.b32.xlu0 %v2392, 64
      %v2464 = vpop.permute.xlu0 %2463
      %2465 = vrot.lane.b32.xlu0 %v2394, 64
      %v2466 = vpop.permute.xlu0 %2465
      %2467 = vrot.lane.b32.xlu0 %v2396, 64
      %v2468 = vpop.permute.xlu0 %2467
      %2469 = vrot.lane.b32.xlu0 %v2398, 64
      %v2470 = vpop.permute.xlu0 %2469
      %2471 = vrot.lane.b32.xlu0 %v2400, 64
      %v2472 = vpop.permute.xlu0 %2471
      %2473 = vrot.lane.b32.xlu0 %v2402, 64
      %v2474 = vpop.permute.xlu0 %2473
      %2475 = vrot.lane.b32.xlu0 %v2404, 64
      %v2476 = vpop.permute.xlu0 %2475
      %2477 = vrot.lane.b32.xlu0 %v2406, 64
      %v2478 = vpop.permute.xlu0 %2477
      %2479 = vrot.lane.b32.xlu0 %v2408, 64
      %v2480 = vpop.permute.xlu0 %2479
      %2481 = vrot.lane.b32.xlu0 %v2410, 64
      %v2482 = vpop.permute.xlu0 %2481
      %2483 = vrot.lane.b32.xlu0 %v2412, 64
      %v2484 = vpop.permute.xlu0 %2483
      %2485 = vrot.lane.b32.xlu0 %v2414, 64
      %v2486 = vpop.permute.xlu0 %2485
      %2487 = vrot.lane.b32.xlu0 %v2416, 64
      %v2488 = vpop.permute.xlu0 %2487
      %2489 = vrot.lane.b32.xlu0 %v2418, 64
      %v2490 = vpop.permute.xlu0 %2489
      %2491 = vrot.lane.b32.xlu0 %v2420, 64
      %v2492 = vpop.permute.xlu0 %2491
      %2493 = vrot.lane.b32.xlu0 %v2422, 64
      %v2494 = vpop.permute.xlu0 %2493
      %v2531 = vadd.f32 %v2310, %v2424
      %v2532 = vadd.f32 %v2311, %v2426
      %v2533 = vadd.f32 %v2312, %v2428
      %v2534 = vadd.f32 %v2313, %v2430
      %v2535 = vadd.f32 %v2314, %v2432
      %v2536 = vadd.f32 %v2315, %v2434
      %v2537 = vadd.f32 %v2316, %v2436
      %v2538 = vadd.f32 %v2317, %v2438
      %v2539 = vadd.f32 %v2318, %v2440
      %v2540 = vadd.f32 %v2319, %v2442
      %v2541 = vadd.f32 %v2320, %v2444
      %v2542 = vadd.f32 %v2321, %v2446
      %v2543 = vadd.f32 %v2322, %v2448
      %v2544 = vadd.f32 %v2323, %v2450
      %v2545 = vadd.f32 %v2324, %v2452
      %v2546 = vadd.f32 %v2325, %v2454
      %v2547 = vadd.f32 %v2326, %v2456
      %v2548 = vadd.f32 %v2327, %v2458
      %v2549 = vadd.f32 %v2328, %v2460
      %v2550 = vadd.f32 %v2329, %v2462
      %v2551 = vadd.f32 %v2330, %v2464
      %v2552 = vadd.f32 %v2331, %v2466
      %v2553 = vadd.f32 %v2332, %v2468
      %v2554 = vadd.f32 %v2333, %v2470
      %v2555 = vadd.f32 %v2334, %v2472
      %v2556 = vadd.f32 %v2335, %v2474
      %v2557 = vadd.f32 %v2336, %v2476
      %v2558 = vadd.f32 %v2337, %v2478
      %v2559 = vadd.f32 %v2338, %v2480
      %v2560 = vadd.f32 %v2339, %v2482
      %v2561 = vadd.f32 %v2340, %v2484
      %v2562 = vadd.f32 %v2341, %v2486
      %v2563 = vadd.f32 %v2342, %v2488
      %v2564 = vadd.f32 %v2343, %v2490
      %v2565 = vadd.f32 %v2344, %v2492
      %v2566 = vadd.f32 %v2345, %v2494
      %v2567 = vld [vmem:[#allocation2 + $0x20] sm:$0xf0]
      %v2568 = vld [vmem:[#allocation2 + $0x260] sm:$0xf]
      %v2571 = vrot.slane %v2567, 4
      %v2572 = vrot.slane %v1638, 4
      %v2573 = vsel %vm1030, %v2571, %v2572
      %v2574 = vrot.slane %v1639, 4
      %v2575 = vsel %vm1030, %v2572, %v2574
      %v2576 = vrot.slane %v1640, 4
      %v2577 = vsel %vm1030, %v2574, %v2576
      %v2578 = vrot.slane %v1641, 4
      %v2579 = vsel %vm1030, %v2576, %v2578
      %v2580 = vrot.slane %v1642, 4
      %v2581 = vsel %vm1030, %v2578, %v2580
      %v2582 = vrot.slane %v1643, 4
      %v2583 = vsel %vm1030, %v2580, %v2582
      %v2584 = vrot.slane %v1644, 4
      %v2585 = vsel %vm1030, %v2582, %v2584
      %v2586 = vrot.slane %v1645, 4
      %v2587 = vsel %vm1030, %v2584, %v2586
      %v2588 = vrot.slane %v1646, 4
      %v2589 = vsel %vm1030, %v2586, %v2588
      %v2590 = vrot.slane %v1647, 4
      %v2591 = vsel %vm1030, %v2588, %v2590
      %v2592 = vrot.slane %v1648, 4
      %v2593 = vsel %vm1030, %v2590, %v2592
      %v2594 = vrot.slane %v1649, 4
      %v2595 = vsel %vm1030, %v2592, %v2594
      %v2596 = vrot.slane %v1650, 4
      %v2597 = vsel %vm1030, %v2594, %v2596
      %v2598 = vrot.slane %v1651, 4
      %v2599 = vsel %vm1030, %v2596, %v2598
      %v2600 = vrot.slane %v1652, 4
      %v2601 = vsel %vm1030, %v2598, %v2600
      %v2602 = vrot.slane %v1653, 4
      %v2603 = vsel %vm1030, %v2600, %v2602
      %v2604 = vrot.slane %v1654, 4
      %v2605 = vsel %vm1030, %v2602, %v2604
      %v2606 = vrot.slane %v1655, 4
      %v2607 = vsel %vm1030, %v2604, %v2606
      %v2608 = vrot.slane %v1656, 4
      %v2609 = vsel %vm1030, %v2606, %v2608
      %v2610 = vrot.slane %v1657, 4
      %v2611 = vsel %vm1030, %v2608, %v2610
      %v2612 = vrot.slane %v1658, 4
      %v2613 = vsel %vm1030, %v2610, %v2612
      %v2614 = vrot.slane %v1659, 4
      %v2615 = vsel %vm1030, %v2612, %v2614
      %v2616 = vrot.slane %v1660, 4
      %v2617 = vsel %vm1030, %v2614, %v2616
      %v2618 = vrot.slane %v1661, 4
      %v2619 = vsel %vm1030, %v2616, %v2618
      %v2620 = vrot.slane %v1662, 4
      %v2621 = vsel %vm1030, %v2618, %v2620
      %v2622 = vrot.slane %v1663, 4
      %v2623 = vsel %vm1030, %v2620, %v2622
      %v2624 = vrot.slane %v1664, 4
      %v2625 = vsel %vm1030, %v2622, %v2624
      %v2626 = vrot.slane %v1665, 4
      %v2627 = vsel %vm1030, %v2624, %v2626
      %v2628 = vrot.slane %v1666, 4
      %v2629 = vsel %vm1030, %v2626, %v2628
      %v2630 = vrot.slane %v1667, 4
      %v2631 = vsel %vm1030, %v2628, %v2630
      %v2632 = vrot.slane %v1668, 4
      %v2633 = vsel %vm1030, %v2630, %v2632
      %v2634 = vrot.slane %v1669, 4
      %v2635 = vsel %vm1030, %v2632, %v2634
      %v2636 = vrot.slane %v1670, 4
      %v2637 = vsel %vm1030, %v2634, %v2636
      %v2638 = vrot.slane %v2187, 4
      %v2639 = vsel %vm1030, %v2636, %v2638
      %v2640 = vrot.slane %v2188, 4
      %v2641 = vsel %vm1030, %v2638, %v2640
      %v2642 = vrot.slane %v2568, 4
      %v2643 = vsel %vm1030, %v2640, %v2642
      %2644 = vrot.lane.b32.xlu0 %v2573, 48
      %v2645 = vpop.permute.xlu0 %2644
      %2646 = vrot.lane.b32.xlu0 %v2575, 48
      %v2647 = vpop.permute.xlu0 %2646
      %2648 = vrot.lane.b32.xlu0 %v2577, 48
      %v2649 = vpop.permute.xlu0 %2648
      %2650 = vrot.lane.b32.xlu0 %v2579, 48
      %v2651 = vpop.permute.xlu0 %2650
      %2652 = vrot.lane.b32.xlu0 %v2581, 48
      %v2653 = vpop.permute.xlu0 %2652
      %2654 = vrot.lane.b32.xlu0 %v2583, 48
      %v2655 = vpop.permute.xlu0 %2654
      %2656 = vrot.lane.b32.xlu0 %v2585, 48
      %v2657 = vpop.permute.xlu0 %2656
      %2658 = vrot.lane.b32.xlu0 %v2587, 48
      %v2659 = vpop.permute.xlu0 %2658
      %2660 = vrot.lane.b32.xlu0 %v2589, 48
      %v2661 = vpop.permute.xlu0 %2660
      %2662 = vrot.lane.b32.xlu0 %v2591, 48
      %v2663 = vpop.permute.xlu0 %2662
      %2664 = vrot.lane.b32.xlu0 %v2593, 48
      %v2665 = vpop.permute.xlu0 %2664
      %2666 = vrot.lane.b32.xlu0 %v2595, 48
      %v2667 = vpop.permute.xlu0 %2666
      %2668 = vrot.lane.b32.xlu0 %v2597, 48
      %v2669 = vpop.permute.xlu0 %2668
      %2670 = vrot.lane.b32.xlu0 %v2599, 48
      %v2671 = vpop.permute.xlu0 %2670
      %2672 = vrot.lane.b32.xlu0 %v2601, 48
      %v2673 = vpop.permute.xlu0 %2672
      %2674 = vrot.lane.b32.xlu0 %v2603, 48
      %v2675 = vpop.permute.xlu0 %2674
      %2676 = vrot.lane.b32.xlu0 %v2605, 48
      %v2677 = vpop.permute.xlu0 %2676
      %2678 = vrot.lane.b32.xlu0 %v2607, 48
      %v2679 = vpop.permute.xlu0 %2678
      %2680 = vrot.lane.b32.xlu0 %v2609, 48
      %v2681 = vpop.permute.xlu0 %2680
      %2682 = vrot.lane.b32.xlu0 %v2611, 48
      %v2683 = vpop.permute.xlu0 %2682
      %2684 = vrot.lane.b32.xlu0 %v2613, 48
      %v2685 = vpop.permute.xlu0 %2684
      %2686 = vrot.lane.b32.xlu0 %v2615, 48
      %v2687 = vpop.permute.xlu0 %2686
      %2688 = vrot.lane.b32.xlu0 %v2617, 48
      %v2689 = vpop.permute.xlu0 %2688
      %2690 = vrot.lane.b32.xlu0 %v2619, 48
      %v2691 = vpop.permute.xlu0 %2690
      %2692 = vrot.lane.b32.xlu0 %v2621, 48
      %v2693 = vpop.permute.xlu0 %2692
      %2694 = vrot.lane.b32.xlu0 %v2623, 48
      %v2695 = vpop.permute.xlu0 %2694
      %2696 = vrot.lane.b32.xlu0 %v2625, 48
      %v2697 = vpop.permute.xlu0 %2696
      %2698 = vrot.lane.b32.xlu0 %v2627, 48
      %v2699 = vpop.permute.xlu0 %2698
      %2700 = vrot.lane.b32.xlu0 %v2629, 48
      %v2701 = vpop.permute.xlu0 %2700
      %2702 = vrot.lane.b32.xlu0 %v2631, 48
      %v2703 = vpop.permute.xlu0 %2702
      %2704 = vrot.lane.b32.xlu0 %v2633, 48
      %v2705 = vpop.permute.xlu0 %2704
      %2706 = vrot.lane.b32.xlu0 %v2635, 48
      %v2707 = vpop.permute.xlu0 %2706
      %2708 = vrot.lane.b32.xlu0 %v2637, 48
      %v2709 = vpop.permute.xlu0 %2708
      %2710 = vrot.lane.b32.xlu0 %v2639, 48
      %v2711 = vpop.permute.xlu0 %2710
      %2712 = vrot.lane.b32.xlu0 %v2641, 48
      %v2713 = vpop.permute.xlu0 %2712
      %2714 = vrot.lane.b32.xlu0 %v2643, 48
      %v2715 = vpop.permute.xlu0 %2714
      %v2752 = vadd.f32 %v2531, %v2645
      %v2753 = vadd.f32 %v2532, %v2647
      %v2754 = vadd.f32 %v2533, %v2649
      %v2755 = vadd.f32 %v2534, %v2651
      %v2756 = vadd.f32 %v2535, %v2653
      %v2757 = vadd.f32 %v2536, %v2655
      %v2758 = vadd.f32 %v2537, %v2657
      %v2759 = vadd.f32 %v2538, %v2659
      %v2760 = vadd.f32 %v2539, %v2661
      %v2761 = vadd.f32 %v2540, %v2663
      %v2762 = vadd.f32 %v2541, %v2665
      %v2763 = vadd.f32 %v2542, %v2667
      %v2764 = vadd.f32 %v2543, %v2669
      %v2765 = vadd.f32 %v2544, %v2671
      %v2766 = vadd.f32 %v2545, %v2673
      %v2767 = vadd.f32 %v2546, %v2675
      %v2768 = vadd.f32 %v2547, %v2677
      %v2769 = vadd.f32 %v2548, %v2679
      %v2770 = vadd.f32 %v2549, %v2681
      %v2771 = vadd.f32 %v2550, %v2683
      %v2772 = vadd.f32 %v2551, %v2685
      %v2773 = vadd.f32 %v2552, %v2687
      %v2774 = vadd.f32 %v2553, %v2689
      %v2775 = vadd.f32 %v2554, %v2691
      %v2776 = vadd.f32 %v2555, %v2693
      %v2777 = vadd.f32 %v2556, %v2695
      %v2778 = vadd.f32 %v2557, %v2697
      %v2779 = vadd.f32 %v2558, %v2699
      %v2780 = vadd.f32 %v2559, %v2701
      %v2781 = vadd.f32 %v2560, %v2703
      %v2782 = vadd.f32 %v2561, %v2705
      %v2783 = vadd.f32 %v2562, %v2707
      %v2784 = vadd.f32 %v2563, %v2709
      %v2785 = vadd.f32 %v2564, %v2711
      %v2786 = vadd.f32 %v2565, %v2713
      %v2787 = vadd.f32 %v2566, %v2715
      %v2788 = vld [vmem:[#allocation2 + $0x40] sm:$0xf0]
      %v2789 = vld [vmem:[#allocation2 + $0x260] sm:$0xff]
      %v2790 = vld [vmem:[#allocation2 + $0x270] sm:$0xff]
      %v2791 = vld [vmem:[#allocation2 + $0x280] sm:$0xf]
      %v2796 = vrot.slane %v2788, 4
      %v2797 = vsel %vm1030, %v2796, %v2576
      %v2798 = vrot.slane %v2789, 4
      %v2799 = vsel %vm1030, %v2640, %v2798
      %v2800 = vrot.slane %v2790, 4
      %v2801 = vsel %vm1030, %v2798, %v2800
      %v2802 = vrot.slane %v2791, 4
      %v2803 = vsel %vm1030, %v2800, %v2802
      %2804 = vrot.lane.b32.xlu0 %v2797, 32
      %v2805 = vpop.permute.xlu0 %2804
      %2806 = vrot.lane.b32.xlu0 %v2579, 32
      %v2807 = vpop.permute.xlu0 %2806
      %2808 = vrot.lane.b32.xlu0 %v2581, 32
      %v2809 = vpop.permute.xlu0 %2808
      %2810 = vrot.lane.b32.xlu0 %v2583, 32
      %v2811 = vpop.permute.xlu0 %2810
      %2812 = vrot.lane.b32.xlu0 %v2585, 32
      %v2813 = vpop.permute.xlu0 %2812
      %2814 = vrot.lane.b32.xlu0 %v2587, 32
      %v2815 = vpop.permute.xlu0 %2814
      %2816 = vrot.lane.b32.xlu0 %v2589, 32
      %v2817 = vpop.permute.xlu0 %2816
      %2818 = vrot.lane.b32.xlu0 %v2591, 32
      %v2819 = vpop.permute.xlu0 %2818
      %2820 = vrot.lane.b32.xlu0 %v2593, 32
      %v2821 = vpop.permute.xlu0 %2820
      %2822 = vrot.lane.b32.xlu0 %v2595, 32
      %v2823 = vpop.permute.xlu0 %2822
      %2824 = vrot.lane.b32.xlu0 %v2597, 32
      %v2825 = vpop.permute.xlu0 %2824
      %2826 = vrot.lane.b32.xlu0 %v2599, 32
      %v2827 = vpop.permute.xlu0 %2826
      %2828 = vrot.lane.b32.xlu0 %v2601, 32
      %v2829 = vpop.permute.xlu0 %2828
      %2830 = vrot.lane.b32.xlu0 %v2603, 32
      %v2831 = vpop.permute.xlu0 %2830
      %2832 = vrot.lane.b32.xlu0 %v2605, 32
      %v2833 = vpop.permute.xlu0 %2832
      %2834 = vrot.lane.b32.xlu0 %v2607, 32
      %v2835 = vpop.permute.xlu0 %2834
      %2836 = vrot.lane.b32.xlu0 %v2609, 32
      %v2837 = vpop.permute.xlu0 %2836
      %2838 = vrot.lane.b32.xlu0 %v2611, 32
      %v2839 = vpop.permute.xlu0 %2838
      %2840 = vrot.lane.b32.xlu0 %v2613, 32
      %v2841 = vpop.permute.xlu0 %2840
      %2842 = vrot.lane.b32.xlu0 %v2615, 32
      %v2843 = vpop.permute.xlu0 %2842
      %2844 = vrot.lane.b32.xlu0 %v2617, 32
      %v2845 = vpop.permute.xlu0 %2844
      %2846 = vrot.lane.b32.xlu0 %v2619, 32
      %v2847 = vpop.permute.xlu0 %2846
      %2848 = vrot.lane.b32.xlu0 %v2621, 32
      %v2849 = vpop.permute.xlu0 %2848
      %2850 = vrot.lane.b32.xlu0 %v2623, 32
      %v2851 = vpop.permute.xlu0 %2850
      %2852 = vrot.lane.b32.xlu0 %v2625, 32
      %v2853 = vpop.permute.xlu0 %2852
      %2854 = vrot.lane.b32.xlu0 %v2627, 32
      %v2855 = vpop.permute.xlu0 %2854
      %2856 = vrot.lane.b32.xlu0 %v2629, 32
      %v2857 = vpop.permute.xlu0 %2856
      %2858 = vrot.lane.b32.xlu0 %v2631, 32
      %v2859 = vpop.permute.xlu0 %2858
      %2860 = vrot.lane.b32.xlu0 %v2633, 32
      %v2861 = vpop.permute.xlu0 %2860
      %2862 = vrot.lane.b32.xlu0 %v2635, 32
      %v2863 = vpop.permute.xlu0 %2862
      %2864 = vrot.lane.b32.xlu0 %v2637, 32
      %v2865 = vpop.permute.xlu0 %2864
      %2866 = vrot.lane.b32.xlu0 %v2639, 32
      %v2867 = vpop.permute.xlu0 %2866
      %2868 = vrot.lane.b32.xlu0 %v2641, 32
      %v2869 = vpop.permute.xlu0 %2868
      %2870 = vrot.lane.b32.xlu0 %v2799, 32
      %v2871 = vpop.permute.xlu0 %2870
      %2872 = vrot.lane.b32.xlu0 %v2801, 32
      %v2873 = vpop.permute.xlu0 %2872
      %2874 = vrot.lane.b32.xlu0 %v2803, 32
      %v2875 = vpop.permute.xlu0 %2874
      %v2912 = vadd.f32 %v2752, %v2805
      %v2913 = vadd.f32 %v2753, %v2807
      %v2914 = vadd.f32 %v2754, %v2809
      %v2915 = vadd.f32 %v2755, %v2811
      %v2916 = vadd.f32 %v2756, %v2813
      %v2917 = vadd.f32 %v2757, %v2815
      %v2918 = vadd.f32 %v2758, %v2817
      %v2919 = vadd.f32 %v2759, %v2819
      %v2920 = vadd.f32 %v2760, %v2821
      %v2921 = vadd.f32 %v2761, %v2823
      %v2922 = vadd.f32 %v2762, %v2825
      %v2923 = vadd.f32 %v2763, %v2827
      %v2924 = vadd.f32 %v2764, %v2829
      %v2925 = vadd.f32 %v2765, %v2831
      %v2926 = vadd.f32 %v2766, %v2833
      %v2927 = vadd.f32 %v2767, %v2835
      %v2928 = vadd.f32 %v2768, %v2837
      %v2929 = vadd.f32 %v2769, %v2839
      %v2930 = vadd.f32 %v2770, %v2841
      %v2931 = vadd.f32 %v2771, %v2843
      %v2932 = vadd.f32 %v2772, %v2845
      %v2933 = vadd.f32 %v2773, %v2847
      %v2934 = vadd.f32 %v2774, %v2849
      %v2935 = vadd.f32 %v2775, %v2851
      %v2936 = vadd.f32 %v2776, %v2853
      %v2937 = vadd.f32 %v2777, %v2855
      %v2938 = vadd.f32 %v2778, %v2857
      %v2939 = vadd.f32 %v2779, %v2859
      %v2940 = vadd.f32 %v2780, %v2861
      %v2941 = vadd.f32 %v2781, %v2863
      %v2942 = vadd.f32 %v2782, %v2865
      %v2943 = vadd.f32 %v2783, %v2867
      %v2944 = vadd.f32 %v2784, %v2869
      %v2945 = vadd.f32 %v2785, %v2871
      %v2946 = vadd.f32 %v2786, %v2873
      %v2947 = vadd.f32 %v2787, %v2875
      %v2948 = vld [vmem:[#allocation2 + $0x40] sm:$0xe0]
      %v2949 = vld [vmem:[#allocation2 + $0x280] sm:$0x1f]
      %vm2952 = vcmask 1042432
      %v2953 = vrot.slane %v2948, 5
      %v2954 = vrot.slane %v1640, 5
      %v2955 = vsel %vm2952, %v2953, %v2954
      %v2956 = vrot.slane %v1641, 5
      %v2957 = vsel %vm2952, %v2954, %v2956
      %v2958 = vrot.slane %v1642, 5
      %v2959 = vsel %vm2952, %v2956, %v2958
      %v2960 = vrot.slane %v1643, 5
      %v2961 = vsel %vm2952, %v2958, %v2960
      %v2962 = vrot.slane %v1644, 5
      %v2963 = vsel %vm2952, %v2960, %v2962
      %v2964 = vrot.slane %v1645, 5
      %v2965 = vsel %vm2952, %v2962, %v2964
      %v2966 = vrot.slane %v1646, 5
      %v2967 = vsel %vm2952, %v2964, %v2966
      %v2968 = vrot.slane %v1647, 5
      %v2969 = vsel %vm2952, %v2966, %v2968
      %v2970 = vrot.slane %v1648, 5
      %v2971 = vsel %vm2952, %v2968, %v2970
      %v2972 = vrot.slane %v1649, 5
      %v2973 = vsel %vm2952, %v2970, %v2972
      %v2974 = vrot.slane %v1650, 5
      %v2975 = vsel %vm2952, %v2972, %v2974
      %v2976 = vrot.slane %v1651, 5
      %v2977 = vsel %vm2952, %v2974, %v2976
      %v2978 = vrot.slane %v1652, 5
      %v2979 = vsel %vm2952, %v2976, %v2978
      %v2980 = vrot.slane %v1653, 5
      %v2981 = vsel %vm2952, %v2978, %v2980
      %v2982 = vrot.slane %v1654, 5
      %v2983 = vsel %vm2952, %v2980, %v2982
      %v2984 = vrot.slane %v1655, 5
      %v2985 = vsel %vm2952, %v2982, %v2984
      %v2986 = vrot.slane %v1656, 5
      %v2987 = vsel %vm2952, %v2984, %v2986
      %v2988 = vrot.slane %v1657, 5
      %v2989 = vsel %vm2952, %v2986, %v2988
      %v2990 = vrot.slane %v1658, 5
      %v2991 = vsel %vm2952, %v2988, %v2990
      %v2992 = vrot.slane %v1659, 5
      %v2993 = vsel %vm2952, %v2990, %v2992
      %v2994 = vrot.slane %v1660, 5
      %v2995 = vsel %vm2952, %v2992, %v2994
      %v2996 = vrot.slane %v1661, 5
      %v2997 = vsel %vm2952, %v2994, %v2996
      %v2998 = vrot.slane %v1662, 5
      %v2999 = vsel %vm2952, %v2996, %v2998
      %v3000 = vrot.slane %v1663, 5
      %v3001 = vsel %vm2952, %v2998, %v3000
      %v3002 = vrot.slane %v1664, 5
      %v3003 = vsel %vm2952, %v3000, %v3002
      %v3004 = vrot.slane %v1665, 5
      %v3005 = vsel %vm2952, %v3002, %v3004
      %v3006 = vrot.slane %v1666, 5
      %v3007 = vsel %vm2952, %v3004, %v3006
      %v3008 = vrot.slane %v1667, 5
      %v3009 = vsel %vm2952, %v3006, %v3008
      %v3010 = vrot.slane %v1668, 5
      %v3011 = vsel %vm2952, %v3008, %v3010
      %v3012 = vrot.slane %v1669, 5
      %v3013 = vsel %vm2952, %v3010, %v3012
      %v3014 = vrot.slane %v1670, 5
      %v3015 = vsel %vm2952, %v3012, %v3014
      %v3016 = vrot.slane %v2187, 5
      %v3017 = vsel %vm2952, %v3014, %v3016
      %v3018 = vrot.slane %v2188, 5
      %v3019 = vsel %vm2952, %v3016, %v3018
      %v3020 = vrot.slane %v2789, 5
      %v3021 = vsel %vm2952, %v3018, %v3020
      %v3022 = vrot.slane %v2790, 5
      %v3023 = vsel %vm2952, %v3020, %v3022
      %v3024 = vrot.slane %v2949, 5
      %v3025 = vsel %vm2952, %v3022, %v3024
      %3026 = vrot.lane.b32.xlu0 %v2955, 16
      %v3027 = vpop.permute.xlu0 %3026
      %3028 = vrot.lane.b32.xlu0 %v2957, 16
      %v3029 = vpop.permute.xlu0 %3028
      %3030 = vrot.lane.b32.xlu0 %v2959, 16
      %v3031 = vpop.permute.xlu0 %3030
      %3032 = vrot.lane.b32.xlu0 %v2961, 16
      %v3033 = vpop.permute.xlu0 %3032
      %3034 = vrot.lane.b32.xlu0 %v2963, 16
      %v3035 = vpop.permute.xlu0 %3034
      %3036 = vrot.lane.b32.xlu0 %v2965, 16
      %v3037 = vpop.permute.xlu0 %3036
      %3038 = vrot.lane.b32.xlu0 %v2967, 16
      %v3039 = vpop.permute.xlu0 %3038
      %3040 = vrot.lane.b32.xlu0 %v2969, 16
      %v3041 = vpop.permute.xlu0 %3040
      %3042 = vrot.lane.b32.xlu0 %v2971, 16
      %v3043 = vpop.permute.xlu0 %3042
      %3044 = vrot.lane.b32.xlu0 %v2973, 16
      %v3045 = vpop.permute.xlu0 %3044
      %3046 = vrot.lane.b32.xlu0 %v2975, 16
      %v3047 = vpop.permute.xlu0 %3046
      %3048 = vrot.lane.b32.xlu0 %v2977, 16
      %v3049 = vpop.permute.xlu0 %3048
      %3050 = vrot.lane.b32.xlu0 %v2979, 16
      %v3051 = vpop.permute.xlu0 %3050
      %3052 = vrot.lane.b32.xlu0 %v2981, 16
      %v3053 = vpop.permute.xlu0 %3052
      %3054 = vrot.lane.b32.xlu0 %v2983, 16
      %v3055 = vpop.permute.xlu0 %3054
      %3056 = vrot.lane.b32.xlu0 %v2985, 16
      %v3057 = vpop.permute.xlu0 %3056
      %3058 = vrot.lane.b32.xlu0 %v2987, 16
      %v3059 = vpop.permute.xlu0 %3058
      %3060 = vrot.lane.b32.xlu0 %v2989, 16
      %v3061 = vpop.permute.xlu0 %3060
      %3062 = vrot.lane.b32.xlu0 %v2991, 16
      %v3063 = vpop.permute.xlu0 %3062
      %3064 = vrot.lane.b32.xlu0 %v2993, 16
      %v3065 = vpop.permute.xlu0 %3064
      %3066 = vrot.lane.b32.xlu0 %v2995, 16
      %v3067 = vpop.permute.xlu0 %3066
      %3068 = vrot.lane.b32.xlu0 %v2997, 16
      %v3069 = vpop.permute.xlu0 %3068
      %3070 = vrot.lane.b32.xlu0 %v2999, 16
      %v3071 = vpop.permute.xlu0 %3070
      %3072 = vrot.lane.b32.xlu0 %v3001, 16
      %v3073 = vpop.permute.xlu0 %3072
      %3074 = vrot.lane.b32.xlu0 %v3003, 16
      %v3075 = vpop.permute.xlu0 %3074
      %3076 = vrot.lane.b32.xlu0 %v3005, 16
      %v3077 = vpop.permute.xlu0 %3076
      %3078 = vrot.lane.b32.xlu0 %v3007, 16
      %v3079 = vpop.permute.xlu0 %3078
      %3080 = vrot.lane.b32.xlu0 %v3009, 16
      %v3081 = vpop.permute.xlu0 %3080
      %3082 = vrot.lane.b32.xlu0 %v3011, 16
      %v3083 = vpop.permute.xlu0 %3082
      %3084 = vrot.lane.b32.xlu0 %v3013, 16
      %v3085 = vpop.permute.xlu0 %3084
      %3086 = vrot.lane.b32.xlu0 %v3015, 16
      %v3087 = vpop.permute.xlu0 %3086
      %3088 = vrot.lane.b32.xlu0 %v3017, 16
      %v3089 = vpop.permute.xlu0 %3088
      %3090 = vrot.lane.b32.xlu0 %v3019, 16
      %v3091 = vpop.permute.xlu0 %3090
      %3092 = vrot.lane.b32.xlu0 %v3021, 16
      %v3093 = vpop.permute.xlu0 %3092
      %3094 = vrot.lane.b32.xlu0 %v3023, 16
      %v3095 = vpop.permute.xlu0 %3094
      %3096 = vrot.lane.b32.xlu0 %v3025, 16
      %v3097 = vpop.permute.xlu0 %3096
      %v3134 = vadd.f32 %v2912, %v3027
      %v3135 = vadd.f32 %v2913, %v3029
      %v3136 = vadd.f32 %v2914, %v3031
      %v3137 = vadd.f32 %v2915, %v3033
      %v3138 = vadd.f32 %v2916, %v3035
      %v3139 = vadd.f32 %v2917, %v3037
      %v3140 = vadd.f32 %v2918, %v3039
      %v3141 = vadd.f32 %v2919, %v3041
      %v3142 = vadd.f32 %v2920, %v3043
      %v3143 = vadd.f32 %v2921, %v3045
      %v3144 = vadd.f32 %v2922, %v3047
      %v3145 = vadd.f32 %v2923, %v3049
      %v3146 = vadd.f32 %v2924, %v3051
      %v3147 = vadd.f32 %v2925, %v3053
      %v3148 = vadd.f32 %v2926, %v3055
      %v3149 = vadd.f32 %v2927, %v3057
      %v3150 = vadd.f32 %v2928, %v3059
      %v3151 = vadd.f32 %v2929, %v3061
      %v3152 = vadd.f32 %v2930, %v3063
      %v3153 = vadd.f32 %v2931, %v3065
      %v3154 = vadd.f32 %v2932, %v3067
      %v3155 = vadd.f32 %v2933, %v3069
      %v3156 = vadd.f32 %v2934, %v3071
      %v3157 = vadd.f32 %v2935, %v3073
      %v3158 = vadd.f32 %v2936, %v3075
      %v3159 = vadd.f32 %v2937, %v3077
      %v3160 = vadd.f32 %v2938, %v3079
      %v3161 = vadd.f32 %v2939, %v3081
      %v3162 = vadd.f32 %v2940, %v3083
      %v3163 = vadd.f32 %v2941, %v3085
      %v3164 = vadd.f32 %v2942, %v3087
      %v3165 = vadd.f32 %v2943, %v3089
      %v3166 = vadd.f32 %v2944, %v3091
      %v3167 = vadd.f32 %v2945, %v3093
      %v3168 = vadd.f32 %v2946, %v3095
      %v3169 = vadd.f32 %v2947, %v3097
      %v3170 = vld [vmem:[#allocation2 + $0x48] sm:$0xc0]
      %v3171 = vld [vmem:[#allocation2 + $0x58] sm:$0xff]
      %v3172 = vld [vmem:[#allocation2 + $0x68] sm:$0xff]
      %v3173 = vld [vmem:[#allocation2 + $0x78] sm:$0xff]
      %v3174 = vld [vmem:[#allocation2 + $0x88] sm:$0xff]
      %v3175 = vld [vmem:[#allocation2 + $0x98] sm:$0xff]
      %v3176 = vld [vmem:[#allocation2 + $0xa8] sm:$0xff]
      %v3177 = vld [vmem:[#allocation2 + $0xb8] sm:$0xff]
      %v3178 = vld [vmem:[#allocation2 + $0xc8] sm:$0xff]
      %v3179 = vld [vmem:[#allocation2 + $0xd8] sm:$0xff]
      %v3180 = vld [vmem:[#allocation2 + $0xe8] sm:$0xff]
      %v3181 = vld [vmem:[#allocation2 + $0xf8] sm:$0xff]
      %v3182 = vld [vmem:[#allocation2 + $0x108] sm:$0xff]
      %v3183 = vld [vmem:[#allocation2 + $0x118] sm:$0xff]
      %v3184 = vld [vmem:[#allocation2 + $0x128] sm:$0xff]
      %v3185 = vld [vmem:[#allocation2 + $0x138] sm:$0xff]
      %v3186 = vld [vmem:[#allocation2 + $0x148] sm:$0xff]
      %v3187 = vld [vmem:[#allocation2 + $0x158] sm:$0xff]
      %v3188 = vld [vmem:[#allocation2 + $0x168] sm:$0xff]
      %v3189 = vld [vmem:[#allocation2 + $0x178] sm:$0xff]
      %v3190 = vld [vmem:[#allocation2 + $0x188] sm:$0xff]
      %v3191 = vld [vmem:[#allocation2 + $0x198] sm:$0xff]
      %v3192 = vld [vmem:[#allocation2 + $0x1a8] sm:$0xff]
      %v3193 = vld [vmem:[#allocation2 + $0x1b8] sm:$0xff]
      %v3194 = vld [vmem:[#allocation2 + $0x1c8] sm:$0xff]
      %v3195 = vld [vmem:[#allocation2 + $0x1d8] sm:$0xff]
      %v3196 = vld [vmem:[#allocation2 + $0x1e8] sm:$0xff]
      %v3197 = vld [vmem:[#allocation2 + $0x1f8] sm:$0xff]
      %v3198 = vld [vmem:[#allocation2 + $0x208] sm:$0xff]
      %v3199 = vld [vmem:[#allocation2 + $0x218] sm:$0xff]
      %v3200 = vld [vmem:[#allocation2 + $0x228] sm:$0xff]
      %v3201 = vld [vmem:[#allocation2 + $0x238] sm:$0xff]
      %v3202 = vld [vmem:[#allocation2 + $0x248] sm:$0xff]
      %v3203 = vld [vmem:[#allocation2 + $0x258] sm:$0xff]
      %v3204 = vld [vmem:[#allocation2 + $0x268] sm:$0xff]
      %v3205 = vld [vmem:[#allocation2 + $0x278] sm:$0xff]
      %v3206 = vld [vmem:[#allocation2 + $0x288] sm:$0x3f]
      %vm3244 = vcmask 1041408
      %v3245 = vrot.slane %v3170, 6
      %v3246 = vrot.slane %v3171, 6
      %v3247 = vsel %vm3244, %v3245, %v3246
      %v3248 = vrot.slane %v3172, 6
      %v3249 = vsel %vm3244, %v3246, %v3248
      %v3250 = vrot.slane %v3173, 6
      %v3251 = vsel %vm3244, %v3248, %v3250
      %v3252 = vrot.slane %v3174, 6
      %v3253 = vsel %vm3244, %v3250, %v3252
      %v3254 = vrot.slane %v3175, 6
      %v3255 = vsel %vm3244, %v3252, %v3254
      %v3256 = vrot.slane %v3176, 6
      %v3257 = vsel %vm3244, %v3254, %v3256
      %v3258 = vrot.slane %v3177, 6
      %v3259 = vsel %vm3244, %v3256, %v3258
      %v3260 = vrot.slane %v3178, 6
      %v3261 = vsel %vm3244, %v3258, %v3260
      %v3262 = vrot.slane %v3179, 6
      %v3263 = vsel %vm3244, %v3260, %v3262
      %v3264 = vrot.slane %v3180, 6
      %v3265 = vsel %vm3244, %v3262, %v3264
      %v3266 = vrot.slane %v3181, 6
      %v3267 = vsel %vm3244, %v3264, %v3266
      %v3268 = vrot.slane %v3182, 6
      %v3269 = vsel %vm3244, %v3266, %v3268
      %v3270 = vrot.slane %v3183, 6
      %v3271 = vsel %vm3244, %v3268, %v3270
      %v3272 = vrot.slane %v3184, 6
      %v3273 = vsel %vm3244, %v3270, %v3272
      %v3274 = vrot.slane %v3185, 6
      %v3275 = vsel %vm3244, %v3272, %v3274
      %v3276 = vrot.slane %v3186, 6
      %v3277 = vsel %vm3244, %v3274, %v3276
      %v3278 = vrot.slane %v3187, 6
      %v3279 = vsel %vm3244, %v3276, %v3278
      %v3280 = vrot.slane %v3188, 6
      %v3281 = vsel %vm3244, %v3278, %v3280
      %v3282 = vrot.slane %v3189, 6
      %v3283 = vsel %vm3244, %v3280, %v3282
      %v3284 = vrot.slane %v3190, 6
      %v3285 = vsel %vm3244, %v3282, %v3284
      %v3286 = vrot.slane %v3191, 6
      %v3287 = vsel %vm3244, %v3284, %v3286
      %v3288 = vrot.slane %v3192, 6
      %v3289 = vsel %vm3244, %v3286, %v3288
      %v3290 = vrot.slane %v3193, 6
      %v3291 = vsel %vm3244, %v3288, %v3290
      %v3292 = vrot.slane %v3194, 6
      %v3293 = vsel %vm3244, %v3290, %v3292
      %v3294 = vrot.slane %v3195, 6
      %v3295 = vsel %vm3244, %v3292, %v3294
      %v3296 = vrot.slane %v3196, 6
      %v3297 = vsel %vm3244, %v3294, %v3296
      %v3298 = vrot.slane %v3197, 6
      %v3299 = vsel %vm3244, %v3296, %v3298
      %v3300 = vrot.slane %v3198, 6
      %v3301 = vsel %vm3244, %v3298, %v3300
      %v3302 = vrot.slane %v3199, 6
      %v3303 = vsel %vm3244, %v3300, %v3302
      %v3304 = vrot.slane %v3200, 6
      %v3305 = vsel %vm3244, %v3302, %v3304
      %v3306 = vrot.slane %v3201, 6
      %v3307 = vsel %vm3244, %v3304, %v3306
      %v3308 = vrot.slane %v3202, 6
      %v3309 = vsel %vm3244, %v3306, %v3308
      %v3310 = vrot.slane %v3203, 6
      %v3311 = vsel %vm3244, %v3308, %v3310
      %v3312 = vrot.slane %v3204, 6
      %v3313 = vsel %vm3244, %v3310, %v3312
      %v3314 = vrot.slane %v3205, 6
      %v3315 = vsel %vm3244, %v3312, %v3314
      %v3316 = vrot.slane %v3206, 6
      %v3317 = vsel %vm3244, %v3314, %v3316
      %v3354 = vadd.f32 %v3134, %v3247
      %v3355 = vadd.f32 %v3135, %v3249
      %v3356 = vadd.f32 %v3136, %v3251
      %v3357 = vadd.f32 %v3137, %v3253
      %v3358 = vadd.f32 %v3138, %v3255
      %v3359 = vadd.f32 %v3139, %v3257
      %v3360 = vadd.f32 %v3140, %v3259
      %v3361 = vadd.f32 %v3141, %v3261
      %v3362 = vadd.f32 %v3142, %v3263
      %v3363 = vadd.f32 %v3143, %v3265
      %v3364 = vadd.f32 %v3144, %v3267
      %v3365 = vadd.f32 %v3145, %v3269
      %v3366 = vadd.f32 %v3146, %v3271
      %v3367 = vadd.f32 %v3147, %v3273
      %v3368 = vadd.f32 %v3148, %v3275
      %v3369 = vadd.f32 %v3149, %v3277
      %v3370 = vadd.f32 %v3150, %v3279
      %v3371 = vadd.f32 %v3151, %v3281
      %v3372 = vadd.f32 %v3152, %v3283
      %v3373 = vadd.f32 %v3153, %v3285
      %v3374 = vadd.f32 %v3154, %v3287
      %v3375 = vadd.f32 %v3155, %v3289
      %v3376 = vadd.f32 %v3156, %v3291
      %v3377 = vadd.f32 %v3157, %v3293
      %v3378 = vadd.f32 %v3158, %v3295
      %v3379 = vadd.f32 %v3159, %v3297
      %v3380 = vadd.f32 %v3160, %v3299
      %v3381 = vadd.f32 %v3161, %v3301
      %v3382 = vadd.f32 %v3162, %v3303
      %v3383 = vadd.f32 %v3163, %v3305
      %v3384 = vadd.f32 %v3164, %v3307
      %v3385 = vadd.f32 %v3165, %v3309
      %v3386 = vadd.f32 %v3166, %v3311
      %v3387 = vadd.f32 %v3167, %v3313
      %v3388 = vadd.f32 %v3168, %v3315
      %v3389 = vadd.f32 %v3169, %v3317
      %v3390 = vld [vmem:[%s3] sm:$0x1]
      %v3392 = vlaneseq
      %v3393 = vshrl.u32 %v3392, 7
      %v3394 = vsub.s32 0, %v3393
      %v3395 = vrot.slane %v3390, %v3394
      %v3397 = vadd.f32 %v3354, %v3395
      %v3398 = vadd.f32 %v3355, %v3395
      %v3399 = vadd.f32 %v3356, %v3395
      %v3400 = vadd.f32 %v3357, %v3395
      %v3401 = vadd.f32 %v3358, %v3395
      %v3402 = vadd.f32 %v3359, %v3395
      %v3403 = vadd.f32 %v3360, %v3395
      %v3404 = vadd.f32 %v3361, %v3395
      %v3405 = vadd.f32 %v3362, %v3395
      %v3406 = vadd.f32 %v3363, %v3395
      %v3407 = vadd.f32 %v3364, %v3395
      %v3408 = vadd.f32 %v3365, %v3395
      %v3409 = vadd.f32 %v3366, %v3395
      %v3410 = vadd.f32 %v3367, %v3395
      %v3411 = vadd.f32 %v3368, %v3395
      %v3412 = vadd.f32 %v3369, %v3395
      %v3413 = vadd.f32 %v3370, %v3395
      %v3414 = vadd.f32 %v3371, %v3395
      %v3415 = vadd.f32 %v3372, %v3395
      %v3416 = vadd.f32 %v3373, %v3395
      %v3417 = vadd.f32 %v3374, %v3395
      %v3418 = vadd.f32 %v3375, %v3395
      %v3419 = vadd.f32 %v3376, %v3395
      %v3420 = vadd.f32 %v3377, %v3395
      %v3421 = vadd.f32 %v3378, %v3395
      %v3422 = vadd.f32 %v3379, %v3395
      %v3423 = vadd.f32 %v3380, %v3395
      %v3424 = vadd.f32 %v3381, %v3395
      %v3425 = vadd.f32 %v3382, %v3395
      %v3426 = vadd.f32 %v3383, %v3395
      %v3427 = vadd.f32 %v3384, %v3395
      %v3428 = vadd.f32 %v3385, %v3395
      %v3429 = vadd.f32 %v3386, %v3395
      %v3430 = vadd.f32 %v3387, %v3395
      %v3431 = vadd.f32 %v3388, %v3395
      %v3432 = vadd.f32 %v3389, %v3395
      %vm3433 = vcmp.ge.f32.partialorder %v3397, 0.0
      %vm3434 = vcmp.ge.f32.partialorder %v3398, 0.0
      %vm3435 = vcmp.ge.f32.partialorder %v3399, 0.0
      %vm3436 = vcmp.ge.f32.partialorder %v3400, 0.0
      %vm3437 = vcmp.ge.f32.partialorder %v3401, 0.0
      %vm3438 = vcmp.ge.f32.partialorder %v3402, 0.0
      %vm3439 = vcmp.ge.f32.partialorder %v3403, 0.0
      %vm3440 = vcmp.ge.f32.partialorder %v3404, 0.0
      %vm3441 = vcmp.ge.f32.partialorder %v3405, 0.0
      %vm3442 = vcmp.ge.f32.partialorder %v3406, 0.0
      %vm3443 = vcmp.ge.f32.partialorder %v3407, 0.0
      %vm3444 = vcmp.ge.f32.partialorder %v3408, 0.0
      %vm3445 = vcmp.ge.f32.partialorder %v3409, 0.0
      %vm3446 = vcmp.ge.f32.partialorder %v3410, 0.0
      %vm3447 = vcmp.ge.f32.partialorder %v3411, 0.0
      %vm3448 = vcmp.ge.f32.partialorder %v3412, 0.0
      %vm3449 = vcmp.ge.f32.partialorder %v3413, 0.0
      %vm3450 = vcmp.ge.f32.partialorder %v3414, 0.0
      %vm3451 = vcmp.ge.f32.partialorder %v3415, 0.0
      %vm3452 = vcmp.ge.f32.partialorder %v3416, 0.0
      %vm3453 = vcmp.ge.f32.partialorder %v3417, 0.0
      %vm3454 = vcmp.ge.f32.partialorder %v3418, 0.0
      %vm3455 = vcmp.ge.f32.partialorder %v3419, 0.0
      %vm3456 = vcmp.ge.f32.partialorder %v3420, 0.0
      %vm3457 = vcmp.ge.f32.partialorder %v3421, 0.0
      %vm3458 = vcmp.ge.f32.partialorder %v3422, 0.0
      %vm3459 = vcmp.ge.f32.partialorder %v3423, 0.0
      %vm3460 = vcmp.ge.f32.partialorder %v3424, 0.0
      %vm3461 = vcmp.ge.f32.partialorder %v3425, 0.0
      %vm3462 = vcmp.ge.f32.partialorder %v3426, 0.0
      %vm3463 = vcmp.ge.f32.partialorder %v3427, 0.0
      %vm3464 = vcmp.ge.f32.partialorder %v3428, 0.0
      %vm3465 = vcmp.ge.f32.partialorder %v3429, 0.0
      %vm3466 = vcmp.ge.f32.partialorder %v3430, 0.0
      %vm3467 = vcmp.ge.f32.partialorder %v3431, 0.0
      %vm3468 = vcmp.ge.f32.partialorder %v3432, 0.0
      %v3469 = vmul.f32 %v3397, 0.01
      %v3470 = vmul.f32 %v3398, 0.01
      %v3471 = vmul.f32 %v3399, 0.01
      %v3472 = vmul.f32 %v3400, 0.01
      %v3473 = vmul.f32 %v3401, 0.01
      %v3474 = vmul.f32 %v3402, 0.01
      %v3475 = vmul.f32 %v3403, 0.01
      %v3476 = vmul.f32 %v3404, 0.01
      %v3477 = vmul.f32 %v3405, 0.01
      %v3478 = vmul.f32 %v3406, 0.01
      %v3479 = vmul.f32 %v3407, 0.01
      %v3480 = vmul.f32 %v3408, 0.01
      %v3481 = vmul.f32 %v3409, 0.01
      %v3482 = vmul.f32 %v3410, 0.01
      %v3483 = vmul.f32 %v3411, 0.01
      %v3484 = vmul.f32 %v3412, 0.01
      %v3485 = vmul.f32 %v3413, 0.01
      %v3486 = vmul.f32 %v3414, 0.01
      %v3487 = vmul.f32 %v3415, 0.01
      %v3488 = vmul.f32 %v3416, 0.01
      %v3489 = vmul.f32 %v3417, 0.01
      %v3490 = vmul.f32 %v3418, 0.01
      %v3491 = vmul.f32 %v3419, 0.01
      %v3492 = vmul.f32 %v3420, 0.01
      %v3493 = vmul.f32 %v3421, 0.01
      %v3494 = vmul.f32 %v3422, 0.01
      %v3495 = vmul.f32 %v3423, 0.01
      %v3496 = vmul.f32 %v3424, 0.01
      %v3497 = vmul.f32 %v3425, 0.01
      %v3498 = vmul.f32 %v3426, 0.01
      %v3499 = vmul.f32 %v3427, 0.01
      %v3500 = vmul.f32 %v3428, 0.01
      %v3501 = vmul.f32 %v3429, 0.01
      %v3502 = vmul.f32 %v3430, 0.01
      %v3503 = vmul.f32 %v3431, 0.01
      %v3504 = vmul.f32 %v3432, 0.01
      %v3505 = vsel %vm3433, %v3397, %v3469
      %v3506 = vsel %vm3434, %v3398, %v3470
      %v3507 = vsel %vm3435, %v3399, %v3471
      %v3508 = vsel %vm3436, %v3400, %v3472
      %v3509 = vsel %vm3437, %v3401, %v3473
      %v3510 = vsel %vm3438, %v3402, %v3474
      %v3511 = vsel %vm3439, %v3403, %v3475
      %v3512 = vsel %vm3440, %v3404, %v3476
      %v3513 = vsel %vm3441, %v3405, %v3477
      %v3514 = vsel %vm3442, %v3406, %v3478
      %v3515 = vsel %vm3443, %v3407, %v3479
      %v3516 = vsel %vm3444, %v3408, %v3480
      %v3517 = vsel %vm3445, %v3409, %v3481
      %v3518 = vsel %vm3446, %v3410, %v3482
      %v3519 = vsel %vm3447, %v3411, %v3483
      %v3520 = vsel %vm3448, %v3412, %v3484
      %v3521 = vsel %vm3449, %v3413, %v3485
      %v3522 = vsel %vm3450, %v3414, %v3486
      %v3523 = vsel %vm3451, %v3415, %v3487
      %v3524 = vsel %vm3452, %v3416, %v3488
      %v3525 = vsel %vm3453, %v3417, %v3489
      %v3526 = vsel %vm3454, %v3418, %v3490
      %v3527 = vsel %vm3455, %v3419, %v3491
      %v3528 = vsel %vm3456, %v3420, %v3492
      %v3529 = vsel %vm3457, %v3421, %v3493
      %v3530 = vsel %vm3458, %v3422, %v3494
      %v3531 = vsel %vm3459, %v3423, %v3495
      %v3532 = vsel %vm3460, %v3424, %v3496
      %v3533 = vsel %vm3461, %v3425, %v3497
      %v3534 = vsel %vm3462, %v3426, %v3498
      %v3535 = vsel %vm3463, %v3427, %v3499
      %v3536 = vsel %vm3464, %v3428, %v3500
      %v3537 = vsel %vm3465, %v3429, %v3501
      %v3538 = vsel %vm3466, %v3430, %v3502
      %v3539 = vsel %vm3467, %v3431, %v3503
      %v3540 = vsel %vm3468, %v3432, %v3504
      %3542 = vset.pattern.permute.xlu0 0
      %3543 = vperm.xlu0 %3542, %v307
      %v3544 = vpop.permute.xlu0 %3543
      %3547 = vset.pattern.permute.xlu0 0
      %3548 = vperm.xlu0 %3547, %v308
      %v3549 = vpop.permute.xlu0 %3548
      %3552 = vset.pattern.permute.xlu0 0
      %3553 = vperm.xlu0 %3552, %v309
      %v3554 = vpop.permute.xlu0 %3553
      %3557 = vset.pattern.permute.xlu0 0
      %3558 = vperm.xlu0 %3557, %v310
      %v3559 = vpop.permute.xlu0 %3558
      %3562 = vset.pattern.permute.xlu0 0
      %3563 = vperm.xlu0 %3562, %v311
      %v3564 = vpop.permute.xlu0 %3563
      %3567 = vset.pattern.permute.xlu0 0
      %3568 = vperm.xlu0 %3567, %v312
      %v3569 = vpop.permute.xlu0 %3568
      %3572 = vset.pattern.permute.xlu0 0
      %3573 = vperm.xlu0 %3572, %v313
      %v3574 = vpop.permute.xlu0 %3573
      %3577 = vset.pattern.permute.xlu0 0
      %3578 = vperm.xlu0 %3577, %v314
      %v3579 = vpop.permute.xlu0 %3578
      %3582 = vset.pattern.permute.xlu0 0
      %3583 = vperm.xlu0 %3582, %v315
      %v3584 = vpop.permute.xlu0 %3583
      %3587 = vset.pattern.permute.xlu0 0
      %3588 = vperm.xlu0 %3587, %v316
      %v3589 = vpop.permute.xlu0 %3588
      %3592 = vset.pattern.permute.xlu0 0
      %3593 = vperm.xlu0 %3592, %v317
      %v3594 = vpop.permute.xlu0 %3593
      %3597 = vset.pattern.permute.xlu0 0
      %3598 = vperm.xlu0 %3597, %v318
      %v3599 = vpop.permute.xlu0 %3598
      %3602 = vset.pattern.permute.xlu0 0
      %3603 = vperm.xlu0 %3602, %v319
      %v3604 = vpop.permute.xlu0 %3603
      %3607 = vset.pattern.permute.xlu0 0
      %3608 = vperm.xlu0 %3607, %v320
      %v3609 = vpop.permute.xlu0 %3608
      %3612 = vset.pattern.permute.xlu0 0
      %3613 = vperm.xlu0 %3612, %v321
      %v3614 = vpop.permute.xlu0 %3613
      %3617 = vset.pattern.permute.xlu0 0
      %3618 = vperm.xlu0 %3617, %v322
      %v3619 = vpop.permute.xlu0 %3618
      %3622 = vset.pattern.permute.xlu0 0
      %3623 = vperm.xlu0 %3622, %v323
      %v3624 = vpop.permute.xlu0 %3623
      %3627 = vset.pattern.permute.xlu0 0
      %3628 = vperm.xlu0 %3627, %v324
      %v3629 = vpop.permute.xlu0 %3628
      %3632 = vset.pattern.permute.xlu0 0
      %3633 = vperm.xlu0 %3632, %v325
      %v3634 = vpop.permute.xlu0 %3633
      %3637 = vset.pattern.permute.xlu0 0
      %3638 = vperm.xlu0 %3637, %v326
      %v3639 = vpop.permute.xlu0 %3638
      %3642 = vset.pattern.permute.xlu0 0
      %3643 = vperm.xlu0 %3642, %v327
      %v3644 = vpop.permute.xlu0 %3643
      %3647 = vset.pattern.permute.xlu0 0
      %3648 = vperm.xlu0 %3647, %v328
      %v3649 = vpop.permute.xlu0 %3648
      %3652 = vset.pattern.permute.xlu0 0
      %3653 = vperm.xlu0 %3652, %v329
      %v3654 = vpop.permute.xlu0 %3653
      %3657 = vset.pattern.permute.xlu0 0
      %3658 = vperm.xlu0 %3657, %v330
      %v3659 = vpop.permute.xlu0 %3658
      %3662 = vset.pattern.permute.xlu0 0
      %3663 = vperm.xlu0 %3662, %v331
      %v3664 = vpop.permute.xlu0 %3663
      %3667 = vset.pattern.permute.xlu0 0
      %3668 = vperm.xlu0 %3667, %v332
      %v3669 = vpop.permute.xlu0 %3668
      %3672 = vset.pattern.permute.xlu0 0
      %3673 = vperm.xlu0 %3672, %v333
      %v3674 = vpop.permute.xlu0 %3673
      %3677 = vset.pattern.permute.xlu0 0
      %3678 = vperm.xlu0 %3677, %v334
      %v3679 = vpop.permute.xlu0 %3678
      %3682 = vset.pattern.permute.xlu0 0
      %3683 = vperm.xlu0 %3682, %v335
      %v3684 = vpop.permute.xlu0 %3683
      %3687 = vset.pattern.permute.xlu0 0
      %3688 = vperm.xlu0 %3687, %v336
      %v3689 = vpop.permute.xlu0 %3688
      %3692 = vset.pattern.permute.xlu0 0
      %3693 = vperm.xlu0 %3692, %v337
      %v3694 = vpop.permute.xlu0 %3693
      %3697 = vset.pattern.permute.xlu0 0
      %3698 = vperm.xlu0 %3697, %v338
      %v3699 = vpop.permute.xlu0 %3698
      %3702 = vset.pattern.permute.xlu0 0
      %3703 = vperm.xlu0 %3702, %v339
      %v3704 = vpop.permute.xlu0 %3703
      %3707 = vset.pattern.permute.xlu0 0
      %3708 = vperm.xlu0 %3707, %v340
      %v3709 = vpop.permute.xlu0 %3708
      %3712 = vset.pattern.permute.xlu0 0
      %3713 = vperm.xlu0 %3712, %v341
      %v3714 = vpop.permute.xlu0 %3713
      %3717 = vset.pattern.permute.xlu0 0
      %3718 = vperm.xlu0 %3717, %v342
      %v3719 = vpop.permute.xlu0 %3718
      %v3721 = vmul.f32 %v3505, %v3544
      %v3722 = vmul.f32 %v3506, %v3549
      %v3723 = vmul.f32 %v3507, %v3554
      %v3724 = vmul.f32 %v3508, %v3559
      %v3725 = vmul.f32 %v3509, %v3564
      %v3726 = vmul.f32 %v3510, %v3569
      %v3727 = vmul.f32 %v3511, %v3574
      %v3728 = vmul.f32 %v3512, %v3579
      %v3729 = vmul.f32 %v3513, %v3584
      %v3730 = vmul.f32 %v3514, %v3589
      %v3731 = vmul.f32 %v3515, %v3594
      %v3732 = vmul.f32 %v3516, %v3599
      %v3733 = vmul.f32 %v3517, %v3604
      %v3734 = vmul.f32 %v3518, %v3609
      %v3735 = vmul.f32 %v3519, %v3614
      %v3736 = vmul.f32 %v3520, %v3619
      %v3737 = vmul.f32 %v3521, %v3624
      %v3738 = vmul.f32 %v3522, %v3629
      %v3739 = vmul.f32 %v3523, %v3634
      %v3740 = vmul.f32 %v3524, %v3639
      %v3741 = vmul.f32 %v3525, %v3644
      %v3742 = vmul.f32 %v3526, %v3649
      %v3743 = vmul.f32 %v3527, %v3654
      %v3744 = vmul.f32 %v3528, %v3659
      %v3745 = vmul.f32 %v3529, %v3664
      %v3746 = vmul.f32 %v3530, %v3669
      %v3747 = vmul.f32 %v3531, %v3674
      %v3748 = vmul.f32 %v3532, %v3679
      %v3749 = vmul.f32 %v3533, %v3684
      %v3750 = vmul.f32 %v3534, %v3689
      %v3751 = vmul.f32 %v3535, %v3694
      %v3752 = vmul.f32 %v3536, %v3699
      %v3753 = vmul.f32 %v3537, %v3704
      %v3754 = vmul.f32 %v3538, %v3709
      %v3755 = vmul.f32 %v3539, %v3714
      %v3756 = vmul.f32 %v3540, %v3719
      %3757 = vst.msk [vmem:[#allocation3] sm:$0xff] %vm1547, 0
      %3758 = vst.msk [vmem:[#allocation3 + $0x8] sm:$0xff] %vm1547, 0
      %3759 = vst.msk [vmem:[#allocation3 + $0xa0] sm:$0xff] %vm1547, 0
      %3760 = vst.msk [vmem:[#allocation3 + $0xa8] sm:$0xff] %vm1547, 0
      %v3761 = vpack.c.bf16 %v3722, %v3721
      %v3762 = vpack.c.bf16 %v3724, %v3723
      %v3763 = vpack.c.bf16 %v3726, %v3725
      %v3764 = vpack.c.bf16 %v3728, %v3727
      %v3765 = vpack.c.bf16 %v3730, %v3729
      %v3766 = vpack.c.bf16 %v3732, %v3731
      %v3767 = vpack.c.bf16 %v3734, %v3733
      %v3768 = vpack.c.bf16 %v3736, %v3735
      %v3769 = vpack.c.bf16 %v3738, %v3737
      %v3770 = vpack.c.bf16 %v3740, %v3739
      %v3771 = vpack.c.bf16 %v3742, %v3741
      %v3772 = vpack.c.bf16 %v3744, %v3743
      %v3773 = vpack.c.bf16 %v3746, %v3745
      %v3774 = vpack.c.bf16 %v3748, %v3747
      %v3775 = vpack.c.bf16 %v3750, %v3749
      %v3776 = vpack.c.bf16 %v3752, %v3751
      %v3777 = vpack.c.bf16 %v3754, %v3753
      %v3778 = vpack.c.bf16 %v3756, %v3755
      %3779 = vst.msk [vmem:[#allocation3 + $0x10] sm:$0xff] %vm1547, %v3761
      %3780 = vst.msk [vmem:[#allocation3 + $0x18] sm:$0xff] %vm1547, %v3762
      %3781 = vst.msk [vmem:[#allocation3 + $0x20] sm:$0xff] %vm1547, %v3763
      %3782 = vst.msk [vmem:[#allocation3 + $0x28] sm:$0xff] %vm1547, %v3764
      %3783 = vst.msk [vmem:[#allocation3 + $0x30] sm:$0xff] %vm1547, %v3765
      %3784 = vst.msk [vmem:[#allocation3 + $0x38] sm:$0xff] %vm1547, %v3766
      %3785 = vst.msk [vmem:[#allocation3 + $0x40] sm:$0xff] %vm1547, %v3767
      %3786 = vst.msk [vmem:[#allocation3 + $0x48] sm:$0xff] %vm1547, %v3768
      %3787 = vst.msk [vmem:[#allocation3 + $0x50] sm:$0xff] %vm1547, %v3769
      %3788 = vst.msk [vmem:[#allocation3 + $0x58] sm:$0xff] %vm1547, %v3770
      %3789 = vst.msk [vmem:[#allocation3 + $0x60] sm:$0xff] %vm1547, %v3771
      %3790 = vst.msk [vmem:[#allocation3 + $0x68] sm:$0xff] %vm1547, %v3772
      %3791 = vst.msk [vmem:[#allocation3 + $0x70] sm:$0xff] %vm1547, %v3773
      %3792 = vst.msk [vmem:[#allocation3 + $0x78] sm:$0xff] %vm1547, %v3774
      %3793 = vst.msk [vmem:[#allocation3 + $0x80] sm:$0xff] %vm1547, %v3775
      %3794 = vst.msk [vmem:[#allocation3 + $0x88] sm:$0xff] %vm1547, %v3776
      %3795 = vst.msk [vmem:[#allocation3 + $0x90] sm:$0xff] %vm1547, %v3777
      %3796 = vst.msk [vmem:[#allocation3 + $0x98] sm:$0xff] %vm1547, %v3778
      %v3797 = vld [vmem:[#allocation3] sm:$0xff]
      %v3798 = vld [vmem:[#allocation3 + $0x8] sm:$0xff]
      %v3799 = vld [vmem:[#allocation3 + $0x10] sm:$0xff]
      %v3800 = vld [vmem:[#allocation3 + $0x18] sm:$0xff]
      %v3801 = vld [vmem:[#allocation3 + $0x20] sm:$0xff]
      %v3802 = vld [vmem:[#allocation3 + $0x28] sm:$0xff]
      %v3803 = vld [vmem:[#allocation3 + $0x30] sm:$0xff]
      %v3804 = vld [vmem:[#allocation3 + $0x38] sm:$0xff]
      %v3805 = vld [vmem:[#allocation3 + $0x40] sm:$0xff]
      %v3806 = vld [vmem:[#allocation3 + $0x48] sm:$0xff]
      %v3807 = vld [vmem:[#allocation3 + $0x50] sm:$0xff]
      %v3808 = vld [vmem:[#allocation3 + $0x58] sm:$0xff]
      %v3809 = vld [vmem:[#allocation3 + $0x60] sm:$0xff]
      %v3810 = vld [vmem:[#allocation3 + $0x68] sm:$0xff]
      %v3811 = vld [vmem:[#allocation3 + $0x70] sm:$0xff]
      %v3812 = vld [vmem:[#allocation3 + $0x78] sm:$0xff]
      %v3813 = vld [vmem:[#allocation3 + $0x80] sm:$0xff]
      %v3814 = vld [vmem:[#allocation3 + $0x88] sm:$0xff]
      %v3815 = vld [vmem:[#allocation3 + $0x90] sm:$0xff]
      %v3816 = vld [vmem:[#allocation3 + $0x98] sm:$0xff]
      %v3817 = vld [vmem:[#allocation3 + $0xa0] sm:$0xff]
      %v3818 = vld [vmem:[#allocation3 + $0xa8] sm:$0xff]
      %v3819 = vld [vmem:[%s4] sm:$0xff]
      %v3820 = vld [vmem:[%s4 + $0x8] sm:$0xff]
      %v3823 = vunpack.c.l.b16 %v3819
      %v3824 = vunpack.c.h.b16 %v3819
      %v3825 = vunpack.c.l.b16 %v3820
      %v3826 = vunpack.c.h.b16 %v3820
      %v3827 = vpack.c.b16 %v3825, %v3823
      %v3828 = vpack.c.b16 %v3826, %v3824
      %v3832 = vsel %vm1547, %v3797, 0
      %v3835 = vsel %vm1547, %v3798, 0
      %v3838 = vsel %vm1547, %v3799, 0
      %v3841 = vsel %vm1547, %v3800, 0
      %v3844 = vsel %vm1547, %v3801, 0
      %v3847 = vsel %vm1547, %v3802, 0
      %v3850 = vsel %vm1547, %v3803, 0
      %v3853 = vsel %vm1547, %v3804, 0
      %v3856 = vsel %vm1547, %v3805, 0
      %v3859 = vsel %vm1547, %v3806, 0
      %v3862 = vsel %vm1547, %v3807, 0
      %v3865 = vsel %vm1547, %v3808, 0
      %v3868 = vsel %vm1547, %v3809, 0
      %v3871 = vsel %vm1547, %v3810, 0
      %v3874 = vsel %vm1547, %v3811, 0
      %v3877 = vsel %vm1547, %v3812, 0
      %v3880 = vsel %vm1547, %v3813, 0
      %v3883 = vsel %vm1547, %v3814, 0
      %v3886 = vsel %vm1547, %v3815, 0
      %v3889 = vsel %vm1547, %v3816, 0
      %v3892 = vsel %vm1547, %v3817, 0
      %v3895 = vsel %vm1547, %v3818, 0
      %3897 = vmatprep.subr.bf16.mxu0 %v3828
      %3898 = vmatpush1.bf16.msra.mxu0 %v3827
      %3899 = vmatprep.subr.bf16.mxu0 0
      %3900 = vmatpush1.bf16.msra.mxu0 0
      %3901 = vmatprep.subr.bf16.mxu0 0
      %3902 = vmatpush1.bf16.msra.mxu0 0
      %3903 = vmatprep.subr.bf16.mxu0 0
      %3904 = vmatpush1.bf16.msra.mxu0 0
      %3905 = vmatprep.subr.bf16.mxu0 0
      %3906 = vmatpush1.bf16.msra.mxu0 0
      %3907 = vmatprep.subr.bf16.mxu0 0
      %3908 = vmatpush1.bf16.msra.mxu0 0
      %3909 = vmatprep.subr.bf16.mxu0 0
      %3910 = vmatpush1.bf16.msra.mxu0 0
      %3911 = vmatprep.subr.bf16.mxu0 0
      %3912 = vmatpush1.bf16.msra.mxu0 0
      %3913 = vmatprep.subr.bf16.mxu0 0
      %3914 = vmatpush1.bf16.msra.mxu0 0
      %3915 = vmatprep.subr.bf16.mxu0 0
      %3916 = vmatpush1.bf16.msra.mxu0 0
      %3917 = vmatprep.subr.bf16.mxu0 0
      %3918 = vmatpush1.bf16.msra.mxu0 0
      %3919 = vmatprep.subr.bf16.mxu0 0
      %3920 = vmatpush1.bf16.msra.mxu0 0
      %3921 = vmatprep.subr.bf16.mxu0 0
      %3922 = vmatpush1.bf16.msra.mxu0 0
      %3923 = vmatprep.subr.bf16.mxu0 0
      %3924 = vmatpush1.bf16.msra.mxu0 0
      %3925 = vmatprep.subr.bf16.mxu0 0
      %3926 = vmatpush1.bf16.msra.mxu0 0
      %3927 = vmatprep.subr.bf16.mxu0 0
      %3928 = vmatpush1.bf16.msra.mxu0 0
      %3929 = vmatprep.mubr.bf16.mxu0 0
      %3930 = vmatmul.mubr.bf16.gmra.mrb[0].mxu0 %v3832
      %v3931 = vpop.f32.mrb[0].mxu0
      %v3932 = vadd.f32 0.0, %v3931
      %v3933 = vpop.f32.mrb[0].mxu0
      %v3934 = vadd.f32 0.0, %v3933
      %v3935 = vpop.f32.mrb[0].mxu0
      %v3936 = vadd.f32 0.0, %v3935
      %v3937 = vpop.f32.mrb[0].mxu0
      %v3938 = vadd.f32 0.0, %v3937
      %3939 = vmatprep.mubr.bf16.mxu0 0
      %3940 = vmatmul.mubr.bf16.gmra.mrb[0].mxu0 %v3835
      %v3941 = vpop.f32.mrb[0].mxu0
      %v3942 = vadd.f32 0.0, %v3941
      %v3943 = vpop.f32.mrb[0].mxu0
      %v3944 = vadd.f32 0.0, %v3943
      %v3945 = vpop.f32.mrb[0].mxu0
      %v3946 = vadd.f32 0.0, %v3945
      %v3947 = vpop.f32.mrb[0].mxu0
      %v3948 = vadd.f32 0.0, %v3947
      %3949 = vmatprep.mubr.bf16.mxu0 0
      %3950 = vmatmul.mubr.bf16.gmra.mrb[0].mxu0 %v3838
      %v3951 = vpop.f32.mrb[0].mxu0
      %v3952 = vadd.f32 0.0, %v3951
      %v3953 = vpop.f32.mrb[0].mxu0
      %v3954 = vadd.f32 0.0, %v3953
      %v3955 = vpop.f32.mrb[0].mxu0
      %v3956 = vadd.f32 0.0, %v3955
      %v3957 = vpop.f32.mrb[0].mxu0
      %v3958 = vadd.f32 0.0, %v3957
      %3959 = vmatprep.mubr.bf16.mxu0 0
      %3960 = vmatmul.mubr.bf16.gmra.mrb[0].mxu0 %v3841
      %v3961 = vpop.f32.mrb[0].mxu0
      %v3962 = vadd.f32 0.0, %v3961
      %v3963 = vpop.f32.mrb[0].mxu0
      %v3964 = vadd.f32 0.0, %v3963
      %v3965 = vpop.f32.mrb[0].mxu0
      %v3966 = vadd.f32 0.0, %v3965
      %v3967 = vpop.f32.mrb[0].mxu0
      %v3968 = vadd.f32 0.0, %v3967
      %3969 = vmatprep.mubr.bf16.mxu0 0
      %3970 = vmatmul.mubr.bf16.gmra.mrb[0].mxu0 %v3844
      %v3971 = vpop.f32.mrb[0].mxu0
      %v3972 = vadd.f32 0.0, %v3971
      %v3973 = vpop.f32.mrb[0].mxu0
      %v3974 = vadd.f32 0.0, %v3973
      %v3975 = vpop.f32.mrb[0].mxu0
      %v3976 = vadd.f32 0.0, %v3975
      %v3977 = vpop.f32.mrb[0].mxu0
      %v3978 = vadd.f32 0.0, %v3977
      %3979 = vmatprep.mubr.bf16.mxu0 0
      %3980 = vmatmul.mubr.bf16.gmra.mrb[0].mxu0 %v3847
      %v3981 = vpop.f32.mrb[0].mxu0
      %v3982 = vadd.f32 0.0, %v3981
      %v3983 = vpop.f32.mrb[0].mxu0
      %v3984 = vadd.f32 0.0, %v3983
      %v3985 = vpop.f32.mrb[0].mxu0
      %v3986 = vadd.f32 0.0, %v3985
      %v3987 = vpop.f32.mrb[0].mxu0
      %v3988 = vadd.f32 0.0, %v3987
      %3989 = vmatprep.mubr.bf16.mxu0 0
      %3990 = vmatmul.mubr.bf16.gmra.mrb[0].mxu0 %v3850
      %v3991 = vpop.f32.mrb[0].mxu0
      %v3992 = vadd.f32 0.0, %v3991
      %v3993 = vpop.f32.mrb[0].mxu0
      %v3994 = vadd.f32 0.0, %v3993
      %v3995 = vpop.f32.mrb[0].mxu0
      %v3996 = vadd.f32 0.0, %v3995
      %v3997 = vpop.f32.mrb[0].mxu0
      %v3998 = vadd.f32 0.0, %v3997
      %3999 = vmatprep.mubr.bf16.mxu0 0
      %4000 = vmatmul.mubr.bf16.gmra.mrb[0].mxu0 %v3853
      %v4001 = vpop.f32.mrb[0].mxu0
      %v4002 = vadd.f32 0.0, %v4001
      %v4003 = vpop.f32.mrb[0].mxu0
      %v4004 = vadd.f32 0.0, %v4003
      %v4005 = vpop.f32.mrb[0].mxu0
      %v4006 = vadd.f32 0.0, %v4005
      %v4007 = vpop.f32.mrb[0].mxu0
      %v4008 = vadd.f32 0.0, %v4007
      %4009 = vmatprep.mubr.bf16.mxu0 0
      %4010 = vmatmul.mubr.bf16.gmra.mrb[0].mxu0 %v3856
      %v4011 = vpop.f32.mrb[0].mxu0
      %v4012 = vadd.f32 0.0, %v4011
      %v4013 = vpop.f32.mrb[0].mxu0
      %v4014 = vadd.f32 0.0, %v4013
      %v4015 = vpop.f32.mrb[0].mxu0
      %v4016 = vadd.f32 0.0, %v4015
      %v4017 = vpop.f32.mrb[0].mxu0
      %v4018 = vadd.f32 0.0, %v4017
      %4019 = vmatprep.mubr.bf16.mxu0 0
      %4020 = vmatmul.mubr.bf16.gmra.mrb[0].mxu0 %v3859
      %v4021 = vpop.f32.mrb[0].mxu0
      %v4022 = vadd.f32 0.0, %v4021
      %v4023 = vpop.f32.mrb[0].mxu0
      %v4024 = vadd.f32 0.0, %v4023
      %v4025 = vpop.f32.mrb[0].mxu0
      %v4026 = vadd.f32 0.0, %v4025
      %v4027 = vpop.f32.mrb[0].mxu0
      %v4028 = vadd.f32 0.0, %v4027
      %4029 = vmatprep.mubr.bf16.mxu0 0
      %4030 = vmatmul.mubr.bf16.gmra.mrb[0].mxu0 %v3862
      %v4031 = vpop.f32.mrb[0].mxu0
      %v4032 = vadd.f32 0.0, %v4031
      %v4033 = vpop.f32.mrb[0].mxu0
      %v4034 = vadd.f32 0.0, %v4033
      %v4035 = vpop.f32.mrb[0].mxu0
      %v4036 = vadd.f32 0.0, %v4035
      %v4037 = vpop.f32.mrb[0].mxu0
      %v4038 = vadd.f32 0.0, %v4037
      %4039 = vmatprep.mubr.bf16.mxu0 0
      %4040 = vmatmul.mubr.bf16.gmra.mrb[0].mxu0 %v3865
      %v4041 = vpop.f32.mrb[0].mxu0
      %v4042 = vadd.f32 0.0, %v4041
      %v4043 = vpop.f32.mrb[0].mxu0
      %v4044 = vadd.f32 0.0, %v4043
      %v4045 = vpop.f32.mrb[0].mxu0
      %v4046 = vadd.f32 0.0, %v4045
      %v4047 = vpop.f32.mrb[0].mxu0
      %v4048 = vadd.f32 0.0, %v4047
      %4049 = vmatprep.mubr.bf16.mxu0 0
      %4050 = vmatmul.mubr.bf16.gmra.mrb[0].mxu0 %v3868
      %v4051 = vpop.f32.mrb[0].mxu0
      %v4052 = vadd.f32 0.0, %v4051
      %v4053 = vpop.f32.mrb[0].mxu0
      %v4054 = vadd.f32 0.0, %v4053
      %v4055 = vpop.f32.mrb[0].mxu0
      %v4056 = vadd.f32 0.0, %v4055
      %v4057 = vpop.f32.mrb[0].mxu0
      %v4058 = vadd.f32 0.0, %v4057
      %4059 = vmatprep.mubr.bf16.mxu0 0
      %4060 = vmatmul.mubr.bf16.gmra.mrb[0].mxu0 %v3871
      %v4061 = vpop.f32.mrb[0].mxu0
      %v4062 = vadd.f32 0.0, %v4061
      %v4063 = vpop.f32.mrb[0].mxu0
      %v4064 = vadd.f32 0.0, %v4063
      %v4065 = vpop.f32.mrb[0].mxu0
      %v4066 = vadd.f32 0.0, %v4065
      %v4067 = vpop.f32.mrb[0].mxu0
      %v4068 = vadd.f32 0.0, %v4067
      %4069 = vmatprep.mubr.bf16.mxu0 0
      %4070 = vmatmul.mubr.bf16.gmra.mrb[0].mxu0 %v3874
      %v4071 = vpop.f32.mrb[0].mxu0
      %v4072 = vadd.f32 0.0, %v4071
      %v4073 = vpop.f32.mrb[0].mxu0
      %v4074 = vadd.f32 0.0, %v4073
      %v4075 = vpop.f32.mrb[0].mxu0
      %v4076 = vadd.f32 0.0, %v4075
      %v4077 = vpop.f32.mrb[0].mxu0
      %v4078 = vadd.f32 0.0, %v4077
      %4079 = vmatprep.mubr.bf16.mxu0 0
      %4080 = vmatmul.mubr.bf16.gmra.mrb[0].mxu0 %v3877
      %v4081 = vpop.f32.mrb[0].mxu0
      %v4082 = vadd.f32 0.0, %v4081
      %v4083 = vpop.f32.mrb[0].mxu0
      %v4084 = vadd.f32 0.0, %v4083
      %v4085 = vpop.f32.mrb[0].mxu0
      %v4086 = vadd.f32 0.0, %v4085
      %v4087 = vpop.f32.mrb[0].mxu0
      %v4088 = vadd.f32 0.0, %v4087
      %4089 = vmatprep.mubr.bf16.mxu0 0
      %4090 = vmatmul.mubr.bf16.gmra.mrb[0].mxu0 %v3880
      %v4091 = vpop.f32.mrb[0].mxu0
      %v4092 = vadd.f32 0.0, %v4091
      %v4093 = vpop.f32.mrb[0].mxu0
      %v4094 = vadd.f32 0.0, %v4093
      %v4095 = vpop.f32.mrb[0].mxu0
      %v4096 = vadd.f32 0.0, %v4095
      %v4097 = vpop.f32.mrb[0].mxu0
      %v4098 = vadd.f32 0.0, %v4097
      %4099 = vmatprep.mubr.bf16.mxu0 0
      %4100 = vmatmul.mubr.bf16.gmra.mrb[0].mxu0 %v3883
      %v4101 = vpop.f32.mrb[0].mxu0
      %v4102 = vadd.f32 0.0, %v4101
      %v4103 = vpop.f32.mrb[0].mxu0
      %v4104 = vadd.f32 0.0, %v4103
      %v4105 = vpop.f32.mrb[0].mxu0
      %v4106 = vadd.f32 0.0, %v4105
      %v4107 = vpop.f32.mrb[0].mxu0
      %v4108 = vadd.f32 0.0, %v4107
      %4109 = vmatprep.mubr.bf16.mxu0 0
      %4110 = vmatmul.mubr.bf16.gmra.mrb[0].mxu0 %v3886
      %v4111 = vpop.f32.mrb[0].mxu0
      %v4112 = vadd.f32 0.0, %v4111
      %v4113 = vpop.f32.mrb[0].mxu0
      %v4114 = vadd.f32 0.0, %v4113
      %v4115 = vpop.f32.mrb[0].mxu0
      %v4116 = vadd.f32 0.0, %v4115
      %v4117 = vpop.f32.mrb[0].mxu0
      %v4118 = vadd.f32 0.0, %v4117
      %4119 = vmatprep.mubr.bf16.mxu0 0
      %4120 = vmatmul.mubr.bf16.gmra.mrb[0].mxu0 %v3889
      %v4121 = vpop.f32.mrb[0].mxu0
      %v4122 = vadd.f32 0.0, %v4121
      %v4123 = vpop.f32.mrb[0].mxu0
      %v4124 = vadd.f32 0.0, %v4123
      %v4125 = vpop.f32.mrb[0].mxu0
      %v4126 = vadd.f32 0.0, %v4125
      %v4127 = vpop.f32.mrb[0].mxu0
      %v4128 = vadd.f32 0.0, %v4127
      %4129 = vmatprep.mubr.bf16.mxu0 0
      %4130 = vmatmul.mubr.bf16.gmra.mrb[0].mxu0 %v3892
      %v4131 = vpop.f32.mrb[0].mxu0
      %v4132 = vadd.f32 0.0, %v4131
      %v4133 = vpop.f32.mrb[0].mxu0
      %v4134 = vadd.f32 0.0, %v4133
      %v4135 = vpop.f32.mrb[0].mxu0
      %v4136 = vadd.f32 0.0, %v4135
      %v4137 = vpop.f32.mrb[0].mxu0
      %v4138 = vadd.f32 0.0, %v4137
      %4139 = vmatprep.mubr.bf16.mxu0 0
      %4140 = vmatmul.mubr.bf16.gmra.mrb[0].mxu0 %v3895
      %v4141 = vpop.f32.mrb[0].mxu0
      %v4142 = vadd.f32 0.0, %v4141
      %v4143 = vpop.f32.mrb[0].mxu0
      %v4144 = vadd.f32 0.0, %v4143
      %v4145 = vpop.f32.mrb[0].mxu0
      %v4146 = vadd.f32 0.0, %v4145
      %v4147 = vpop.f32.mrb[0].mxu0
      %v4148 = vadd.f32 0.0, %v4147
      %4149 = vdwg.mxu0
      %4150 = vst [vmem:[#allocation2] sm:$0xff] %v3932
      %4151 = vst.msk [vmem:[#allocation2 + $0x8] sm:$0xff] %vm1547, %v3934
      %4152 = vst [vmem:[#allocation2 + $0x10] sm:$0xff] %v3936
      %4153 = vst.msk [vmem:[#allocation2 + $0x18] sm:$0xff] %vm1547, %v3938
      %4154 = vst [vmem:[#allocation2 + $0x20] sm:$0xff] %v3942
      %4155 = vst.msk [vmem:[#allocation2 + $0x28] sm:$0xff] %vm1547, %v3944
      %4156 = vst [vmem:[#allocation2 + $0x30] sm:$0xff] %v3946
      %4157 = vst.msk [vmem:[#allocation2 + $0x38] sm:$0xff] %vm1547, %v3948
      %4158 = vst [vmem:[#allocation2 + $0x40] sm:$0xff] %v3952
      %4159 = vst.msk [vmem:[#allocation2 + $0x48] sm:$0xff] %vm1547, %v3954
      %4160 = vst [vmem:[#allocation2 + $0x50] sm:$0xff] %v3956
      %4161 = vst.msk [vmem:[#allocation2 + $0x58] sm:$0xff] %vm1547, %v3958
      %4162 = vst [vmem:[#allocation2 + $0x60] sm:$0xff] %v3962
      %4163 = vst.msk [vmem:[#allocation2 + $0x68] sm:$0xff] %vm1547, %v3964
      %4164 = vst [vmem:[#allocation2 + $0x70] sm:$0xff] %v3966
      %4165 = vst.msk [vmem:[#allocation2 + $0x78] sm:$0xff] %vm1547, %v3968
      %4166 = vst [vmem:[#allocation2 + $0x80] sm:$0xff] %v3972
      %4167 = vst.msk [vmem:[#allocation2 + $0x88] sm:$0xff] %vm1547, %v3974
      %4168 = vst [vmem:[#allocation2 + $0x90] sm:$0xff] %v3976
      %4169 = vst.msk [vmem:[#allocation2 + $0x98] sm:$0xff] %vm1547, %v3978
      %4170 = vst [vmem:[#allocation2 + $0xa0] sm:$0xff] %v3982
      %4171 = vst.msk [vmem:[#allocation2 + $0xa8] sm:$0xff] %vm1547, %v3984
      %4172 = vst [vmem:[#allocation2 + $0xb0] sm:$0xff] %v3986
      %4173 = vst.msk [vmem:[#allocation2 + $0xb8] sm:$0xff] %vm1547, %v3988
      %4174 = vst [vmem:[#allocation2 + $0xc0] sm:$0xff] %v3992
      %4175 = vst.msk [vmem:[#allocation2 + $0xc8] sm:$0xff] %vm1547, %v3994
      %4176 = vst [vmem:[#allocation2 + $0xd0] sm:$0xff] %v3996
      %4177 = vst.msk [vmem:[#allocation2 + $0xd8] sm:$0xff] %vm1547, %v3998
      %4178 = vst [vmem:[#allocation2 + $0xe0] sm:$0xff] %v4002
      %4179 = vst.msk [vmem:[#allocation2 + $0xe8] sm:$0xff] %vm1547, %v4004
      %4180 = vst [vmem:[#allocation2 + $0xf0] sm:$0xff] %v4006
      %4181 = vst.msk [vmem:[#allocation2 + $0xf8] sm:$0xff] %vm1547, %v4008
      %4182 = vst [vmem:[#allocation2 + $0x100] sm:$0xff] %v4012
      %4183 = vst.msk [vmem:[#allocation2 + $0x108] sm:$0xff] %vm1547, %v4014
      %4184 = vst [vmem:[#allocation2 + $0x110] sm:$0xff] %v4016
      %4185 = vst.msk [vmem:[#allocation2 + $0x118] sm:$0xff] %vm1547, %v4018
      %4186 = vst [vmem:[#allocation2 + $0x120] sm:$0xff] %v4022
      %4187 = vst.msk [vmem:[#allocation2 + $0x128] sm:$0xff] %vm1547, %v4024
      %4188 = vst [vmem:[#allocation2 + $0x130] sm:$0xff] %v4026
      %4189 = vst.msk [vmem:[#allocation2 + $0x138] sm:$0xff] %vm1547, %v4028
      %4190 = vst [vmem:[#allocation2 + $0x140] sm:$0xff] %v4032
      %4191 = vst.msk [vmem:[#allocation2 + $0x148] sm:$0xff] %vm1547, %v4034
      %4192 = vst [vmem:[#allocation2 + $0x150] sm:$0xff] %v4036
      %4193 = vst.msk [vmem:[#allocation2 + $0x158] sm:$0xff] %vm1547, %v4038
      %4194 = vst [vmem:[#allocation2 + $0x160] sm:$0xff] %v4042
      %4195 = vst.msk [vmem:[#allocation2 + $0x168] sm:$0xff] %vm1547, %v4044
      %4196 = vst [vmem:[#allocation2 + $0x170] sm:$0xff] %v4046
      %4197 = vst.msk [vmem:[#allocation2 + $0x178] sm:$0xff] %vm1547, %v4048
      %4198 = vst [vmem:[#allocation2 + $0x180] sm:$0xff] %v4052
      %4199 = vst.msk [vmem:[#allocation2 + $0x188] sm:$0xff] %vm1547, %v4054
      %4200 = vst [vmem:[#allocation2 + $0x190] sm:$0xff] %v4056
      %4201 = vst.msk [vmem:[#allocation2 + $0x198] sm:$0xff] %vm1547, %v4058
      %4202 = vst [vmem:[#allocation2 + $0x1a0] sm:$0xff] %v4062
      %4203 = vst.msk [vmem:[#allocation2 + $0x1a8] sm:$0xff] %vm1547, %v4064
      %4204 = vst [vmem:[#allocation2 + $0x1b0] sm:$0xff] %v4066
      %4205 = vst.msk [vmem:[#allocation2 + $0x1b8] sm:$0xff] %vm1547, %v4068
      %4206 = vst [vmem:[#allocation2 + $0x1c0] sm:$0xff] %v4072
      %4207 = vst.msk [vmem:[#allocation2 + $0x1c8] sm:$0xff] %vm1547, %v4074
      %4208 = vst [vmem:[#allocation2 + $0x1d0] sm:$0xff] %v4076
      %4209 = vst.msk [vmem:[#allocation2 + $0x1d8] sm:$0xff] %vm1547, %v4078
      %4210 = vst [vmem:[#allocation2 + $0x1e0] sm:$0xff] %v4082
      %4211 = vst.msk [vmem:[#allocation2 + $0x1e8] sm:$0xff] %vm1547, %v4084
      %4212 = vst [vmem:[#allocation2 + $0x1f0] sm:$0xff] %v4086
      %4213 = vst.msk [vmem:[#allocation2 + $0x1f8] sm:$0xff] %vm1547, %v4088
      %4214 = vst [vmem:[#allocation2 + $0x200] sm:$0xff] %v4092
      %4215 = vst.msk [vmem:[#allocation2 + $0x208] sm:$0xff] %vm1547, %v4094
      %4216 = vst [vmem:[#allocation2 + $0x210] sm:$0xff] %v4096
      %4217 = vst.msk [vmem:[#allocation2 + $0x218] sm:$0xff] %vm1547, %v4098
      %4218 = vst [vmem:[#allocation2 + $0x220] sm:$0xff] %v4102
      %4219 = vst.msk [vmem:[#allocation2 + $0x228] sm:$0xff] %vm1547, %v4104
      %4220 = vst [vmem:[#allocation2 + $0x230] sm:$0xff] %v4106
      %4221 = vst.msk [vmem:[#allocation2 + $0x238] sm:$0xff] %vm1547, %v4108
      %4222 = vst [vmem:[#allocation2 + $0x240] sm:$0xff] %v4112
      %4223 = vst.msk [vmem:[#allocation2 + $0x248] sm:$0xff] %vm1547, %v4114
      %4224 = vst [vmem:[#allocation2 + $0x250] sm:$0xff] %v4116
      %4225 = vst.msk [vmem:[#allocation2 + $0x258] sm:$0xff] %vm1547, %v4118
      %4226 = vst [vmem:[#allocation2 + $0x260] sm:$0xff] %v4122
      %4227 = vst.msk [vmem:[#allocation2 + $0x268] sm:$0xff] %vm1547, %v4124
      %4228 = vst [vmem:[#allocation2 + $0x270] sm:$0xff] %v4126
      %4229 = vst.msk [vmem:[#allocation2 + $0x278] sm:$0xff] %vm1547, %v4128
      %4230 = vst [vmem:[#allocation2 + $0x280] sm:$0xff] %v4132
      %4231 = vst.msk [vmem:[#allocation2 + $0x288] sm:$0xff] %vm1547, %v4134
      %4232 = vst [vmem:[#allocation2 + $0x290] sm:$0xff] %v4136
      %4233 = vst.msk [vmem:[#allocation2 + $0x298] sm:$0xff] %vm1547, %v4138
      %4234 = vst [vmem:[#allocation2 + $0x2a0] sm:$0xff] %v4142
      %4235 = vst.msk [vmem:[#allocation2 + $0x2a8] sm:$0xff] %vm1547, %v4144
      %4236 = vst [vmem:[#allocation2 + $0x2b0] sm:$0xff] %v4146
      %4237 = vst.msk [vmem:[#allocation2 + $0x2b8] sm:$0xff] %vm1547, %v4148
      %v4238 = vld [vmem:[#allocation2 + $0x10] sm:$0xe0]
      %v4239 = vld [vmem:[#allocation2 + $0x20] sm:$0xff]
      %v4240 = vld [vmem:[#allocation2 + $0x30] sm:$0xff]
      %v4241 = vld [vmem:[#allocation2 + $0x40] sm:$0xff]
      %v4242 = vld [vmem:[#allocation2 + $0x50] sm:$0xff]
      %v4243 = vld [vmem:[#allocation2 + $0x60] sm:$0xff]
      %v4244 = vld [vmem:[#allocation2 + $0x70] sm:$0xff]
      %v4245 = vld [vmem:[#allocation2 + $0x80] sm:$0xff]
      %v4246 = vld [vmem:[#allocation2 + $0x90] sm:$0xff]
      %v4247 = vld [vmem:[#allocation2 + $0xa0] sm:$0xff]
      %v4248 = vld [vmem:[#allocation2 + $0xb0] sm:$0xff]
      %v4249 = vld [vmem:[#allocation2 + $0xc0] sm:$0xff]
      %v4250 = vld [vmem:[#allocation2 + $0xd0] sm:$0xff]
      %v4251 = vld [vmem:[#allocation2 + $0xe0] sm:$0xff]
      %v4252 = vld [vmem:[#allocation2 + $0xf0] sm:$0xff]
      %v4253 = vld [vmem:[#allocation2 + $0x100] sm:$0xff]
      %v4254 = vld [vmem:[#allocation2 + $0x110] sm:$0xff]
      %v4255 = vld [vmem:[#allocation2 + $0x120] sm:$0xff]
      %v4256 = vld [vmem:[#allocation2 + $0x130] sm:$0xff]
      %v4257 = vld [vmem:[#allocation2 + $0x140] sm:$0xff]
      %v4258 = vld [vmem:[#allocation2 + $0x150] sm:$0xff]
      %v4259 = vld [vmem:[#allocation2 + $0x160] sm:$0xff]
      %v4260 = vld [vmem:[#allocation2 + $0x170] sm:$0xff]
      %v4261 = vld [vmem:[#allocation2 + $0x180] sm:$0xff]
      %v4262 = vld [vmem:[#allocation2 + $0x190] sm:$0xff]
      %v4263 = vld [vmem:[#allocation2 + $0x1a0] sm:$0xff]
      %v4264 = vld [vmem:[#allocation2 + $0x1b0] sm:$0xff]
      %v4265 = vld [vmem:[#allocation2 + $0x1c0] sm:$0xff]
      %v4266 = vld [vmem:[#allocation2 + $0x1d0] sm:$0xff]
      %v4267 = vld [vmem:[#allocation2 + $0x1e0] sm:$0xff]
      %v4268 = vld [vmem:[#allocation2 + $0x1f0] sm:$0xff]
      %v4269 = vld [vmem:[#allocation2 + $0x200] sm:$0xff]
      %v4270 = vld [vmem:[#allocation2 + $0x210] sm:$0xff]
      %v4271 = vld [vmem:[#allocation2 + $0x220] sm:$0xff]
      %v4272 = vld [vmem:[#allocation2 + $0x230] sm:$0xff]
      %v4273 = vld [vmem:[#allocation2 + $0x240] sm:$0xff]
      %v4274 = vld [vmem:[#allocation2 + $0x250] sm:$0x1f]
      %v4275 = vadd.f32 %v4238, 0.0
      %v4276 = vadd.f32 %v4239, 0.0
      %v4277 = vadd.f32 %v4240, 0.0
      %v4278 = vadd.f32 %v4241, 0.0
      %v4279 = vadd.f32 %v4242, 0.0
      %v4280 = vadd.f32 %v4243, 0.0
      %v4281 = vadd.f32 %v4244, 0.0
      %v4282 = vadd.f32 %v4245, 0.0
      %v4283 = vadd.f32 %v4246, 0.0
      %v4284 = vadd.f32 %v4247, 0.0
      %v4285 = vadd.f32 %v4248, 0.0
      %v4286 = vadd.f32 %v4249, 0.0
      %v4287 = vadd.f32 %v4250, 0.0
      %v4288 = vadd.f32 %v4251, 0.0
      %v4289 = vadd.f32 %v4252, 0.0
      %v4290 = vadd.f32 %v4253, 0.0
      %v4291 = vadd.f32 %v4254, 0.0
      %v4292 = vadd.f32 %v4255, 0.0
      %v4293 = vadd.f32 %v4256, 0.0
      %v4294 = vadd.f32 %v4257, 0.0
      %v4295 = vadd.f32 %v4258, 0.0
      %v4296 = vadd.f32 %v4259, 0.0
      %v4297 = vadd.f32 %v4260, 0.0
      %v4298 = vadd.f32 %v4261, 0.0
      %v4299 = vadd.f32 %v4262, 0.0
      %v4300 = vadd.f32 %v4263, 0.0
      %v4301 = vadd.f32 %v4264, 0.0
      %v4302 = vadd.f32 %v4265, 0.0
      %v4303 = vadd.f32 %v4266, 0.0
      %v4304 = vadd.f32 %v4267, 0.0
      %v4305 = vadd.f32 %v4268, 0.0
      %v4306 = vadd.f32 %v4269, 0.0
      %v4307 = vadd.f32 %v4270, 0.0
      %v4308 = vadd.f32 %v4271, 0.0
      %v4309 = vadd.f32 %v4272, 0.0
      %v4310 = vadd.f32 %v4273, 0.0
      %v4311 = vadd.f32 %v4274, 0.0
      %v4312 = vld [vmem:[#allocation2 + $0x10] sm:$0xc0]
      %v4313 = vld [vmem:[#allocation2 + $0x250] sm:$0x3f]
      %v4351 = vrot.slane %v4312, 1
      %v4352 = vrot.slane %v4239, 1
      %v4353 = vsel %vm1746, %v4351, %v4352
      %v4354 = vrot.slane %v4240, 1
      %v4355 = vsel %vm1746, %v4352, %v4354
      %v4356 = vrot.slane %v4241, 1
      %v4357 = vsel %vm1746, %v4354, %v4356
      %v4358 = vrot.slane %v4242, 1
      %v4359 = vsel %vm1746, %v4356, %v4358
      %v4360 = vrot.slane %v4243, 1
      %v4361 = vsel %vm1746, %v4358, %v4360
      %v4362 = vrot.slane %v4244, 1
      %v4363 = vsel %vm1746, %v4360, %v4362
      %v4364 = vrot.slane %v4245, 1
      %v4365 = vsel %vm1746, %v4362, %v4364
      %v4366 = vrot.slane %v4246, 1
      %v4367 = vsel %vm1746, %v4364, %v4366
      %v4368 = vrot.slane %v4247, 1
      %v4369 = vsel %vm1746, %v4366, %v4368
      %v4370 = vrot.slane %v4248, 1
      %v4371 = vsel %vm1746, %v4368, %v4370
      %v4372 = vrot.slane %v4249, 1
      %v4373 = vsel %vm1746, %v4370, %v4372
      %v4374 = vrot.slane %v4250, 1
      %v4375 = vsel %vm1746, %v4372, %v4374
      %v4376 = vrot.slane %v4251, 1
      %v4377 = vsel %vm1746, %v4374, %v4376
      %v4378 = vrot.slane %v4252, 1
      %v4379 = vsel %vm1746, %v4376, %v4378
      %v4380 = vrot.slane %v4253, 1
      %v4381 = vsel %vm1746, %v4378, %v4380
      %v4382 = vrot.slane %v4254, 1
      %v4383 = vsel %vm1746, %v4380, %v4382
      %v4384 = vrot.slane %v4255, 1
      %v4385 = vsel %vm1746, %v4382, %v4384
      %v4386 = vrot.slane %v4256, 1
      %v4387 = vsel %vm1746, %v4384, %v4386
      %v4388 = vrot.slane %v4257, 1
      %v4389 = vsel %vm1746, %v4386, %v4388
      %v4390 = vrot.slane %v4258, 1
      %v4391 = vsel %vm1746, %v4388, %v4390
      %v4392 = vrot.slane %v4259, 1
      %v4393 = vsel %vm1746, %v4390, %v4392
      %v4394 = vrot.slane %v4260, 1
      %v4395 = vsel %vm1746, %v4392, %v4394
      %v4396 = vrot.slane %v4261, 1
      %v4397 = vsel %vm1746, %v4394, %v4396
      %v4398 = vrot.slane %v4262, 1
      %v4399 = vsel %vm1746, %v4396, %v4398
      %v4400 = vrot.slane %v4263, 1
      %v4401 = vsel %vm1746, %v4398, %v4400
      %v4402 = vrot.slane %v4264, 1
      %v4403 = vsel %vm1746, %v4400, %v4402
      %v4404 = vrot.slane %v4265, 1
      %v4405 = vsel %vm1746, %v4402, %v4404
      %v4406 = vrot.slane %v4266, 1
      %v4407 = vsel %vm1746, %v4404, %v4406
      %v4408 = vrot.slane %v4267, 1
      %v4409 = vsel %vm1746, %v4406, %v4408
      %v4410 = vrot.slane %v4268, 1
      %v4411 = vsel %vm1746, %v4408, %v4410
      %v4412 = vrot.slane %v4269, 1
      %v4413 = vsel %vm1746, %v4410, %v4412
      %v4414 = vrot.slane %v4270, 1
      %v4415 = vsel %vm1746, %v4412, %v4414
      %v4416 = vrot.slane %v4271, 1
      %v4417 = vsel %vm1746, %v4414, %v4416
      %v4418 = vrot.slane %v4272, 1
      %v4419 = vsel %vm1746, %v4416, %v4418
      %v4420 = vrot.slane %v4273, 1
      %v4421 = vsel %vm1746, %v4418, %v4420
      %v4422 = vrot.slane %v4313, 1
      %v4423 = vsel %vm1746, %v4420, %v4422
      %4424 = vrot.lane.b32.xlu0 %v4353, 112
      %v4425 = vpop.permute.xlu0 %4424
      %4426 = vrot.lane.b32.xlu0 %v4355, 112
      %v4427 = vpop.permute.xlu0 %4426
      %4428 = vrot.lane.b32.xlu0 %v4357, 112
      %v4429 = vpop.permute.xlu0 %4428
      %4430 = vrot.lane.b32.xlu0 %v4359, 112
      %v4431 = vpop.permute.xlu0 %4430
      %4432 = vrot.lane.b32.xlu0 %v4361, 112
      %v4433 = vpop.permute.xlu0 %4432
      %4434 = vrot.lane.b32.xlu0 %v4363, 112
      %v4435 = vpop.permute.xlu0 %4434
      %4436 = vrot.lane.b32.xlu0 %v4365, 112
      %v4437 = vpop.permute.xlu0 %4436
      %4438 = vrot.lane.b32.xlu0 %v4367, 112
      %v4439 = vpop.permute.xlu0 %4438
      %4440 = vrot.lane.b32.xlu0 %v4369, 112
      %v4441 = vpop.permute.xlu0 %4440
      %4442 = vrot.lane.b32.xlu0 %v4371, 112
      %v4443 = vpop.permute.xlu0 %4442
      %4444 = vrot.lane.b32.xlu0 %v4373, 112
      %v4445 = vpop.permute.xlu0 %4444
      %4446 = vrot.lane.b32.xlu0 %v4375, 112
      %v4447 = vpop.permute.xlu0 %4446
      %4448 = vrot.lane.b32.xlu0 %v4377, 112
      %v4449 = vpop.permute.xlu0 %4448
      %4450 = vrot.lane.b32.xlu0 %v4379, 112
      %v4451 = vpop.permute.xlu0 %4450
      %4452 = vrot.lane.b32.xlu0 %v4381, 112
      %v4453 = vpop.permute.xlu0 %4452
      %4454 = vrot.lane.b32.xlu0 %v4383, 112
      %v4455 = vpop.permute.xlu0 %4454
      %4456 = vrot.lane.b32.xlu0 %v4385, 112
      %v4457 = vpop.permute.xlu0 %4456
      %4458 = vrot.lane.b32.xlu0 %v4387, 112
      %v4459 = vpop.permute.xlu0 %4458
      %4460 = vrot.lane.b32.xlu0 %v4389, 112
      %v4461 = vpop.permute.xlu0 %4460
      %4462 = vrot.lane.b32.xlu0 %v4391, 112
      %v4463 = vpop.permute.xlu0 %4462
      %4464 = vrot.lane.b32.xlu0 %v4393, 112
      %v4465 = vpop.permute.xlu0 %4464
      %4466 = vrot.lane.b32.xlu0 %v4395, 112
      %v4467 = vpop.permute.xlu0 %4466
      %4468 = vrot.lane.b32.xlu0 %v4397, 112
      %v4469 = vpop.permute.xlu0 %4468
      %4470 = vrot.lane.b32.xlu0 %v4399, 112
      %v4471 = vpop.permute.xlu0 %4470
      %4472 = vrot.lane.b32.xlu0 %v4401, 112
      %v4473 = vpop.permute.xlu0 %4472
      %4474 = vrot.lane.b32.xlu0 %v4403, 112
      %v4475 = vpop.permute.xlu0 %4474
      %4476 = vrot.lane.b32.xlu0 %v4405, 112
      %v4477 = vpop.permute.xlu0 %4476
      %4478 = vrot.lane.b32.xlu0 %v4407, 112
      %v4479 = vpop.permute.xlu0 %4478
      %4480 = vrot.lane.b32.xlu0 %v4409, 112
      %v4481 = vpop.permute.xlu0 %4480
      %4482 = vrot.lane.b32.xlu0 %v4411, 112
      %v4483 = vpop.permute.xlu0 %4482
      %4484 = vrot.lane.b32.xlu0 %v4413, 112
      %v4485 = vpop.permute.xlu0 %4484
      %4486 = vrot.lane.b32.xlu0 %v4415, 112
      %v4487 = vpop.permute.xlu0 %4486
      %4488 = vrot.lane.b32.xlu0 %v4417, 112
      %v4489 = vpop.permute.xlu0 %4488
      %4490 = vrot.lane.b32.xlu0 %v4419, 112
      %v4491 = vpop.permute.xlu0 %4490
      %4492 = vrot.lane.b32.xlu0 %v4421, 112
      %v4493 = vpop.permute.xlu0 %4492
      %4494 = vrot.lane.b32.xlu0 %v4423, 112
      %v4495 = vpop.permute.xlu0 %4494
      %4496 = vrot.lane.b32.xlu0 %v4422, 112
      %v4497 = vpop.permute.xlu0 %4496
      %v4535 = vadd.f32 %v4275, %v4425
      %v4536 = vadd.f32 %v4276, %v4427
      %v4537 = vadd.f32 %v4277, %v4429
      %v4538 = vadd.f32 %v4278, %v4431
      %v4539 = vadd.f32 %v4279, %v4433
      %v4540 = vadd.f32 %v4280, %v4435
      %v4541 = vadd.f32 %v4281, %v4437
      %v4542 = vadd.f32 %v4282, %v4439
      %v4543 = vadd.f32 %v4283, %v4441
      %v4544 = vadd.f32 %v4284, %v4443
      %v4545 = vadd.f32 %v4285, %v4445
      %v4546 = vadd.f32 %v4286, %v4447
      %v4547 = vadd.f32 %v4287, %v4449
      %v4548 = vadd.f32 %v4288, %v4451
      %v4549 = vadd.f32 %v4289, %v4453
      %v4550 = vadd.f32 %v4290, %v4455
      %v4551 = vadd.f32 %v4291, %v4457
      %v4552 = vadd.f32 %v4292, %v4459
      %v4553 = vadd.f32 %v4293, %v4461
      %v4554 = vadd.f32 %v4294, %v4463
      %v4555 = vadd.f32 %v4295, %v4465
      %v4556 = vadd.f32 %v4296, %v4467
      %v4557 = vadd.f32 %v4297, %v4469
      %v4558 = vadd.f32 %v4298, %v4471
      %v4559 = vadd.f32 %v4299, %v4473
      %v4560 = vadd.f32 %v4300, %v4475
      %v4561 = vadd.f32 %v4301, %v4477
      %v4562 = vadd.f32 %v4302, %v4479
      %v4563 = vadd.f32 %v4303, %v4481
      %v4564 = vadd.f32 %v4304, %v4483
      %v4565 = vadd.f32 %v4305, %v4485
      %v4566 = vadd.f32 %v4306, %v4487
      %v4567 = vadd.f32 %v4307, %v4489
      %v4568 = vadd.f32 %v4308, %v4491
      %v4569 = vadd.f32 %v4309, %v4493
      %v4570 = vadd.f32 %v4310, %v4495
      %v4571 = vadd.f32 %v4311, %v4497
      %v4572 = vld [vmem:[#allocation2 + $0x10] sm:$0x80]
      %v4573 = vld [vmem:[#allocation2 + $0x250] sm:$0x7f]
      %v4576 = vrot.slane %v4572, 2
      %v4577 = vrot.slane %v4239, 2
      %v4578 = vsel %vm1968, %v4576, %v4577
      %v4579 = vrot.slane %v4240, 2
      %v4580 = vsel %vm1968, %v4577, %v4579
      %v4581 = vrot.slane %v4241, 2
      %v4582 = vsel %vm1968, %v4579, %v4581
      %v4583 = vrot.slane %v4242, 2
      %v4584 = vsel %vm1968, %v4581, %v4583
      %v4585 = vrot.slane %v4243, 2
      %v4586 = vsel %vm1968, %v4583, %v4585
      %v4587 = vrot.slane %v4244, 2
      %v4588 = vsel %vm1968, %v4585, %v4587
      %v4589 = vrot.slane %v4245, 2
      %v4590 = vsel %vm1968, %v4587, %v4589
      %v4591 = vrot.slane %v4246, 2
      %v4592 = vsel %vm1968, %v4589, %v4591
      %v4593 = vrot.slane %v4247, 2
      %v4594 = vsel %vm1968, %v4591, %v4593
      %v4595 = vrot.slane %v4248, 2
      %v4596 = vsel %vm1968, %v4593, %v4595
      %v4597 = vrot.slane %v4249, 2
      %v4598 = vsel %vm1968, %v4595, %v4597
      %v4599 = vrot.slane %v4250, 2
      %v4600 = vsel %vm1968, %v4597, %v4599
      %v4601 = vrot.slane %v4251, 2
      %v4602 = vsel %vm1968, %v4599, %v4601
      %v4603 = vrot.slane %v4252, 2
      %v4604 = vsel %vm1968, %v4601, %v4603
      %v4605 = vrot.slane %v4253, 2
      %v4606 = vsel %vm1968, %v4603, %v4605
      %v4607 = vrot.slane %v4254, 2
      %v4608 = vsel %vm1968, %v4605, %v4607
      %v4609 = vrot.slane %v4255, 2
      %v4610 = vsel %vm1968, %v4607, %v4609
      %v4611 = vrot.slane %v4256, 2
      %v4612 = vsel %vm1968, %v4609, %v4611
      %v4613 = vrot.slane %v4257, 2
      %v4614 = vsel %vm1968, %v4611, %v4613
      %v4615 = vrot.slane %v4258, 2
      %v4616 = vsel %vm1968, %v4613, %v4615
      %v4617 = vrot.slane %v4259, 2
      %v4618 = vsel %vm1968, %v4615, %v4617
      %v4619 = vrot.slane %v4260, 2
      %v4620 = vsel %vm1968, %v4617, %v4619
      %v4621 = vrot.slane %v4261, 2
      %v4622 = vsel %vm1968, %v4619, %v4621
      %v4623 = vrot.slane %v4262, 2
      %v4624 = vsel %vm1968, %v4621, %v4623
      %v4625 = vrot.slane %v4263, 2
      %v4626 = vsel %vm1968, %v4623, %v4625
      %v4627 = vrot.slane %v4264, 2
      %v4628 = vsel %vm1968, %v4625, %v4627
      %v4629 = vrot.slane %v4265, 2
      %v4630 = vsel %vm1968, %v4627, %v4629
      %v4631 = vrot.slane %v4266, 2
      %v4632 = vsel %vm1968, %v4629, %v4631
      %v4633 = vrot.slane %v4267, 2
      %v4634 = vsel %vm1968, %v4631, %v4633
      %v4635 = vrot.slane %v4268, 2
      %v4636 = vsel %vm1968, %v4633, %v4635
      %v4637 = vrot.slane %v4269, 2
      %v4638 = vsel %vm1968, %v4635, %v4637
      %v4639 = vrot.slane %v4270, 2
      %v4640 = vsel %vm1968, %v4637, %v4639
      %v4641 = vrot.slane %v4271, 2
      %v4642 = vsel %vm1968, %v4639, %v4641
      %v4643 = vrot.slane %v4272, 2
      %v4644 = vsel %vm1968, %v4641, %v4643
      %v4645 = vrot.slane %v4273, 2
      %v4646 = vsel %vm1968, %v4643, %v4645
      %v4647 = vrot.slane %v4573, 2
      %v4648 = vsel %vm1968, %v4645, %v4647
      %4649 = vrot.lane.b32.xlu0 %v4578, 96
      %v4650 = vpop.permute.xlu0 %4649
      %4651 = vrot.lane.b32.xlu0 %v4580, 96
      %v4652 = vpop.permute.xlu0 %4651
      %4653 = vrot.lane.b32.xlu0 %v4582, 96
      %v4654 = vpop.permute.xlu0 %4653
      %4655 = vrot.lane.b32.xlu0 %v4584, 96
      %v4656 = vpop.permute.xlu0 %4655
      %4657 = vrot.lane.b32.xlu0 %v4586, 96
      %v4658 = vpop.permute.xlu0 %4657
      %4659 = vrot.lane.b32.xlu0 %v4588, 96
      %v4660 = vpop.permute.xlu0 %4659
      %4661 = vrot.lane.b32.xlu0 %v4590, 96
      %v4662 = vpop.permute.xlu0 %4661
      %4663 = vrot.lane.b32.xlu0 %v4592, 96
      %v4664 = vpop.permute.xlu0 %4663
      %4665 = vrot.lane.b32.xlu0 %v4594, 96
      %v4666 = vpop.permute.xlu0 %4665
      %4667 = vrot.lane.b32.xlu0 %v4596, 96
      %v4668 = vpop.permute.xlu0 %4667
      %4669 = vrot.lane.b32.xlu0 %v4598, 96
      %v4670 = vpop.permute.xlu0 %4669
      %4671 = vrot.lane.b32.xlu0 %v4600, 96
      %v4672 = vpop.permute.xlu0 %4671
      %4673 = vrot.lane.b32.xlu0 %v4602, 96
      %v4674 = vpop.permute.xlu0 %4673
      %4675 = vrot.lane.b32.xlu0 %v4604, 96
      %v4676 = vpop.permute.xlu0 %4675
      %4677 = vrot.lane.b32.xlu0 %v4606, 96
      %v4678 = vpop.permute.xlu0 %4677
      %4679 = vrot.lane.b32.xlu0 %v4608, 96
      %v4680 = vpop.permute.xlu0 %4679
      %4681 = vrot.lane.b32.xlu0 %v4610, 96
      %v4682 = vpop.permute.xlu0 %4681
      %4683 = vrot.lane.b32.xlu0 %v4612, 96
      %v4684 = vpop.permute.xlu0 %4683
      %4685 = vrot.lane.b32.xlu0 %v4614, 96
      %v4686 = vpop.permute.xlu0 %4685
      %4687 = vrot.lane.b32.xlu0 %v4616, 96
      %v4688 = vpop.permute.xlu0 %4687
      %4689 = vrot.lane.b32.xlu0 %v4618, 96
      %v4690 = vpop.permute.xlu0 %4689
      %4691 = vrot.lane.b32.xlu0 %v4620, 96
      %v4692 = vpop.permute.xlu0 %4691
      %4693 = vrot.lane.b32.xlu0 %v4622, 96
      %v4694 = vpop.permute.xlu0 %4693
      %4695 = vrot.lane.b32.xlu0 %v4624, 96
      %v4696 = vpop.permute.xlu0 %4695
      %4697 = vrot.lane.b32.xlu0 %v4626, 96
      %v4698 = vpop.permute.xlu0 %4697
      %4699 = vrot.lane.b32.xlu0 %v4628, 96
      %v4700 = vpop.permute.xlu0 %4699
      %4701 = vrot.lane.b32.xlu0 %v4630, 96
      %v4702 = vpop.permute.xlu0 %4701
      %4703 = vrot.lane.b32.xlu0 %v4632, 96
      %v4704 = vpop.permute.xlu0 %4703
      %4705 = vrot.lane.b32.xlu0 %v4634, 96
      %v4706 = vpop.permute.xlu0 %4705
      %4707 = vrot.lane.b32.xlu0 %v4636, 96
      %v4708 = vpop.permute.xlu0 %4707
      %4709 = vrot.lane.b32.xlu0 %v4638, 96
      %v4710 = vpop.permute.xlu0 %4709
      %4711 = vrot.lane.b32.xlu0 %v4640, 96
      %v4712 = vpop.permute.xlu0 %4711
      %4713 = vrot.lane.b32.xlu0 %v4642, 96
      %v4714 = vpop.permute.xlu0 %4713
      %4715 = vrot.lane.b32.xlu0 %v4644, 96
      %v4716 = vpop.permute.xlu0 %4715
      %4717 = vrot.lane.b32.xlu0 %v4646, 96
      %v4718 = vpop.permute.xlu0 %4717
      %4719 = vrot.lane.b32.xlu0 %v4648, 96
      %v4720 = vpop.permute.xlu0 %4719
      %4721 = vrot.lane.b32.xlu0 %v4647, 96
      %v4722 = vpop.permute.xlu0 %4721
      %v4760 = vadd.f32 %v4535, %v4650
      %v4761 = vadd.f32 %v4536, %v4652
      %v4762 = vadd.f32 %v4537, %v4654
      %v4763 = vadd.f32 %v4538, %v4656
      %v4764 = vadd.f32 %v4539, %v4658
      %v4765 = vadd.f32 %v4540, %v4660
      %v4766 = vadd.f32 %v4541, %v4662
      %v4767 = vadd.f32 %v4542, %v4664
      %v4768 = vadd.f32 %v4543, %v4666
      %v4769 = vadd.f32 %v4544, %v4668
      %v4770 = vadd.f32 %v4545, %v4670
      %v4771 = vadd.f32 %v4546, %v4672
      %v4772 = vadd.f32 %v4547, %v4674
      %v4773 = vadd.f32 %v4548, %v4676
      %v4774 = vadd.f32 %v4549, %v4678
      %v4775 = vadd.f32 %v4550, %v4680
      %v4776 = vadd.f32 %v4551, %v4682
      %v4777 = vadd.f32 %v4552, %v4684
      %v4778 = vadd.f32 %v4553, %v4686
      %v4779 = vadd.f32 %v4554, %v4688
      %v4780 = vadd.f32 %v4555, %v4690
      %v4781 = vadd.f32 %v4556, %v4692
      %v4782 = vadd.f32 %v4557, %v4694
      %v4783 = vadd.f32 %v4558, %v4696
      %v4784 = vadd.f32 %v4559, %v4698
      %v4785 = vadd.f32 %v4560, %v4700
      %v4786 = vadd.f32 %v4561, %v4702
      %v4787 = vadd.f32 %v4562, %v4704
      %v4788 = vadd.f32 %v4563, %v4706
      %v4789 = vadd.f32 %v4564, %v4708
      %v4790 = vadd.f32 %v4565, %v4710
      %v4791 = vadd.f32 %v4566, %v4712
      %v4792 = vadd.f32 %v4567, %v4714
      %v4793 = vadd.f32 %v4568, %v4716
      %v4794 = vadd.f32 %v4569, %v4718
      %v4795 = vadd.f32 %v4570, %v4720
      %v4796 = vadd.f32 %v4571, %v4722
      %v4797 = vld [vmem:[#allocation2 + $0x30] sm:$0x80]
      %v4798 = vld [vmem:[#allocation2 + $0x250] sm:$0xff]
      %v4799 = vld [vmem:[#allocation2 + $0x260] sm:$0xff]
      %v4800 = vld [vmem:[#allocation2 + $0x270] sm:$0x7f]
      %v4805 = vrot.slane %v4797, 2
      %v4806 = vsel %vm1968, %v4805, %v4581
      %v4807 = vrot.slane %v4798, 2
      %v4808 = vsel %vm1968, %v4645, %v4807
      %v4809 = vrot.slane %v4799, 2
      %v4810 = vsel %vm1968, %v4807, %v4809
      %v4811 = vrot.slane %v4800, 2
      %v4812 = vsel %vm1968, %v4809, %v4811
      %4813 = vrot.lane.b32.xlu0 %v4806, 80
      %v4814 = vpop.permute.xlu0 %4813
      %4815 = vrot.lane.b32.xlu0 %v4584, 80
      %v4816 = vpop.permute.xlu0 %4815
      %4817 = vrot.lane.b32.xlu0 %v4586, 80
      %v4818 = vpop.permute.xlu0 %4817
      %4819 = vrot.lane.b32.xlu0 %v4588, 80
      %v4820 = vpop.permute.xlu0 %4819
      %4821 = vrot.lane.b32.xlu0 %v4590, 80
      %v4822 = vpop.permute.xlu0 %4821
      %4823 = vrot.lane.b32.xlu0 %v4592, 80
      %v4824 = vpop.permute.xlu0 %4823
      %4825 = vrot.lane.b32.xlu0 %v4594, 80
      %v4826 = vpop.permute.xlu0 %4825
      %4827 = vrot.lane.b32.xlu0 %v4596, 80
      %v4828 = vpop.permute.xlu0 %4827
      %4829 = vrot.lane.b32.xlu0 %v4598, 80
      %v4830 = vpop.permute.xlu0 %4829
      %4831 = vrot.lane.b32.xlu0 %v4600, 80
      %v4832 = vpop.permute.xlu0 %4831
      %4833 = vrot.lane.b32.xlu0 %v4602, 80
      %v4834 = vpop.permute.xlu0 %4833
      %4835 = vrot.lane.b32.xlu0 %v4604, 80
      %v4836 = vpop.permute.xlu0 %4835
      %4837 = vrot.lane.b32.xlu0 %v4606, 80
      %v4838 = vpop.permute.xlu0 %4837
      %4839 = vrot.lane.b32.xlu0 %v4608, 80
      %v4840 = vpop.permute.xlu0 %4839
      %4841 = vrot.lane.b32.xlu0 %v4610, 80
      %v4842 = vpop.permute.xlu0 %4841
      %4843 = vrot.lane.b32.xlu0 %v4612, 80
      %v4844 = vpop.permute.xlu0 %4843
      %4845 = vrot.lane.b32.xlu0 %v4614, 80
      %v4846 = vpop.permute.xlu0 %4845
      %4847 = vrot.lane.b32.xlu0 %v4616, 80
      %v4848 = vpop.permute.xlu0 %4847
      %4849 = vrot.lane.b32.xlu0 %v4618, 80
      %v4850 = vpop.permute.xlu0 %4849
      %4851 = vrot.lane.b32.xlu0 %v4620, 80
      %v4852 = vpop.permute.xlu0 %4851
      %4853 = vrot.lane.b32.xlu0 %v4622, 80
      %v4854 = vpop.permute.xlu0 %4853
      %4855 = vrot.lane.b32.xlu0 %v4624, 80
      %v4856 = vpop.permute.xlu0 %4855
      %4857 = vrot.lane.b32.xlu0 %v4626, 80
      %v4858 = vpop.permute.xlu0 %4857
      %4859 = vrot.lane.b32.xlu0 %v4628, 80
      %v4860 = vpop.permute.xlu0 %4859
      %4861 = vrot.lane.b32.xlu0 %v4630, 80
      %v4862 = vpop.permute.xlu0 %4861
      %4863 = vrot.lane.b32.xlu0 %v4632, 80
      %v4864 = vpop.permute.xlu0 %4863
      %4865 = vrot.lane.b32.xlu0 %v4634, 80
      %v4866 = vpop.permute.xlu0 %4865
      %4867 = vrot.lane.b32.xlu0 %v4636, 80
      %v4868 = vpop.permute.xlu0 %4867
      %4869 = vrot.lane.b32.xlu0 %v4638, 80
      %v4870 = vpop.permute.xlu0 %4869
      %4871 = vrot.lane.b32.xlu0 %v4640, 80
      %v4872 = vpop.permute.xlu0 %4871
      %4873 = vrot.lane.b32.xlu0 %v4642, 80
      %v4874 = vpop.permute.xlu0 %4873
      %4875 = vrot.lane.b32.xlu0 %v4644, 80
      %v4876 = vpop.permute.xlu0 %4875
      %4877 = vrot.lane.b32.xlu0 %v4646, 80
      %v4878 = vpop.permute.xlu0 %4877
      %4879 = vrot.lane.b32.xlu0 %v4808, 80
      %v4880 = vpop.permute.xlu0 %4879
      %4881 = vrot.lane.b32.xlu0 %v4810, 80
      %v4882 = vpop.permute.xlu0 %4881
      %4883 = vrot.lane.b32.xlu0 %v4812, 80
      %v4884 = vpop.permute.xlu0 %4883
      %4885 = vrot.lane.b32.xlu0 %v4811, 80
      %v4886 = vpop.permute.xlu0 %4885
      %v4924 = vadd.f32 %v4760, %v4814
      %v4925 = vadd.f32 %v4761, %v4816
      %v4926 = vadd.f32 %v4762, %v4818
      %v4927 = vadd.f32 %v4763, %v4820
      %v4928 = vadd.f32 %v4764, %v4822
      %v4929 = vadd.f32 %v4765, %v4824
      %v4930 = vadd.f32 %v4766, %v4826
      %v4931 = vadd.f32 %v4767, %v4828
      %v4932 = vadd.f32 %v4768, %v4830
      %v4933 = vadd.f32 %v4769, %v4832
      %v4934 = vadd.f32 %v4770, %v4834
      %v4935 = vadd.f32 %v4771, %v4836
      %v4936 = vadd.f32 %v4772, %v4838
      %v4937 = vadd.f32 %v4773, %v4840
      %v4938 = vadd.f32 %v4774, %v4842
      %v4939 = vadd.f32 %v4775, %v4844
      %v4940 = vadd.f32 %v4776, %v4846
      %v4941 = vadd.f32 %v4777, %v4848
      %v4942 = vadd.f32 %v4778, %v4850
      %v4943 = vadd.f32 %v4779, %v4852
      %v4944 = vadd.f32 %v4780, %v4854
      %v4945 = vadd.f32 %v4781, %v4856
      %v4946 = vadd.f32 %v4782, %v4858
      %v4947 = vadd.f32 %v4783, %v4860
      %v4948 = vadd.f32 %v4784, %v4862
      %v4949 = vadd.f32 %v4785, %v4864
      %v4950 = vadd.f32 %v4786, %v4866
      %v4951 = vadd.f32 %v4787, %v4868
      %v4952 = vadd.f32 %v4788, %v4870
      %v4953 = vadd.f32 %v4789, %v4872
      %v4954 = vadd.f32 %v4790, %v4874
      %v4955 = vadd.f32 %v4791, %v4876
      %v4956 = vadd.f32 %v4792, %v4878
      %v4957 = vadd.f32 %v4793, %v4880
      %v4958 = vadd.f32 %v4794, %v4882
      %v4959 = vadd.f32 %v4795, %v4884
      %v4960 = vadd.f32 %v4796, %v4886
      %v4961 = vld [vmem:[#allocation2 + $0x270] sm:$0xff]
      %v4963 = vrot.slane %v4241, 3
      %v4964 = vrot.slane %v4242, 3
      %v4965 = vsel %vm1031, %v4963, %v4964
      %v4966 = vrot.slane %v4243, 3
      %v4967 = vsel %vm1031, %v4964, %v4966
      %v4968 = vrot.slane %v4244, 3
      %v4969 = vsel %vm1031, %v4966, %v4968
      %v4970 = vrot.slane %v4245, 3
      %v4971 = vsel %vm1031, %v4968, %v4970
      %v4972 = vrot.slane %v4246, 3
      %v4973 = vsel %vm1031, %v4970, %v4972
      %v4974 = vrot.slane %v4247, 3
      %v4975 = vsel %vm1031, %v4972, %v4974
      %v4976 = vrot.slane %v4248, 3
      %v4977 = vsel %vm1031, %v4974, %v4976
      %v4978 = vrot.slane %v4249, 3
      %v4979 = vsel %vm1031, %v4976, %v4978
      %v4980 = vrot.slane %v4250, 3
      %v4981 = vsel %vm1031, %v4978, %v4980
      %v4982 = vrot.slane %v4251, 3
      %v4983 = vsel %vm1031, %v4980, %v4982
      %v4984 = vrot.slane %v4252, 3
      %v4985 = vsel %vm1031, %v4982, %v4984
      %v4986 = vrot.slane %v4253, 3
      %v4987 = vsel %vm1031, %v4984, %v4986
      %v4988 = vrot.slane %v4254, 3
      %v4989 = vsel %vm1031, %v4986, %v4988
      %v4990 = vrot.slane %v4255, 3
      %v4991 = vsel %vm1031, %v4988, %v4990
      %v4992 = vrot.slane %v4256, 3
      %v4993 = vsel %vm1031, %v4990, %v4992
      %v4994 = vrot.slane %v4257, 3
      %v4995 = vsel %vm1031, %v4992, %v4994
      %v4996 = vrot.slane %v4258, 3
      %v4997 = vsel %vm1031, %v4994, %v4996
      %v4998 = vrot.slane %v4259, 3
      %v4999 = vsel %vm1031, %v4996, %v4998
      %v5000 = vrot.slane %v4260, 3
      %v5001 = vsel %vm1031, %v4998, %v5000
      %v5002 = vrot.slane %v4261, 3
      %v5003 = vsel %vm1031, %v5000, %v5002
      %v5004 = vrot.slane %v4262, 3
      %v5005 = vsel %vm1031, %v5002, %v5004
      %v5006 = vrot.slane %v4263, 3
      %v5007 = vsel %vm1031, %v5004, %v5006
      %v5008 = vrot.slane %v4264, 3
      %v5009 = vsel %vm1031, %v5006, %v5008
      %v5010 = vrot.slane %v4265, 3
      %v5011 = vsel %vm1031, %v5008, %v5010
      %v5012 = vrot.slane %v4266, 3
      %v5013 = vsel %vm1031, %v5010, %v5012
      %v5014 = vrot.slane %v4267, 3
      %v5015 = vsel %vm1031, %v5012, %v5014
      %v5016 = vrot.slane %v4268, 3
      %v5017 = vsel %vm1031, %v5014, %v5016
      %v5018 = vrot.slane %v4269, 3
      %v5019 = vsel %vm1031, %v5016, %v5018
      %v5020 = vrot.slane %v4270, 3
      %v5021 = vsel %vm1031, %v5018, %v5020
      %v5022 = vrot.slane %v4271, 3
      %v5023 = vsel %vm1031, %v5020, %v5022
      %v5024 = vrot.slane %v4272, 3
      %v5025 = vsel %vm1031, %v5022, %v5024
      %v5026 = vrot.slane %v4273, 3
      %v5027 = vsel %vm1031, %v5024, %v5026
      %v5028 = vrot.slane %v4798, 3
      %v5029 = vsel %vm1031, %v5026, %v5028
      %v5030 = vrot.slane %v4799, 3
      %v5031 = vsel %vm1031, %v5028, %v5030
      %v5032 = vrot.slane %v4961, 3
      %v5033 = vsel %vm1031, %v5030, %v5032
      %5034 = vrot.lane.b32.xlu0 %v4963, 64
      %v5035 = vpop.permute.xlu0 %5034
      %5036 = vrot.lane.b32.xlu0 %v4965, 64
      %v5037 = vpop.permute.xlu0 %5036
      %5038 = vrot.lane.b32.xlu0 %v4967, 64
      %v5039 = vpop.permute.xlu0 %5038
      %5040 = vrot.lane.b32.xlu0 %v4969, 64
      %v5041 = vpop.permute.xlu0 %5040
      %5042 = vrot.lane.b32.xlu0 %v4971, 64
      %v5043 = vpop.permute.xlu0 %5042
      %5044 = vrot.lane.b32.xlu0 %v4973, 64
      %v5045 = vpop.permute.xlu0 %5044
      %5046 = vrot.lane.b32.xlu0 %v4975, 64
      %v5047 = vpop.permute.xlu0 %5046
      %5048 = vrot.lane.b32.xlu0 %v4977, 64
      %v5049 = vpop.permute.xlu0 %5048
      %5050 = vrot.lane.b32.xlu0 %v4979, 64
      %v5051 = vpop.permute.xlu0 %5050
      %5052 = vrot.lane.b32.xlu0 %v4981, 64
      %v5053 = vpop.permute.xlu0 %5052
      %5054 = vrot.lane.b32.xlu0 %v4983, 64
      %v5055 = vpop.permute.xlu0 %5054
      %5056 = vrot.lane.b32.xlu0 %v4985, 64
      %v5057 = vpop.permute.xlu0 %5056
      %5058 = vrot.lane.b32.xlu0 %v4987, 64
      %v5059 = vpop.permute.xlu0 %5058
      %5060 = vrot.lane.b32.xlu0 %v4989, 64
      %v5061 = vpop.permute.xlu0 %5060
      %5062 = vrot.lane.b32.xlu0 %v4991, 64
      %v5063 = vpop.permute.xlu0 %5062
      %5064 = vrot.lane.b32.xlu0 %v4993, 64
      %v5065 = vpop.permute.xlu0 %5064
      %5066 = vrot.lane.b32.xlu0 %v4995, 64
      %v5067 = vpop.permute.xlu0 %5066
      %5068 = vrot.lane.b32.xlu0 %v4997, 64
      %v5069 = vpop.permute.xlu0 %5068
      %5070 = vrot.lane.b32.xlu0 %v4999, 64
      %v5071 = vpop.permute.xlu0 %5070
      %5072 = vrot.lane.b32.xlu0 %v5001, 64
      %v5073 = vpop.permute.xlu0 %5072
      %5074 = vrot.lane.b32.xlu0 %v5003, 64
      %v5075 = vpop.permute.xlu0 %5074
      %5076 = vrot.lane.b32.xlu0 %v5005, 64
      %v5077 = vpop.permute.xlu0 %5076
      %5078 = vrot.lane.b32.xlu0 %v5007, 64
      %v5079 = vpop.permute.xlu0 %5078
      %5080 = vrot.lane.b32.xlu0 %v5009, 64
      %v5081 = vpop.permute.xlu0 %5080
      %5082 = vrot.lane.b32.xlu0 %v5011, 64
      %v5083 = vpop.permute.xlu0 %5082
      %5084 = vrot.lane.b32.xlu0 %v5013, 64
      %v5085 = vpop.permute.xlu0 %5084
      %5086 = vrot.lane.b32.xlu0 %v5015, 64
      %v5087 = vpop.permute.xlu0 %5086
      %5088 = vrot.lane.b32.xlu0 %v5017, 64
      %v5089 = vpop.permute.xlu0 %5088
      %5090 = vrot.lane.b32.xlu0 %v5019, 64
      %v5091 = vpop.permute.xlu0 %5090
      %5092 = vrot.lane.b32.xlu0 %v5021, 64
      %v5093 = vpop.permute.xlu0 %5092
      %5094 = vrot.lane.b32.xlu0 %v5023, 64
      %v5095 = vpop.permute.xlu0 %5094
      %5096 = vrot.lane.b32.xlu0 %v5025, 64
      %v5097 = vpop.permute.xlu0 %5096
      %5098 = vrot.lane.b32.xlu0 %v5027, 64
      %v5099 = vpop.permute.xlu0 %5098
      %5100 = vrot.lane.b32.xlu0 %v5029, 64
      %v5101 = vpop.permute.xlu0 %5100
      %5102 = vrot.lane.b32.xlu0 %v5031, 64
      %v5103 = vpop.permute.xlu0 %5102
      %5104 = vrot.lane.b32.xlu0 %v5033, 64
      %v5105 = vpop.permute.xlu0 %5104
      %5106 = vrot.lane.b32.xlu0 %v5032, 64
      %v5107 = vpop.permute.xlu0 %5106
      %v5145 = vadd.f32 %v4924, %v5035
      %v5146 = vadd.f32 %v4925, %v5037
      %v5147 = vadd.f32 %v4926, %v5039
      %v5148 = vadd.f32 %v4927, %v5041
      %v5149 = vadd.f32 %v4928, %v5043
      %v5150 = vadd.f32 %v4929, %v5045
      %v5151 = vadd.f32 %v4930, %v5047
      %v5152 = vadd.f32 %v4931, %v5049
      %v5153 = vadd.f32 %v4932, %v5051
      %v5154 = vadd.f32 %v4933, %v5053
      %v5155 = vadd.f32 %v4934, %v5055
      %v5156 = vadd.f32 %v4935, %v5057
      %v5157 = vadd.f32 %v4936, %v5059
      %v5158 = vadd.f32 %v4937, %v5061
      %v5159 = vadd.f32 %v4938, %v5063
      %v5160 = vadd.f32 %v4939, %v5065
      %v5161 = vadd.f32 %v4940, %v5067
      %v5162 = vadd.f32 %v4941, %v5069
      %v5163 = vadd.f32 %v4942, %v5071
      %v5164 = vadd.f32 %v4943, %v5073
      %v5165 = vadd.f32 %v4944, %v5075
      %v5166 = vadd.f32 %v4945, %v5077
      %v5167 = vadd.f32 %v4946, %v5079
      %v5168 = vadd.f32 %v4947, %v5081
      %v5169 = vadd.f32 %v4948, %v5083
      %v5170 = vadd.f32 %v4949, %v5085
      %v5171 = vadd.f32 %v4950, %v5087
      %v5172 = vadd.f32 %v4951, %v5089
      %v5173 = vadd.f32 %v4952, %v5091
      %v5174 = vadd.f32 %v4953, %v5093
      %v5175 = vadd.f32 %v4954, %v5095
      %v5176 = vadd.f32 %v4955, %v5097
      %v5177 = vadd.f32 %v4956, %v5099
      %v5178 = vadd.f32 %v4957, %v5101
      %v5179 = vadd.f32 %v4958, %v5103
      %v5180 = vadd.f32 %v4959, %v5105
      %v5181 = vadd.f32 %v4960, %v5107
      %v5182 = vld [vmem:[#allocation2 + $0x40] sm:$0xfe]
      %v5183 = vld [vmem:[#allocation2 + $0x280] sm:$0x1]
      %v5186 = vrot.slane %v5182, 4
      %v5187 = vrot.slane %v4242, 4
      %v5188 = vsel %vm1030, %v5186, %v5187
      %v5189 = vrot.slane %v4243, 4
      %v5190 = vsel %vm1030, %v5187, %v5189
      %v5191 = vrot.slane %v4244, 4
      %v5192 = vsel %vm1030, %v5189, %v5191
      %v5193 = vrot.slane %v4245, 4
      %v5194 = vsel %vm1030, %v5191, %v5193
      %v5195 = vrot.slane %v4246, 4
      %v5196 = vsel %vm1030, %v5193, %v5195
      %v5197 = vrot.slane %v4247, 4
      %v5198 = vsel %vm1030, %v5195, %v5197
      %v5199 = vrot.slane %v4248, 4
      %v5200 = vsel %vm1030, %v5197, %v5199
      %v5201 = vrot.slane %v4249, 4
      %v5202 = vsel %vm1030, %v5199, %v5201
      %v5203 = vrot.slane %v4250, 4
      %v5204 = vsel %vm1030, %v5201, %v5203
      %v5205 = vrot.slane %v4251, 4
      %v5206 = vsel %vm1030, %v5203, %v5205
      %v5207 = vrot.slane %v4252, 4
      %v5208 = vsel %vm1030, %v5205, %v5207
      %v5209 = vrot.slane %v4253, 4
      %v5210 = vsel %vm1030, %v5207, %v5209
      %v5211 = vrot.slane %v4254, 4
      %v5212 = vsel %vm1030, %v5209, %v5211
      %v5213 = vrot.slane %v4255, 4
      %v5214 = vsel %vm1030, %v5211, %v5213
      %v5215 = vrot.slane %v4256, 4
      %v5216 = vsel %vm1030, %v5213, %v5215
      %v5217 = vrot.slane %v4257, 4
      %v5218 = vsel %vm1030, %v5215, %v5217
      %v5219 = vrot.slane %v4258, 4
      %v5220 = vsel %vm1030, %v5217, %v5219
      %v5221 = vrot.slane %v4259, 4
      %v5222 = vsel %vm1030, %v5219, %v5221
      %v5223 = vrot.slane %v4260, 4
      %v5224 = vsel %vm1030, %v5221, %v5223
      %v5225 = vrot.slane %v4261, 4
      %v5226 = vsel %vm1030, %v5223, %v5225
      %v5227 = vrot.slane %v4262, 4
      %v5228 = vsel %vm1030, %v5225, %v5227
      %v5229 = vrot.slane %v4263, 4
      %v5230 = vsel %vm1030, %v5227, %v5229
      %v5231 = vrot.slane %v4264, 4
      %v5232 = vsel %vm1030, %v5229, %v5231
      %v5233 = vrot.slane %v4265, 4
      %v5234 = vsel %vm1030, %v5231, %v5233
      %v5235 = vrot.slane %v4266, 4
      %v5236 = vsel %vm1030, %v5233, %v5235
      %v5237 = vrot.slane %v4267, 4
      %v5238 = vsel %vm1030, %v5235, %v5237
      %v5239 = vrot.slane %v4268, 4
      %v5240 = vsel %vm1030, %v5237, %v5239
      %v5241 = vrot.slane %v4269, 4
      %v5242 = vsel %vm1030, %v5239, %v5241
      %v5243 = vrot.slane %v4270, 4
      %v5244 = vsel %vm1030, %v5241, %v5243
      %v5245 = vrot.slane %v4271, 4
      %v5246 = vsel %vm1030, %v5243, %v5245
      %v5247 = vrot.slane %v4272, 4
      %v5248 = vsel %vm1030, %v5245, %v5247
      %v5249 = vrot.slane %v4273, 4
      %v5250 = vsel %vm1030, %v5247, %v5249
      %v5251 = vrot.slane %v4798, 4
      %v5252 = vsel %vm1030, %v5249, %v5251
      %v5253 = vrot.slane %v4799, 4
      %v5254 = vsel %vm1030, %v5251, %v5253
      %v5255 = vrot.slane %v4961, 4
      %v5256 = vsel %vm1030, %v5253, %v5255
      %v5257 = vrot.slane %v5183, 4
      %v5258 = vsel %vm1030, %v5255, %v5257
      %5259 = vrot.lane.b32.xlu0 %v5186, 48
      %v5260 = vpop.permute.xlu0 %5259
      %5261 = vrot.lane.b32.xlu0 %v5188, 48
      %v5262 = vpop.permute.xlu0 %5261
      %5263 = vrot.lane.b32.xlu0 %v5190, 48
      %v5264 = vpop.permute.xlu0 %5263
      %5265 = vrot.lane.b32.xlu0 %v5192, 48
      %v5266 = vpop.permute.xlu0 %5265
      %5267 = vrot.lane.b32.xlu0 %v5194, 48
      %v5268 = vpop.permute.xlu0 %5267
      %5269 = vrot.lane.b32.xlu0 %v5196, 48
      %v5270 = vpop.permute.xlu0 %5269
      %5271 = vrot.lane.b32.xlu0 %v5198, 48
      %v5272 = vpop.permute.xlu0 %5271
      %5273 = vrot.lane.b32.xlu0 %v5200, 48
      %v5274 = vpop.permute.xlu0 %5273
      %5275 = vrot.lane.b32.xlu0 %v5202, 48
      %v5276 = vpop.permute.xlu0 %5275
      %5277 = vrot.lane.b32.xlu0 %v5204, 48
      %v5278 = vpop.permute.xlu0 %5277
      %5279 = vrot.lane.b32.xlu0 %v5206, 48
      %v5280 = vpop.permute.xlu0 %5279
      %5281 = vrot.lane.b32.xlu0 %v5208, 48
      %v5282 = vpop.permute.xlu0 %5281
      %5283 = vrot.lane.b32.xlu0 %v5210, 48
      %v5284 = vpop.permute.xlu0 %5283
      %5285 = vrot.lane.b32.xlu0 %v5212, 48
      %v5286 = vpop.permute.xlu0 %5285
      %5287 = vrot.lane.b32.xlu0 %v5214, 48
      %v5288 = vpop.permute.xlu0 %5287
      %5289 = vrot.lane.b32.xlu0 %v5216, 48
      %v5290 = vpop.permute.xlu0 %5289
      %5291 = vrot.lane.b32.xlu0 %v5218, 48
      %v5292 = vpop.permute.xlu0 %5291
      %5293 = vrot.lane.b32.xlu0 %v5220, 48
      %v5294 = vpop.permute.xlu0 %5293
      %5295 = vrot.lane.b32.xlu0 %v5222, 48
      %v5296 = vpop.permute.xlu0 %5295
      %5297 = vrot.lane.b32.xlu0 %v5224, 48
      %v5298 = vpop.permute.xlu0 %5297
      %5299 = vrot.lane.b32.xlu0 %v5226, 48
      %v5300 = vpop.permute.xlu0 %5299
      %5301 = vrot.lane.b32.xlu0 %v5228, 48
      %v5302 = vpop.permute.xlu0 %5301
      %5303 = vrot.lane.b32.xlu0 %v5230, 48
      %v5304 = vpop.permute.xlu0 %5303
      %5305 = vrot.lane.b32.xlu0 %v5232, 48
      %v5306 = vpop.permute.xlu0 %5305
      %5307 = vrot.lane.b32.xlu0 %v5234, 48
      %v5308 = vpop.permute.xlu0 %5307
      %5309 = vrot.lane.b32.xlu0 %v5236, 48
      %v5310 = vpop.permute.xlu0 %5309
      %5311 = vrot.lane.b32.xlu0 %v5238, 48
      %v5312 = vpop.permute.xlu0 %5311
      %5313 = vrot.lane.b32.xlu0 %v5240, 48
      %v5314 = vpop.permute.xlu0 %5313
      %5315 = vrot.lane.b32.xlu0 %v5242, 48
      %v5316 = vpop.permute.xlu0 %5315
      %5317 = vrot.lane.b32.xlu0 %v5244, 48
      %v5318 = vpop.permute.xlu0 %5317
      %5319 = vrot.lane.b32.xlu0 %v5246, 48
      %v5320 = vpop.permute.xlu0 %5319
      %5321 = vrot.lane.b32.xlu0 %v5248, 48
      %v5322 = vpop.permute.xlu0 %5321
      %5323 = vrot.lane.b32.xlu0 %v5250, 48
      %v5324 = vpop.permute.xlu0 %5323
      %5325 = vrot.lane.b32.xlu0 %v5252, 48
      %v5326 = vpop.permute.xlu0 %5325
      %5327 = vrot.lane.b32.xlu0 %v5254, 48
      %v5328 = vpop.permute.xlu0 %5327
      %5329 = vrot.lane.b32.xlu0 %v5256, 48
      %v5330 = vpop.permute.xlu0 %5329
      %5331 = vrot.lane.b32.xlu0 %v5258, 48
      %v5332 = vpop.permute.xlu0 %5331
      %v5370 = vadd.f32 %v5145, %v5260
      %v5371 = vadd.f32 %v5146, %v5262
      %v5372 = vadd.f32 %v5147, %v5264
      %v5373 = vadd.f32 %v5148, %v5266
      %v5374 = vadd.f32 %v5149, %v5268
      %v5375 = vadd.f32 %v5150, %v5270
      %v5376 = vadd.f32 %v5151, %v5272
      %v5377 = vadd.f32 %v5152, %v5274
      %v5378 = vadd.f32 %v5153, %v5276
      %v5379 = vadd.f32 %v5154, %v5278
      %v5380 = vadd.f32 %v5155, %v5280
      %v5381 = vadd.f32 %v5156, %v5282
      %v5382 = vadd.f32 %v5157, %v5284
      %v5383 = vadd.f32 %v5158, %v5286
      %v5384 = vadd.f32 %v5159, %v5288
      %v5385 = vadd.f32 %v5160, %v5290
      %v5386 = vadd.f32 %v5161, %v5292
      %v5387 = vadd.f32 %v5162, %v5294
      %v5388 = vadd.f32 %v5163, %v5296
      %v5389 = vadd.f32 %v5164, %v5298
      %v5390 = vadd.f32 %v5165, %v5300
      %v5391 = vadd.f32 %v5166, %v5302
      %v5392 = vadd.f32 %v5167, %v5304
      %v5393 = vadd.f32 %v5168, %v5306
      %v5394 = vadd.f32 %v5169, %v5308
      %v5395 = vadd.f32 %v5170, %v5310
      %v5396 = vadd.f32 %v5171, %v5312
      %v5397 = vadd.f32 %v5172, %v5314
      %v5398 = vadd.f32 %v5173, %v5316
      %v5399 = vadd.f32 %v5174, %v5318
      %v5400 = vadd.f32 %v5175, %v5320
      %v5401 = vadd.f32 %v5176, %v5322
      %v5402 = vadd.f32 %v5177, %v5324
      %v5403 = vadd.f32 %v5178, %v5326
      %v5404 = vadd.f32 %v5179, %v5328
      %v5405 = vadd.f32 %v5180, %v5330
      %v5406 = vadd.f32 %v5181, %v5332
      %v5407 = vld [vmem:[#allocation2 + $0x60] sm:$0xfe]
      %v5408 = vld [vmem:[#allocation2 + $0x280] sm:$0xff]
      %v5409 = vld [vmem:[#allocation2 + $0x290] sm:$0xff]
      %v5410 = vld [vmem:[#allocation2 + $0x2a0] sm:$0x1]
      %v5415 = vrot.slane %v5407, 4
      %v5416 = vsel %vm1030, %v5415, %v5191
      %v5417 = vrot.slane %v5408, 4
      %v5418 = vsel %vm1030, %v5255, %v5417
      %v5419 = vrot.slane %v5409, 4
      %v5420 = vsel %vm1030, %v5417, %v5419
      %v5421 = vrot.slane %v5410, 4
      %v5422 = vsel %vm1030, %v5419, %v5421
      %5423 = vrot.lane.b32.xlu0 %v5415, 32
      %v5424 = vpop.permute.xlu0 %5423
      %5425 = vrot.lane.b32.xlu0 %v5416, 32
      %v5426 = vpop.permute.xlu0 %5425
      %5427 = vrot.lane.b32.xlu0 %v5194, 32
      %v5428 = vpop.permute.xlu0 %5427
      %5429 = vrot.lane.b32.xlu0 %v5196, 32
      %v5430 = vpop.permute.xlu0 %5429
      %5431 = vrot.lane.b32.xlu0 %v5198, 32
      %v5432 = vpop.permute.xlu0 %5431
      %5433 = vrot.lane.b32.xlu0 %v5200, 32
      %v5434 = vpop.permute.xlu0 %5433
      %5435 = vrot.lane.b32.xlu0 %v5202, 32
      %v5436 = vpop.permute.xlu0 %5435
      %5437 = vrot.lane.b32.xlu0 %v5204, 32
      %v5438 = vpop.permute.xlu0 %5437
      %5439 = vrot.lane.b32.xlu0 %v5206, 32
      %v5440 = vpop.permute.xlu0 %5439
      %5441 = vrot.lane.b32.xlu0 %v5208, 32
      %v5442 = vpop.permute.xlu0 %5441
      %5443 = vrot.lane.b32.xlu0 %v5210, 32
      %v5444 = vpop.permute.xlu0 %5443
      %5445 = vrot.lane.b32.xlu0 %v5212, 32
      %v5446 = vpop.permute.xlu0 %5445
      %5447 = vrot.lane.b32.xlu0 %v5214, 32
      %v5448 = vpop.permute.xlu0 %5447
      %5449 = vrot.lane.b32.xlu0 %v5216, 32
      %v5450 = vpop.permute.xlu0 %5449
      %5451 = vrot.lane.b32.xlu0 %v5218, 32
      %v5452 = vpop.permute.xlu0 %5451
      %5453 = vrot.lane.b32.xlu0 %v5220, 32
      %v5454 = vpop.permute.xlu0 %5453
      %5455 = vrot.lane.b32.xlu0 %v5222, 32
      %v5456 = vpop.permute.xlu0 %5455
      %5457 = vrot.lane.b32.xlu0 %v5224, 32
      %v5458 = vpop.permute.xlu0 %5457
      %5459 = vrot.lane.b32.xlu0 %v5226, 32
      %v5460 = vpop.permute.xlu0 %5459
      %5461 = vrot.lane.b32.xlu0 %v5228, 32
      %v5462 = vpop.permute.xlu0 %5461
      %5463 = vrot.lane.b32.xlu0 %v5230, 32
      %v5464 = vpop.permute.xlu0 %5463
      %5465 = vrot.lane.b32.xlu0 %v5232, 32
      %v5466 = vpop.permute.xlu0 %5465
      %5467 = vrot.lane.b32.xlu0 %v5234, 32
      %v5468 = vpop.permute.xlu0 %5467
      %5469 = vrot.lane.b32.xlu0 %v5236, 32
      %v5470 = vpop.permute.xlu0 %5469
      %5471 = vrot.lane.b32.xlu0 %v5238, 32
      %v5472 = vpop.permute.xlu0 %5471
      %5473 = vrot.lane.b32.xlu0 %v5240, 32
      %v5474 = vpop.permute.xlu0 %5473
      %5475 = vrot.lane.b32.xlu0 %v5242, 32
      %v5476 = vpop.permute.xlu0 %5475
      %5477 = vrot.lane.b32.xlu0 %v5244, 32
      %v5478 = vpop.permute.xlu0 %5477
      %5479 = vrot.lane.b32.xlu0 %v5246, 32
      %v5480 = vpop.permute.xlu0 %5479
      %5481 = vrot.lane.b32.xlu0 %v5248, 32
      %v5482 = vpop.permute.xlu0 %5481
      %5483 = vrot.lane.b32.xlu0 %v5250, 32
      %v5484 = vpop.permute.xlu0 %5483
      %5485 = vrot.lane.b32.xlu0 %v5252, 32
      %v5486 = vpop.permute.xlu0 %5485
      %5487 = vrot.lane.b32.xlu0 %v5254, 32
      %v5488 = vpop.permute.xlu0 %5487
      %5489 = vrot.lane.b32.xlu0 %v5256, 32
      %v5490 = vpop.permute.xlu0 %5489
      %5491 = vrot.lane.b32.xlu0 %v5418, 32
      %v5492 = vpop.permute.xlu0 %5491
      %5493 = vrot.lane.b32.xlu0 %v5420, 32
      %v5494 = vpop.permute.xlu0 %5493
      %5495 = vrot.lane.b32.xlu0 %v5422, 32
      %v5496 = vpop.permute.xlu0 %5495
      %v5534 = vadd.f32 %v5370, %v5424
      %v5535 = vadd.f32 %v5371, %v5426
      %v5536 = vadd.f32 %v5372, %v5428
      %v5537 = vadd.f32 %v5373, %v5430
      %v5538 = vadd.f32 %v5374, %v5432
      %v5539 = vadd.f32 %v5375, %v5434
      %v5540 = vadd.f32 %v5376, %v5436
      %v5541 = vadd.f32 %v5377, %v5438
      %v5542 = vadd.f32 %v5378, %v5440
      %v5543 = vadd.f32 %v5379, %v5442
      %v5544 = vadd.f32 %v5380, %v5444
      %v5545 = vadd.f32 %v5381, %v5446
      %v5546 = vadd.f32 %v5382, %v5448
      %v5547 = vadd.f32 %v5383, %v5450
      %v5548 = vadd.f32 %v5384, %v5452
      %v5549 = vadd.f32 %v5385, %v5454
      %v5550 = vadd.f32 %v5386, %v5456
      %v5551 = vadd.f32 %v5387, %v5458
      %v5552 = vadd.f32 %v5388, %v5460
      %v5553 = vadd.f32 %v5389, %v5462
      %v5554 = vadd.f32 %v5390, %v5464
      %v5555 = vadd.f32 %v5391, %v5466
      %v5556 = vadd.f32 %v5392, %v5468
      %v5557 = vadd.f32 %v5393, %v5470
      %v5558 = vadd.f32 %v5394, %v5472
      %v5559 = vadd.f32 %v5395, %v5474
      %v5560 = vadd.f32 %v5396, %v5476
      %v5561 = vadd.f32 %v5397, %v5478
      %v5562 = vadd.f32 %v5398, %v5480
      %v5563 = vadd.f32 %v5399, %v5482
      %v5564 = vadd.f32 %v5400, %v5484
      %v5565 = vadd.f32 %v5401, %v5486
      %v5566 = vadd.f32 %v5402, %v5488
      %v5567 = vadd.f32 %v5403, %v5490
      %v5568 = vadd.f32 %v5404, %v5492
      %v5569 = vadd.f32 %v5405, %v5494
      %v5570 = vadd.f32 %v5406, %v5496
      %v5571 = vld [vmem:[#allocation2 + $0x60] sm:$0xfc]
      %v5572 = vld [vmem:[#allocation2 + $0x2a0] sm:$0x3]
      %v5575 = vrot.slane %v5571, 5
      %v5576 = vrot.slane %v4244, 5
      %v5577 = vsel %vm2952, %v5575, %v5576
      %v5578 = vrot.slane %v4245, 5
      %v5579 = vsel %vm2952, %v5576, %v5578
      %v5580 = vrot.slane %v4246, 5
      %v5581 = vsel %vm2952, %v5578, %v5580
      %v5582 = vrot.slane %v4247, 5
      %v5583 = vsel %vm2952, %v5580, %v5582
      %v5584 = vrot.slane %v4248, 5
      %v5585 = vsel %vm2952, %v5582, %v5584
      %v5586 = vrot.slane %v4249, 5
      %v5587 = vsel %vm2952, %v5584, %v5586
      %v5588 = vrot.slane %v4250, 5
      %v5589 = vsel %vm2952, %v5586, %v5588
      %v5590 = vrot.slane %v4251, 5
      %v5591 = vsel %vm2952, %v5588, %v5590
      %v5592 = vrot.slane %v4252, 5
      %v5593 = vsel %vm2952, %v5590, %v5592
      %v5594 = vrot.slane %v4253, 5
      %v5595 = vsel %vm2952, %v5592, %v5594
      %v5596 = vrot.slane %v4254, 5
      %v5597 = vsel %vm2952, %v5594, %v5596
      %v5598 = vrot.slane %v4255, 5
      %v5599 = vsel %vm2952, %v5596, %v5598
      %v5600 = vrot.slane %v4256, 5
      %v5601 = vsel %vm2952, %v5598, %v5600
      %v5602 = vrot.slane %v4257, 5
      %v5603 = vsel %vm2952, %v5600, %v5602
      %v5604 = vrot.slane %v4258, 5
      %v5605 = vsel %vm2952, %v5602, %v5604
      %v5606 = vrot.slane %v4259, 5
      %v5607 = vsel %vm2952, %v5604, %v5606
      %v5608 = vrot.slane %v4260, 5
      %v5609 = vsel %vm2952, %v5606, %v5608
      %v5610 = vrot.slane %v4261, 5
      %v5611 = vsel %vm2952, %v5608, %v5610
      %v5612 = vrot.slane %v4262, 5
      %v5613 = vsel %vm2952, %v5610, %v5612
      %v5614 = vrot.slane %v4263, 5
      %v5615 = vsel %vm2952, %v5612, %v5614
      %v5616 = vrot.slane %v4264, 5
      %v5617 = vsel %vm2952, %v5614, %v5616
      %v5618 = vrot.slane %v4265, 5
      %v5619 = vsel %vm2952, %v5616, %v5618
      %v5620 = vrot.slane %v4266, 5
      %v5621 = vsel %vm2952, %v5618, %v5620
      %v5622 = vrot.slane %v4267, 5
      %v5623 = vsel %vm2952, %v5620, %v5622
      %v5624 = vrot.slane %v4268, 5
      %v5625 = vsel %vm2952, %v5622, %v5624
      %v5626 = vrot.slane %v4269, 5
      %v5627 = vsel %vm2952, %v5624, %v5626
      %v5628 = vrot.slane %v4270, 5
      %v5629 = vsel %vm2952, %v5626, %v5628
      %v5630 = vrot.slane %v4271, 5
      %v5631 = vsel %vm2952, %v5628, %v5630
      %v5632 = vrot.slane %v4272, 5
      %v5633 = vsel %vm2952, %v5630, %v5632
      %v5634 = vrot.slane %v4273, 5
      %v5635 = vsel %vm2952, %v5632, %v5634
      %v5636 = vrot.slane %v4798, 5
      %v5637 = vsel %vm2952, %v5634, %v5636
      %v5638 = vrot.slane %v4799, 5
      %v5639 = vsel %vm2952, %v5636, %v5638
      %v5640 = vrot.slane %v4961, 5
      %v5641 = vsel %vm2952, %v5638, %v5640
      %v5642 = vrot.slane %v5408, 5
      %v5643 = vsel %vm2952, %v5640, %v5642
      %v5644 = vrot.slane %v5409, 5
      %v5645 = vsel %vm2952, %v5642, %v5644
      %v5646 = vrot.slane %v5572, 5
      %v5647 = vsel %vm2952, %v5644, %v5646
      %5648 = vrot.lane.b32.xlu0 %v5575, 16
      %v5649 = vpop.permute.xlu0 %5648
      %5650 = vrot.lane.b32.xlu0 %v5577, 16
      %v5651 = vpop.permute.xlu0 %5650
      %5652 = vrot.lane.b32.xlu0 %v5579, 16
      %v5653 = vpop.permute.xlu0 %5652
      %5654 = vrot.lane.b32.xlu0 %v5581, 16
      %v5655 = vpop.permute.xlu0 %5654
      %5656 = vrot.lane.b32.xlu0 %v5583, 16
      %v5657 = vpop.permute.xlu0 %5656
      %5658 = vrot.lane.b32.xlu0 %v5585, 16
      %v5659 = vpop.permute.xlu0 %5658
      %5660 = vrot.lane.b32.xlu0 %v5587, 16
      %v5661 = vpop.permute.xlu0 %5660
      %5662 = vrot.lane.b32.xlu0 %v5589, 16
      %v5663 = vpop.permute.xlu0 %5662
      %5664 = vrot.lane.b32.xlu0 %v5591, 16
      %v5665 = vpop.permute.xlu0 %5664
      %5666 = vrot.lane.b32.xlu0 %v5593, 16
      %v5667 = vpop.permute.xlu0 %5666
      %5668 = vrot.lane.b32.xlu0 %v5595, 16
      %v5669 = vpop.permute.xlu0 %5668
      %5670 = vrot.lane.b32.xlu0 %v5597, 16
      %v5671 = vpop.permute.xlu0 %5670
      %5672 = vrot.lane.b32.xlu0 %v5599, 16
      %v5673 = vpop.permute.xlu0 %5672
      %5674 = vrot.lane.b32.xlu0 %v5601, 16
      %v5675 = vpop.permute.xlu0 %5674
      %5676 = vrot.lane.b32.xlu0 %v5603, 16
      %v5677 = vpop.permute.xlu0 %5676
      %5678 = vrot.lane.b32.xlu0 %v5605, 16
      %v5679 = vpop.permute.xlu0 %5678
      %5680 = vrot.lane.b32.xlu0 %v5607, 16
      %v5681 = vpop.permute.xlu0 %5680
      %5682 = vrot.lane.b32.xlu0 %v5609, 16
      %v5683 = vpop.permute.xlu0 %5682
      %5684 = vrot.lane.b32.xlu0 %v5611, 16
      %v5685 = vpop.permute.xlu0 %5684
      %5686 = vrot.lane.b32.xlu0 %v5613, 16
      %v5687 = vpop.permute.xlu0 %5686
      %5688 = vrot.lane.b32.xlu0 %v5615, 16
      %v5689 = vpop.permute.xlu0 %5688
      %5690 = vrot.lane.b32.xlu0 %v5617, 16
      %v5691 = vpop.permute.xlu0 %5690
      %5692 = vrot.lane.b32.xlu0 %v5619, 16
      %v5693 = vpop.permute.xlu0 %5692
      %5694 = vrot.lane.b32.xlu0 %v5621, 16
      %v5695 = vpop.permute.xlu0 %5694
      %5696 = vrot.lane.b32.xlu0 %v5623, 16
      %v5697 = vpop.permute.xlu0 %5696
      %5698 = vrot.lane.b32.xlu0 %v5625, 16
      %v5699 = vpop.permute.xlu0 %5698
      %5700 = vrot.lane.b32.xlu0 %v5627, 16
      %v5701 = vpop.permute.xlu0 %5700
      %5702 = vrot.lane.b32.xlu0 %v5629, 16
      %v5703 = vpop.permute.xlu0 %5702
      %5704 = vrot.lane.b32.xlu0 %v5631, 16
      %v5705 = vpop.permute.xlu0 %5704
      %5706 = vrot.lane.b32.xlu0 %v5633, 16
      %v5707 = vpop.permute.xlu0 %5706
      %5708 = vrot.lane.b32.xlu0 %v5635, 16
      %v5709 = vpop.permute.xlu0 %5708
      %5710 = vrot.lane.b32.xlu0 %v5637, 16
      %v5711 = vpop.permute.xlu0 %5710
      %5712 = vrot.lane.b32.xlu0 %v5639, 16
      %v5713 = vpop.permute.xlu0 %5712
      %5714 = vrot.lane.b32.xlu0 %v5641, 16
      %v5715 = vpop.permute.xlu0 %5714
      %5716 = vrot.lane.b32.xlu0 %v5643, 16
      %v5717 = vpop.permute.xlu0 %5716
      %5718 = vrot.lane.b32.xlu0 %v5645, 16
      %v5719 = vpop.permute.xlu0 %5718
      %5720 = vrot.lane.b32.xlu0 %v5647, 16
      %v5721 = vpop.permute.xlu0 %5720
      %v5759 = vadd.f32 %v5534, %v5649
      %v5760 = vadd.f32 %v5535, %v5651
      %v5761 = vadd.f32 %v5536, %v5653
      %v5762 = vadd.f32 %v5537, %v5655
      %v5763 = vadd.f32 %v5538, %v5657
      %v5764 = vadd.f32 %v5539, %v5659
      %v5765 = vadd.f32 %v5540, %v5661
      %v5766 = vadd.f32 %v5541, %v5663
      %v5767 = vadd.f32 %v5542, %v5665
      %v5768 = vadd.f32 %v5543, %v5667
      %v5769 = vadd.f32 %v5544, %v5669
      %v5770 = vadd.f32 %v5545, %v5671
      %v5771 = vadd.f32 %v5546, %v5673
      %v5772 = vadd.f32 %v5547, %v5675
      %v5773 = vadd.f32 %v5548, %v5677
      %v5774 = vadd.f32 %v5549, %v5679
      %v5775 = vadd.f32 %v5550, %v5681
      %v5776 = vadd.f32 %v5551, %v5683
      %v5777 = vadd.f32 %v5552, %v5685
      %v5778 = vadd.f32 %v5553, %v5687
      %v5779 = vadd.f32 %v5554, %v5689
      %v5780 = vadd.f32 %v5555, %v5691
      %v5781 = vadd.f32 %v5556, %v5693
      %v5782 = vadd.f32 %v5557, %v5695
      %v5783 = vadd.f32 %v5558, %v5697
      %v5784 = vadd.f32 %v5559, %v5699
      %v5785 = vadd.f32 %v5560, %v5701
      %v5786 = vadd.f32 %v5561, %v5703
      %v5787 = vadd.f32 %v5562, %v5705
      %v5788 = vadd.f32 %v5563, %v5707
      %v5789 = vadd.f32 %v5564, %v5709
      %v5790 = vadd.f32 %v5565, %v5711
      %v5791 = vadd.f32 %v5566, %v5713
      %v5792 = vadd.f32 %v5567, %v5715
      %v5793 = vadd.f32 %v5568, %v5717
      %v5794 = vadd.f32 %v5569, %v5719
      %v5795 = vadd.f32 %v5570, %v5721
      %v5796 = vld [vmem:[#allocation2 + $0x68] sm:$0xf8]
      %v5797 = vld [vmem:[#allocation2 + $0x78] sm:$0xff]
      %v5798 = vld [vmem:[#allocation2 + $0x88] sm:$0xff]
      %v5799 = vld [vmem:[#allocation2 + $0x98] sm:$0xff]
      %v5800 = vld [vmem:[#allocation2 + $0xa8] sm:$0xff]
      %v5801 = vld [vmem:[#allocation2 + $0xb8] sm:$0xff]
      %v5802 = vld [vmem:[#allocation2 + $0xc8] sm:$0xff]
      %v5803 = vld [vmem:[#allocation2 + $0xd8] sm:$0xff]
      %v5804 = vld [vmem:[#allocation2 + $0xe8] sm:$0xff]
      %v5805 = vld [vmem:[#allocation2 + $0xf8] sm:$0xff]
      %v5806 = vld [vmem:[#allocation2 + $0x108] sm:$0xff]
      %v5807 = vld [vmem:[#allocation2 + $0x118] sm:$0xff]
      %v5808 = vld [vmem:[#allocation2 + $0x128] sm:$0xff]
      %v5809 = vld [vmem:[#allocation2 + $0x138] sm:$0xff]
      %v5810 = vld [vmem:[#allocation2 + $0x148] sm:$0xff]
      %v5811 = vld [vmem:[#allocation2 + $0x158] sm:$0xff]
      %v5812 = vld [vmem:[#allocation2 + $0x168] sm:$0xff]
      %v5813 = vld [vmem:[#allocation2 + $0x178] sm:$0xff]
      %v5814 = vld [vmem:[#allocation2 + $0x188] sm:$0xff]
      %v5815 = vld [vmem:[#allocation2 + $0x198] sm:$0xff]
      %v5816 = vld [vmem:[#allocation2 + $0x1a8] sm:$0xff]
      %v5817 = vld [vmem:[#allocation2 + $0x1b8] sm:$0xff]
      %v5818 = vld [vmem:[#allocation2 + $0x1c8] sm:$0xff]
      %v5819 = vld [vmem:[#allocation2 + $0x1d8] sm:$0xff]
      %v5820 = vld [vmem:[#allocation2 + $0x1e8] sm:$0xff]
      %v5821 = vld [vmem:[#allocation2 + $0x1f8] sm:$0xff]
      %v5822 = vld [vmem:[#allocation2 + $0x208] sm:$0xff]
      %v5823 = vld [vmem:[#allocation2 + $0x218] sm:$0xff]
      %v5824 = vld [vmem:[#allocation2 + $0x228] sm:$0xff]
      %v5825 = vld [vmem:[#allocation2 + $0x238] sm:$0xff]
      %v5826 = vld [vmem:[#allocation2 + $0x248] sm:$0xff]
      %v5827 = vld [vmem:[#allocation2 + $0x258] sm:$0xff]
      %v5828 = vld [vmem:[#allocation2 + $0x268] sm:$0xff]
      %v5829 = vld [vmem:[#allocation2 + $0x278] sm:$0xff]
      %v5830 = vld [vmem:[#allocation2 + $0x288] sm:$0xff]
      %v5831 = vld [vmem:[#allocation2 + $0x298] sm:$0xff]
      %v5832 = vld [vmem:[#allocation2 + $0x2a8] sm:$0x7]
      %v5870 = vrot.slane %v5796, 6
      %v5871 = vrot.slane %v5797, 6
      %v5872 = vsel %vm3244, %v5870, %v5871
      %v5873 = vrot.slane %v5798, 6
      %v5874 = vsel %vm3244, %v5871, %v5873
      %v5875 = vrot.slane %v5799, 6
      %v5876 = vsel %vm3244, %v5873, %v5875
      %v5877 = vrot.slane %v5800, 6
      %v5878 = vsel %vm3244, %v5875, %v5877
      %v5879 = vrot.slane %v5801, 6
      %v5880 = vsel %vm3244, %v5877, %v5879
      %v5881 = vrot.slane %v5802, 6
      %v5882 = vsel %vm3244, %v5879, %v5881
      %v5883 = vrot.slane %v5803, 6
      %v5884 = vsel %vm3244, %v5881, %v5883
      %v5885 = vrot.slane %v5804, 6
      %v5886 = vsel %vm3244, %v5883, %v5885
      %v5887 = vrot.slane %v5805, 6
      %v5888 = vsel %vm3244, %v5885, %v5887
      %v5889 = vrot.slane %v5806, 6
      %v5890 = vsel %vm3244, %v5887, %v5889
      %v5891 = vrot.slane %v5807, 6
      %v5892 = vsel %vm3244, %v5889, %v5891
      %v5893 = vrot.slane %v5808, 6
      %v5894 = vsel %vm3244, %v5891, %v5893
      %v5895 = vrot.slane %v5809, 6
      %v5896 = vsel %vm3244, %v5893, %v5895
      %v5897 = vrot.slane %v5810, 6
      %v5898 = vsel %vm3244, %v5895, %v5897
      %v5899 = vrot.slane %v5811, 6
      %v5900 = vsel %vm3244, %v5897, %v5899
      %v5901 = vrot.slane %v5812, 6
      %v5902 = vsel %vm3244, %v5899, %v5901
      %v5903 = vrot.slane %v5813, 6
      %v5904 = vsel %vm3244, %v5901, %v5903
      %v5905 = vrot.slane %v5814, 6
      %v5906 = vsel %vm3244, %v5903, %v5905
      %v5907 = vrot.slane %v5815, 6
      %v5908 = vsel %vm3244, %v5905, %v5907
      %v5909 = vrot.slane %v5816, 6
      %v5910 = vsel %vm3244, %v5907, %v5909
      %v5911 = vrot.slane %v5817, 6
      %v5912 = vsel %vm3244, %v5909, %v5911
      %v5913 = vrot.slane %v5818, 6
      %v5914 = vsel %vm3244, %v5911, %v5913
      %v5915 = vrot.slane %v5819, 6
      %v5916 = vsel %vm3244, %v5913, %v5915
      %v5917 = vrot.slane %v5820, 6
      %v5918 = vsel %vm3244, %v5915, %v5917
      %v5919 = vrot.slane %v5821, 6
      %v5920 = vsel %vm3244, %v5917, %v5919
      %v5921 = vrot.slane %v5822, 6
      %v5922 = vsel %vm3244, %v5919, %v5921
      %v5923 = vrot.slane %v5823, 6
      %v5924 = vsel %vm3244, %v5921, %v5923
      %v5925 = vrot.slane %v5824, 6
      %v5926 = vsel %vm3244, %v5923, %v5925
      %v5927 = vrot.slane %v5825, 6
      %v5928 = vsel %vm3244, %v5925, %v5927
      %v5929 = vrot.slane %v5826, 6
      %v5930 = vsel %vm3244, %v5927, %v5929
      %v5931 = vrot.slane %v5827, 6
      %v5932 = vsel %vm3244, %v5929, %v5931
      %v5933 = vrot.slane %v5828, 6
      %v5934 = vsel %vm3244, %v5931, %v5933
      %v5935 = vrot.slane %v5829, 6
      %v5936 = vsel %vm3244, %v5933, %v5935
      %v5937 = vrot.slane %v5830, 6
      %v5938 = vsel %vm3244, %v5935, %v5937
      %v5939 = vrot.slane %v5831, 6
      %v5940 = vsel %vm3244, %v5937, %v5939
      %v5941 = vrot.slane %v5832, 6
      %v5942 = vsel %vm3244, %v5939, %v5941
      %v5980 = vadd.f32 %v5759, %v5870
      %v5981 = vadd.f32 %v5760, %v5872
      %v5982 = vadd.f32 %v5761, %v5874
      %v5983 = vadd.f32 %v5762, %v5876
      %v5984 = vadd.f32 %v5763, %v5878
      %v5985 = vadd.f32 %v5764, %v5880
      %v5986 = vadd.f32 %v5765, %v5882
      %v5987 = vadd.f32 %v5766, %v5884
      %v5988 = vadd.f32 %v5767, %v5886
      %v5989 = vadd.f32 %v5768, %v5888
      %v5990 = vadd.f32 %v5769, %v5890
      %v5991 = vadd.f32 %v5770, %v5892
      %v5992 = vadd.f32 %v5771, %v5894
      %v5993 = vadd.f32 %v5772, %v5896
      %v5994 = vadd.f32 %v5773, %v5898
      %v5995 = vadd.f32 %v5774, %v5900
      %v5996 = vadd.f32 %v5775, %v5902
      %v5997 = vadd.f32 %v5776, %v5904
      %v5998 = vadd.f32 %v5777, %v5906
      %v5999 = vadd.f32 %v5778, %v5908
      %v6000 = vadd.f32 %v5779, %v5910
      %v6001 = vadd.f32 %v5780, %v5912
      %v6002 = vadd.f32 %v5781, %v5914
      %v6003 = vadd.f32 %v5782, %v5916
      %v6004 = vadd.f32 %v5783, %v5918
      %v6005 = vadd.f32 %v5784, %v5920
      %v6006 = vadd.f32 %v5785, %v5922
      %v6007 = vadd.f32 %v5786, %v5924
      %v6008 = vadd.f32 %v5787, %v5926
      %v6009 = vadd.f32 %v5788, %v5928
      %v6010 = vadd.f32 %v5789, %v5930
      %v6011 = vadd.f32 %v5790, %v5932
      %v6012 = vadd.f32 %v5791, %v5934
      %v6013 = vadd.f32 %v5792, %v5936
      %v6014 = vadd.f32 %v5793, %v5938
      %v6015 = vadd.f32 %v5794, %v5940
      %v6016 = vadd.f32 %v5795, %v5942
      %v6017 = vld [vmem:[%s5] sm:$0x1]
      %v6019 = vlaneseq
      %v6020 = vshrl.u32 %v6019, 7
      %v6021 = vsub.s32 0, %v6020
      %v6022 = vrot.slane %v6017, %v6021
      %v6024 = vadd.f32 %v5980, %v6022
      %v6025 = vadd.f32 %v5981, %v6022
      %v6026 = vadd.f32 %v5982, %v6022
      %v6027 = vadd.f32 %v5983, %v6022
      %v6028 = vadd.f32 %v5984, %v6022
      %v6029 = vadd.f32 %v5985, %v6022
      %v6030 = vadd.f32 %v5986, %v6022
      %v6031 = vadd.f32 %v5987, %v6022
      %v6032 = vadd.f32 %v5988, %v6022
      %v6033 = vadd.f32 %v5989, %v6022
      %v6034 = vadd.f32 %v5990, %v6022
      %v6035 = vadd.f32 %v5991, %v6022
      %v6036 = vadd.f32 %v5992, %v6022
      %v6037 = vadd.f32 %v5993, %v6022
      %v6038 = vadd.f32 %v5994, %v6022
      %v6039 = vadd.f32 %v5995, %v6022
      %v6040 = vadd.f32 %v5996, %v6022
      %v6041 = vadd.f32 %v5997, %v6022
      %v6042 = vadd.f32 %v5998, %v6022
      %v6043 = vadd.f32 %v5999, %v6022
      %v6044 = vadd.f32 %v6000, %v6022
      %v6045 = vadd.f32 %v6001, %v6022
      %v6046 = vadd.f32 %v6002, %v6022
      %v6047 = vadd.f32 %v6003, %v6022
      %v6048 = vadd.f32 %v6004, %v6022
      %v6049 = vadd.f32 %v6005, %v6022
      %v6050 = vadd.f32 %v6006, %v6022
      %v6051 = vadd.f32 %v6007, %v6022
      %v6052 = vadd.f32 %v6008, %v6022
      %v6053 = vadd.f32 %v6009, %v6022
      %v6054 = vadd.f32 %v6010, %v6022
      %v6055 = vadd.f32 %v6011, %v6022
      %v6056 = vadd.f32 %v6012, %v6022
      %v6057 = vadd.f32 %v6013, %v6022
      %v6058 = vadd.f32 %v6014, %v6022
      %v6059 = vadd.f32 %v6015, %v6022
      %v6060 = vadd.f32 %v6016, %v6022
      %vm6061 = vcmp.ge.f32.partialorder %v6024, 0.0
      %vm6062 = vcmp.ge.f32.partialorder %v6025, 0.0
      %vm6063 = vcmp.ge.f32.partialorder %v6026, 0.0
      %vm6064 = vcmp.ge.f32.partialorder %v6027, 0.0
      %vm6065 = vcmp.ge.f32.partialorder %v6028, 0.0
      %vm6066 = vcmp.ge.f32.partialorder %v6029, 0.0
      %vm6067 = vcmp.ge.f32.partialorder %v6030, 0.0
      %vm6068 = vcmp.ge.f32.partialorder %v6031, 0.0
      %vm6069 = vcmp.ge.f32.partialorder %v6032, 0.0
      %vm6070 = vcmp.ge.f32.partialorder %v6033, 0.0
      %vm6071 = vcmp.ge.f32.partialorder %v6034, 0.0
      %vm6072 = vcmp.ge.f32.partialorder %v6035, 0.0
      %vm6073 = vcmp.ge.f32.partialorder %v6036, 0.0
      %vm6074 = vcmp.ge.f32.partialorder %v6037, 0.0
      %vm6075 = vcmp.ge.f32.partialorder %v6038, 0.0
      %vm6076 = vcmp.ge.f32.partialorder %v6039, 0.0
      %vm6077 = vcmp.ge.f32.partialorder %v6040, 0.0
      %vm6078 = vcmp.ge.f32.partialorder %v6041, 0.0
      %vm6079 = vcmp.ge.f32.partialorder %v6042, 0.0
      %vm6080 = vcmp.ge.f32.partialorder %v6043, 0.0
      %vm6081 = vcmp.ge.f32.partialorder %v6044, 0.0
      %vm6082 = vcmp.ge.f32.partialorder %v6045, 0.0
      %vm6083 = vcmp.ge.f32.partialorder %v6046, 0.0
      %vm6084 = vcmp.ge.f32.partialorder %v6047, 0.0
      %vm6085 = vcmp.ge.f32.partialorder %v6048, 0.0
      %vm6086 = vcmp.ge.f32.partialorder %v6049, 0.0
      %vm6087 = vcmp.ge.f32.partialorder %v6050, 0.0
      %vm6088 = vcmp.ge.f32.partialorder %v6051, 0.0
      %vm6089 = vcmp.ge.f32.partialorder %v6052, 0.0
      %vm6090 = vcmp.ge.f32.partialorder %v6053, 0.0
      %vm6091 = vcmp.ge.f32.partialorder %v6054, 0.0
      %vm6092 = vcmp.ge.f32.partialorder %v6055, 0.0
      %vm6093 = vcmp.ge.f32.partialorder %v6056, 0.0
      %vm6094 = vcmp.ge.f32.partialorder %v6057, 0.0
      %vm6095 = vcmp.ge.f32.partialorder %v6058, 0.0
      %vm6096 = vcmp.ge.f32.partialorder %v6059, 0.0
      %vm6097 = vcmp.ge.f32.partialorder %v6060, 0.0
      %v6098 = vmul.f32 %v6024, 0.01
      %v6099 = vmul.f32 %v6025, 0.01
      %v6100 = vmul.f32 %v6026, 0.01
      %v6101 = vmul.f32 %v6027, 0.01
      %v6102 = vmul.f32 %v6028, 0.01
      %v6103 = vmul.f32 %v6029, 0.01
      %v6104 = vmul.f32 %v6030, 0.01
      %v6105 = vmul.f32 %v6031, 0.01
      %v6106 = vmul.f32 %v6032, 0.01
      %v6107 = vmul.f32 %v6033, 0.01
      %v6108 = vmul.f32 %v6034, 0.01
      %v6109 = vmul.f32 %v6035, 0.01
      %v6110 = vmul.f32 %v6036, 0.01
      %v6111 = vmul.f32 %v6037, 0.01
      %v6112 = vmul.f32 %v6038, 0.01
      %v6113 = vmul.f32 %v6039, 0.01
      %v6114 = vmul.f32 %v6040, 0.01
      %v6115 = vmul.f32 %v6041, 0.01
      %v6116 = vmul.f32 %v6042, 0.01
      %v6117 = vmul.f32 %v6043, 0.01
      %v6118 = vmul.f32 %v6044, 0.01
      %v6119 = vmul.f32 %v6045, 0.01
      %v6120 = vmul.f32 %v6046, 0.01
      %v6121 = vmul.f32 %v6047, 0.01
      %v6122 = vmul.f32 %v6048, 0.01
      %v6123 = vmul.f32 %v6049, 0.01
      %v6124 = vmul.f32 %v6050, 0.01
      %v6125 = vmul.f32 %v6051, 0.01
      %v6126 = vmul.f32 %v6052, 0.01
      %v6127 = vmul.f32 %v6053, 0.01
      %v6128 = vmul.f32 %v6054, 0.01
      %v6129 = vmul.f32 %v6055, 0.01
      %v6130 = vmul.f32 %v6056, 0.01
      %v6131 = vmul.f32 %v6057, 0.01
      %v6132 = vmul.f32 %v6058, 0.01
      %v6133 = vmul.f32 %v6059, 0.01
      %v6134 = vmul.f32 %v6060, 0.01
      %v6135 = vsel %vm6061, %v6024, %v6098
      %v6136 = vsel %vm6062, %v6025, %v6099
      %v6137 = vsel %vm6063, %v6026, %v6100
      %v6138 = vsel %vm6064, %v6027, %v6101
      %v6139 = vsel %vm6065, %v6028, %v6102
      %v6140 = vsel %vm6066, %v6029, %v6103
      %v6141 = vsel %vm6067, %v6030, %v6104
      %v6142 = vsel %vm6068, %v6031, %v6105
      %v6143 = vsel %vm6069, %v6032, %v6106
      %v6144 = vsel %vm6070, %v6033, %v6107
      %v6145 = vsel %vm6071, %v6034, %v6108
      %v6146 = vsel %vm6072, %v6035, %v6109
      %v6147 = vsel %vm6073, %v6036, %v6110
      %v6148 = vsel %vm6074, %v6037, %v6111
      %v6149 = vsel %vm6075, %v6038, %v6112
      %v6150 = vsel %vm6076, %v6039, %v6113
      %v6151 = vsel %vm6077, %v6040, %v6114
      %v6152 = vsel %vm6078, %v6041, %v6115
      %v6153 = vsel %vm6079, %v6042, %v6116
      %v6154 = vsel %vm6080, %v6043, %v6117
      %v6155 = vsel %vm6081, %v6044, %v6118
      %v6156 = vsel %vm6082, %v6045, %v6119
      %v6157 = vsel %vm6083, %v6046, %v6120
      %v6158 = vsel %vm6084, %v6047, %v6121
      %v6159 = vsel %vm6085, %v6048, %v6122
      %v6160 = vsel %vm6086, %v6049, %v6123
      %v6161 = vsel %vm6087, %v6050, %v6124
      %v6162 = vsel %vm6088, %v6051, %v6125
      %v6163 = vsel %vm6089, %v6052, %v6126
      %v6164 = vsel %vm6090, %v6053, %v6127
      %v6165 = vsel %vm6091, %v6054, %v6128
      %v6166 = vsel %vm6092, %v6055, %v6129
      %v6167 = vsel %vm6093, %v6056, %v6130
      %v6168 = vsel %vm6094, %v6057, %v6131
      %v6169 = vsel %vm6095, %v6058, %v6132
      %v6170 = vsel %vm6096, %v6059, %v6133
      %v6171 = vsel %vm6097, %v6060, %v6134
      %v6172 = vld [vmem:[%s6] sm:$0x3]
      %v6173 = vpack.c.bf16 %v6136, %v6135
      %v6174 = vpack.c.bf16 %v6138, %v6137
      %v6175 = vpack.c.bf16 %v6140, %v6139
      %v6176 = vpack.c.bf16 %v6142, %v6141
      %v6177 = vpack.c.bf16 %v6144, %v6143
      %v6178 = vpack.c.bf16 %v6146, %v6145
      %v6179 = vpack.c.bf16 %v6148, %v6147
      %v6180 = vpack.c.bf16 %v6150, %v6149
      %v6181 = vpack.c.bf16 %v6152, %v6151
      %v6182 = vpack.c.bf16 %v6154, %v6153
      %v6183 = vpack.c.bf16 %v6156, %v6155
      %v6184 = vpack.c.bf16 %v6158, %v6157
      %v6185 = vpack.c.bf16 %v6160, %v6159
      %v6186 = vpack.c.bf16 %v6162, %v6161
      %v6187 = vpack.c.bf16 %v6164, %v6163
      %v6188 = vpack.c.bf16 %v6166, %v6165
      %v6189 = vpack.c.bf16 %v6168, %v6167
      %v6190 = vpack.c.bf16 %v6170, %v6169
      %v6191 = vpack.c.bf16 %v6171, %v6171
      %v6192 = vld [vmem:[%s7] sm:$0xf]
      %6194 = vset.pattern.permute.xlu0 0
      %6195 = vperm.xlu0 %6194, %v6192
      %v6196 = vpop.permute.xlu0 %6195
      %vm6198 = vsmask.f32 5376
      %v6200 = vshrl.u32 %v6173, 16
      %v6202 = vrot.slane %v6200, 2
      %v6203 = vshll.u32 %v6173, 16
      %v6205 = vrot.slane %v6203, 3
      %v6206 = vor.u32 %v6202, %v6205
      %v6208 = vshrl.u32 %v6174, 16
      %v6210 = vrot.slane %v6208, 2
      %v6211 = vshll.u32 %v6174, 16
      %v6213 = vrot.slane %v6211, 3
      %v6214 = vor.u32 %v6210, %v6213
      %v6215 = vsel %vm6198, %v6206, %v6214
      %v6217 = vshrl.u32 %v6175, 16
      %v6219 = vrot.slane %v6217, 2
      %v6220 = vshll.u32 %v6175, 16
      %v6222 = vrot.slane %v6220, 3
      %v6223 = vor.u32 %v6219, %v6222
      %v6224 = vsel %vm6198, %v6214, %v6223
      %v6226 = vshrl.u32 %v6176, 16
      %v6228 = vrot.slane %v6226, 2
      %v6229 = vshll.u32 %v6176, 16
      %v6231 = vrot.slane %v6229, 3
      %v6232 = vor.u32 %v6228, %v6231
      %v6233 = vsel %vm6198, %v6223, %v6232
      %v6235 = vshrl.u32 %v6177, 16
      %v6237 = vrot.slane %v6235, 2
      %v6238 = vshll.u32 %v6177, 16
      %v6240 = vrot.slane %v6238, 3
      %v6241 = vor.u32 %v6237, %v6240
      %v6242 = vsel %vm6198, %v6232, %v6241
      %v6244 = vshrl.u32 %v6178, 16
      %v6246 = vrot.slane %v6244, 2
      %v6247 = vshll.u32 %v6178, 16
      %v6249 = vrot.slane %v6247, 3
      %v6250 = vor.u32 %v6246, %v6249
      %v6251 = vsel %vm6198, %v6241, %v6250
      %v6253 = vshrl.u32 %v6179, 16
      %v6255 = vrot.slane %v6253, 2
      %v6256 = vshll.u32 %v6179, 16
      %v6258 = vrot.slane %v6256, 3
      %v6259 = vor.u32 %v6255, %v6258
      %v6260 = vsel %vm6198, %v6250, %v6259
      %v6262 = vshrl.u32 %v6180, 16
      %v6264 = vrot.slane %v6262, 2
      %v6265 = vshll.u32 %v6180, 16
      %v6267 = vrot.slane %v6265, 3
      %v6268 = vor.u32 %v6264, %v6267
      %v6269 = vsel %vm6198, %v6259, %v6268
      %v6271 = vshrl.u32 %v6181, 16
      %v6273 = vrot.slane %v6271, 2
      %v6274 = vshll.u32 %v6181, 16
      %v6276 = vrot.slane %v6274, 3
      %v6277 = vor.u32 %v6273, %v6276
      %v6278 = vsel %vm6198, %v6268, %v6277
      %v6280 = vshrl.u32 %v6182, 16
      %v6282 = vrot.slane %v6280, 2
      %v6283 = vshll.u32 %v6182, 16
      %v6285 = vrot.slane %v6283, 3
      %v6286 = vor.u32 %v6282, %v6285
      %v6287 = vsel %vm6198, %v6277, %v6286
      %v6289 = vshrl.u32 %v6183, 16
      %v6291 = vrot.slane %v6289, 2
      %v6292 = vshll.u32 %v6183, 16
      %v6294 = vrot.slane %v6292, 3
      %v6295 = vor.u32 %v6291, %v6294
      %v6296 = vsel %vm6198, %v6286, %v6295
      %v6298 = vshrl.u32 %v6184, 16
      %v6300 = vrot.slane %v6298, 2
      %v6301 = vshll.u32 %v6184, 16
      %v6303 = vrot.slane %v6301, 3
      %v6304 = vor.u32 %v6300, %v6303
      %v6305 = vsel %vm6198, %v6295, %v6304
      %v6307 = vshrl.u32 %v6185, 16
      %v6309 = vrot.slane %v6307, 2
      %v6310 = vshll.u32 %v6185, 16
      %v6312 = vrot.slane %v6310, 3
      %v6313 = vor.u32 %v6309, %v6312
      %v6314 = vsel %vm6198, %v6304, %v6313
      %v6316 = vshrl.u32 %v6186, 16
      %v6318 = vrot.slane %v6316, 2
      %v6319 = vshll.u32 %v6186, 16
      %v6321 = vrot.slane %v6319, 3
      %v6322 = vor.u32 %v6318, %v6321
      %v6323 = vsel %vm6198, %v6313, %v6322
      %v6325 = vshrl.u32 %v6187, 16
      %v6327 = vrot.slane %v6325, 2
      %v6328 = vshll.u32 %v6187, 16
      %v6330 = vrot.slane %v6328, 3
      %v6331 = vor.u32 %v6327, %v6330
      %v6332 = vsel %vm6198, %v6322, %v6331
      %v6334 = vshrl.u32 %v6188, 16
      %v6336 = vrot.slane %v6334, 2
      %v6337 = vshll.u32 %v6188, 16
      %v6339 = vrot.slane %v6337, 3
      %v6340 = vor.u32 %v6336, %v6339
      %v6341 = vsel %vm6198, %v6331, %v6340
      %v6343 = vshrl.u32 %v6189, 16
      %v6345 = vrot.slane %v6343, 2
      %v6346 = vshll.u32 %v6189, 16
      %v6348 = vrot.slane %v6346, 3
      %v6349 = vor.u32 %v6345, %v6348
      %v6350 = vsel %vm6198, %v6340, %v6349
      %v6352 = vshrl.u32 %v6190, 16
      %v6354 = vrot.slane %v6352, 2
      %v6355 = vshll.u32 %v6190, 16
      %v6357 = vrot.slane %v6355, 3
      %v6358 = vor.u32 %v6354, %v6357
      %v6359 = vsel %vm6198, %v6349, %v6358
      %v6361 = vshrl.u32 %v6191, 16
      %v6363 = vrot.slane %v6361, 2
      %v6364 = vshll.u32 %v6191, 16
      %v6366 = vrot.slane %v6364, 3
      %v6367 = vor.u32 %v6363, %v6366
      %v6368 = vsel %vm6198, %v6358, %v6367
      %v6370 = vsel %vm1547, %v6172, 0
      %v6373 = vsel %vm1547, %v6215, 0
      %v6376 = vsel %vm1547, %v6224, 0
      %v6379 = vsel %vm1547, %v6233, 0
      %v6382 = vsel %vm1547, %v6242, 0
      %v6385 = vsel %vm1547, %v6251, 0
      %v6388 = vsel %vm1547, %v6260, 0
      %v6391 = vsel %vm1547, %v6269, 0
      %v6394 = vsel %vm1547, %v6278, 0
      %v6397 = vsel %vm1547, %v6287, 0
      %v6400 = vsel %vm1547, %v6296, 0
      %v6403 = vsel %vm1547, %v6305, 0
      %v6406 = vsel %vm1547, %v6314, 0
      %v6409 = vsel %vm1547, %v6323, 0
      %v6412 = vsel %vm1547, %v6332, 0
      %v6415 = vsel %vm1547, %v6341, 0
      %v6418 = vsel %vm1547, %v6350, 0
      %v6421 = vsel %vm1547, %v6359, 0
      %v6424 = vsel %vm1547, %v6368, 0
      %6426 = vmatprep.subr.bf16.mxu0 0
      %6427 = vmatpush1.bf16.xpose.msra.mxu0 %v6373
      %6428 = vmatprep.subr.bf16.mxu0 0
      %6429 = vmatpush1.bf16.xpose.msra.mxu0 %v6376
      %6430 = vmatprep.subr.bf16.mxu0 0
      %6431 = vmatpush1.bf16.xpose.msra.mxu0 %v6379
      %6432 = vmatprep.subr.bf16.mxu0 0
      %6433 = vmatpush1.bf16.xpose.msra.mxu0 %v6382
      %6434 = vmatprep.subr.bf16.mxu0 0
      %6435 = vmatpush1.bf16.xpose.msra.mxu0 %v6385
      %6436 = vmatprep.subr.bf16.mxu0 0
      %6437 = vmatpush1.bf16.xpose.msra.mxu0 %v6388
      %6438 = vmatprep.subr.bf16.mxu0 0
      %6439 = vmatpush1.bf16.xpose.msra.mxu0 %v6391
      %6440 = vmatprep.subr.bf16.mxu0 0
      %6441 = vmatpush1.bf16.xpose.msra.mxu0 %v6394
      %6442 = vmatprep.subr.bf16.mxu0 0
      %6443 = vmatpush1.bf16.xpose.msra.mxu0 %v6397
      %6444 = vmatprep.subr.bf16.mxu0 0
      %6445 = vmatpush1.bf16.xpose.msra.mxu0 %v6400
      %6446 = vmatprep.subr.bf16.mxu0 0
      %6447 = vmatpush1.bf16.xpose.msra.mxu0 %v6403
      %6448 = vmatprep.subr.bf16.mxu0 0
      %6449 = vmatpush1.bf16.xpose.msra.mxu0 %v6406
      %6450 = vmatprep.subr.bf16.mxu0 0
      %6451 = vmatpush1.bf16.xpose.msra.mxu0 %v6409
      %6452 = vmatprep.subr.bf16.mxu0 0
      %6453 = vmatpush1.bf16.xpose.msra.mxu0 %v6412
      %6454 = vmatprep.subr.bf16.mxu0 0
      %6455 = vmatpush1.bf16.xpose.msra.mxu0 %v6415
      %6456 = vmatprep.subr.bf16.mxu0 0
      %6457 = vmatpush1.bf16.xpose.msra.mxu0 %v6418
      %6458 = vmatprep.mubr.bf16.mxu0 0
      %6459 = vmatmul.mubr.bf16.gmra.mrb[0].mxu0 %v6370
      %v6460 = vpop.f32.mrb[0].mxu0
      %v6461 = vadd.f32 %v6196, %v6460
      %v6462 = vpop.f32.mrb[0].mxu0
      %v6463 = vadd.f32 %v6196, %v6462
      %v6464 = vpop.f32.mrb[0].mxu0
      %v6465 = vpop.f32.mrb[0].mxu0
      %6466 = vdwg.mxu0
      %6467 = vmatprep.subr.bf16.mxu0 0
      %6468 = vmatpush1.bf16.xpose.msra.mxu0 %v6421
      %6469 = vmatprep.subr.bf16.mxu0 0
      %6470 = vmatpush1.bf16.xpose.msra.mxu0 %v6424
      %6471 = vmatprep.subr.bf16.mxu0 0
      %6472 = vmatpush1.bf16.xpose.msra.mxu0 0
      %6473 = vmatprep.subr.bf16.mxu0 0
      %6474 = vmatpush1.bf16.xpose.msra.mxu0 0
      %6475 = vmatprep.subr.bf16.mxu0 0
      %6476 = vmatpush1.bf16.xpose.msra.mxu0 0
      %6477 = vmatprep.subr.bf16.mxu0 0
      %6478 = vmatpush1.bf16.xpose.msra.mxu0 0
      %6479 = vmatprep.subr.bf16.mxu0 0
      %6480 = vmatpush1.bf16.xpose.msra.mxu0 0
      %6481 = vmatprep.subr.bf16.mxu0 0
      %6482 = vmatpush1.bf16.xpose.msra.mxu0 0
      %6483 = vmatprep.subr.bf16.mxu0 0
      %6484 = vmatpush1.bf16.xpose.msra.mxu0 0
      %6485 = vmatprep.subr.bf16.mxu0 0
      %6486 = vmatpush1.bf16.xpose.msra.mxu0 0
      %6487 = vmatprep.subr.bf16.mxu0 0
      %6488 = vmatpush1.bf16.xpose.msra.mxu0 0
      %6489 = vmatprep.subr.bf16.mxu0 0
      %6490 = vmatpush1.bf16.xpose.msra.mxu0 0
      %6491 = vmatprep.subr.bf16.mxu0 0
      %6492 = vmatpush1.bf16.xpose.msra.mxu0 0
      %6493 = vmatprep.subr.bf16.mxu0 0
      %6494 = vmatpush1.bf16.xpose.msra.mxu0 0
      %6495 = vmatprep.subr.bf16.mxu0 0
      %6496 = vmatpush1.bf16.xpose.msra.mxu0 0
      %6497 = vmatprep.subr.bf16.mxu0 0
      %6498 = vmatpush1.bf16.xpose.msra.mxu0 0
      %6499 = vmatprep.mubr.bf16.mxu0 0
      %6500 = vmatmul.mubr.bf16.gmra.mrb[0].mxu0 %v6370
      %v6501 = vpop.f32.mrb[0].mxu0
      %v6502 = vadd.f32 %v6196, %v6501
      %v6503 = vpop.f32.mrb[0].mxu0
      %v6504 = vpop.f32.mrb[0].mxu0
      %v6505 = vpop.f32.mrb[0].mxu0
      %6506 = vdwg.mxu0
      %v6509 = vcombine.low %v6461, %v6463
      %6511 = vst [vmem:[%s305] sm:$0xff] %v6509
      %vm6512 = vcmask 257024
      %6513 = vst.msk [vmem:[%s305 + $0x8] sm:$0xf] %vm6512, %v6502
      %p6514 = scmp.lt.s32.totalorder %s19, 1
      %s6515 = scalar_select %p6514, %s19, 1
      %s6516 = smul.addr %s6515, 3
      %s6517 = smul.addr %s6516, 4
      %s6518 = scalar_lea.vmem %s8, %s6517
      // Predicated region
      $region53: #{decoder_forward.1} parent=51 // pred_check
        %p6519 = pneg %p210
      $region54: #{decoder_forward.1} parent=51 // pred_check_branch
        %6521 = sbr.rel (%p6519) target = $region56
      $region55: #{decoder_forward.1} parent=51 // pred_region
        _
      $region56: #{decoder_forward.1} parent=51 // pred_fallthru
        _
    $region52: #{decoder_forward.1} parent=5 // pred_fallthru
      _
    %p6522 = scmp.le.s32.totalorder 2, %s14
    // Predicated region
    $region57: #{decoder_forward.1} parent=5 // pred_check
      %p6523 = pneg %p6522
    $region58: #{decoder_forward.1} parent=5 // pred_check_branch
      %6525 = sbr.rel (%p6523) target = $region60
    $region59: #{decoder_forward.1} parent=5 // pred_region
      %s6526 = ssub.s32 %s14, 2
      // Predicated region
      $region61: #{decoder_forward.1} parent=59 // pred_check
        %p6527 = pneg %p216
      $region62: #{decoder_forward.1} parent=59 // pred_check_branch
        %6529 = sbr.rel (%p6527) target = $region64
      $region63: #{decoder_forward.1} parent=59 // pred_region
        %p6530 = scmp.lt.s32.totalorder %s20, 1
        %s6531 = scalar_select %p6530, %s20, 1
        %s6532 = smul.addr %s6531, 3
        %s6533 = smul.addr %s6532, 4
        %s6534 = scalar_lea.vmem %s8, %s6533
      $region64: #{decoder_forward.1} parent=59 // pred_fallthru
        _
    $region60: #{decoder_forward.1} parent=5 // pred_fallthru
      _
  $region6: #{decoder_forward.1} parent=0 // loop_footer
    %s18 = sadd.s32 1, %s14
  $region7: #{decoder_forward.1} parent=0 // loop_footer_branch
    %13 = sbr.rel target = $region3
  $region8: #{decoder_forward.1} parent=0 // loop_exit
    _

</llo_original>
